<compile_context>
chip_gen: v7x
topology: tpu7x:2x2x1
jax: 0.10.0
libtpu: 0.0.40
codegen_flags: <defaults>
</compile_context>

<pallas_src>
import numpy as np
import jax
import jax.numpy as jnp
from jax import lax
from jax.experimental import pallas as pl
from jax.experimental.pallas import tpu as pltpu


def _pick_frames_per_step(NT, max_frames):
    """Largest divisor of NT <= max_frames, preferring >= 2 grid steps."""
    divs = [f for f in range(1, NT + 1) if NT % f == 0 and f <= max(1, max_frames)]
    pref = [f for f in divs if NT // f >= 2]
    return max(pref) if pref else max(divs)


def tebn_layer_forward(x, weight, bias, gamma, beta, p, *, stride, padding,
                       eps=1e-5, frames_per_block=8):
    """x: [N, T, C_in, H, W] float32 -> [N, T, C_out, H_out, W_out] float32."""
    N, T, Cin, H, W = x.shape
    Cout, _, kh, kw = weight.shape
    Hp, Wp = H + 2 * padding, W + 2 * padding
    Hout = (Hp - kh) // stride + 1
    Wout = (Wp - kw) // stride + 1
    NT = N * T
    L = Cout * Wout            # minor (lane) dim of conv-output blocks (512 here)
    KL = Wp * Cin              # minor (lane) dim of input blocks / contraction dim

    F = _pick_frames_per_step(NT, frames_per_block)   # frames per grid step
    grid_f = NT // F

    # ---- glue: channels-last padded input, flattened to [NT, Hp, Wp*Cin] ----
    x_nhwc = x.reshape(NT, Cin, H, W).transpose(0, 2, 3, 1)
    xp = jnp.pad(x_nhwc, ((0, 0), (padding, padding), (padding, padding), (0, 0)))
    xp2 = xp.reshape(NT, Hp, KL).astype(jnp.float32)

    # ---- glue: banded weight  wb[ikh, wp*Cin+ci, co*Wout+w] = W[co,ci,ikh,ikw]
    #      where wp = w*stride + ikw (zeros elsewhere); built with one einsum
    #      against a constant numpy selector (no traced scatters). ----
    sel_np = np.zeros((kw, Wp, Wout), np.float32)
    for ikw in range(kw):
        for w in range(Wout):
            sel_np[ikw, w * stride + ikw, w] = 1.0
    sel = jnp.asarray(sel_np)
    w_t = weight.transpose(2, 3, 1, 0).astype(jnp.float32)      # (kh, kw, Cin, Cout)
    wb = jnp.einsum('xpw,hxic->hpicw', sel, w_t).reshape(kh, KL, L)

    # Conv bias intentionally NOT applied in the kernels: BN (training mode)
    # subtracts the batch mean, so a per-channel constant cancels exactly.
    del bias

    def conv_rows(x_frame, wb_ref):
        # x_frame: (Hp, Wp*Cin)  ->  conv output (Hout, Cout*Wout), lanes=(co,w)
        acc = None
        for ikh in range(kh):
            if stride == 1:
                rows = x_frame[ikh:ikh + Hout, :]
            else:
                # TODO(synk): strided sublane slice path is untested on Mosaic;
                # the shipped test exercises stride=1 only.
                rows = x_frame[ikh:ikh + (Hout - 1) * stride + 1:stride, :]
            part = jnp.dot(rows, wb_ref[ikh], preferred_element_type=jnp.float32)
            acc = part if acc is None else acc + part
        return acc

    # ---- Kernel A: conv (recomputed) + per-tile partial channel statistics ----
    def stats_kernel(x_ref, wb_ref, s1_ref, s2_ref):
        s1 = jnp.zeros((1, L), jnp.float32)
        s2 = jnp.zeros((1, L), jnp.float32)
        for f in range(F):
            y = conv_rows(x_ref[f], wb_ref)                     # (Hout, L)
            s1 = s1 + jnp.sum(y, axis=0, keepdims=True)
            s2 = s2 + jnp.sum(y * y, axis=0, keepdims=True)
        s1_ref[...] = s1[None]
        s2_ref[...] = s2[None]

    s1_t, s2_t = pl.pallas_call(
        stats_kernel,
        out_shape=(
            jax.ShapeDtypeStruct((grid_f, 1, L), jnp.float32),
            jax.ShapeDtypeStruct((grid_f, 1, L), jnp.float32),
        ),
        grid_spec=pltpu.PrefetchScalarGridSpec(
            num_scalar_prefetch=0,
            grid=(grid_f,),
            in_specs=[
                pl.BlockSpec((F, Hp, KL), lambda i: (i, 0, 0)),
                pl.BlockSpec((kh, KL, L), lambda i: (0, 0, 0)),   # constant -> fetched once
            ],
            out_specs=[
                pl.BlockSpec((1, 1, L), lambda i: (i, 0, 0)),
                pl.BlockSpec((1, 1, L), lambda i: (i, 0, 0)),
            ]),
        compiler_params=pltpu.CompilerParams(
            dimension_semantics=("parallel",)),
    )(xp2, wb)

    # ---- glue: fold BN batch stats (biased var) + gamma/beta + TEBN p ----
    count = jnp.float32(NT * Hout * Wout)
    ch_sum = s1_t.reshape(grid_f, Cout, Wout).sum(axis=(0, 2))   # lane = co*Wout+w
    ch_ssq = s2_t.reshape(grid_f, Cout, Wout).sum(axis=(0, 2))
    mean = ch_sum / count
    var = ch_ssq / count - mean * mean                           # biased variance
    invstd = lax.rsqrt(var + eps)
    scale = gamma.astype(jnp.float32) * invstd                   # (Cout,)
    shift = beta.astype(jnp.float32) - mean * scale              # (Cout,)

    p_frame = jnp.tile(p.reshape(T).astype(jnp.float32), N)      # frame = n*T + t
    sc_lane = jnp.repeat(scale, Wout)                            # lane = co*Wout+w
    sh_lane = jnp.repeat(shift, Wout)
    sc_f = (p_frame[:, None] * sc_lane[None, :])[:, None, :]     # (NT, 1, L)
    sh_f = (p_frame[:, None] * sh_lane[None, :])[:, None, :]     # (NT, 1, L)

    # ---- Kernel B: conv (recomputed) + BN normalize + TEBN scale, lane-dense ----
    def bn_apply_kernel(x_ref, wb_ref, sc_ref, sh_ref, o_ref):
        for f in range(F):
            y = conv_rows(x_ref[f], wb_ref)                      # (Hout, L)
            o_ref[f] = y * sc_ref[f] + sh_ref[f]

    y_out = pl.pallas_call(
        bn_apply_kernel,
        out_shape=jax.ShapeDtypeStruct((NT, Hout, L), jnp.float32),
        grid_spec=pltpu.PrefetchScalarGridSpec(
            num_scalar_prefetch=0,
            grid=(grid_f,),
            in_specs=[
                pl.BlockSpec((F, Hp, KL), lambda i: (i, 0, 0)),
                pl.BlockSpec((kh, KL, L), lambda i: (0, 0, 0)),   # constant -> fetched once
                pl.BlockSpec((F, 1, L), lambda i: (i, 0, 0)),
                pl.BlockSpec((F, 1, L), lambda i: (i, 0, 0)),
            ],
            out_specs=pl.BlockSpec((F, Hout, L), lambda i: (i, 0, 0))),
        compiler_params=pltpu.CompilerParams(
            dimension_semantics=("parallel",)),
    )(xp2, wb, sc_f, sh_f)

    # back to PyTorch layout [N, T, C_out, H_out, W_out]
    # TODO(synk): fuse this final permute into Kernel B (channel-major store) once
    # the in-kernel (h,(co,w)) -> (co,(h,w)) relayout is validated on Mosaic; it is
    # the last remaining extra HBM round-trip of the output.
    return y_out.reshape(N, T, Hout, Cout, Wout).transpose(0, 1, 3, 2, 4)


def tebn_layer_reference(x, weight, bias, gamma, beta, p, *, stride, padding,
                         eps=1e-5):
    N, T, Cin, H, W = x.shape
    Cout = weight.shape[0]
    xf = x.reshape(N * T, Cin, H, W)
    y = lax.conv_general_dilated(
        xf, weight, (stride, stride),
        [(padding, padding), (padding, padding)],
        dimension_numbers=("NCHW", "OIHW", "NCHW")) + bias.reshape(1, Cout, 1, 1)
    mean = y.mean(axis=(0, 2, 3))
    var = y.var(axis=(0, 2, 3))
    yn = (y - mean[None, :, None, None]) * lax.rsqrt(var + eps)[None, :, None, None]
    yn = yn * gamma[None, :, None, None] + beta[None, :, None, None]
    Hout, Wout = y.shape[2], y.shape[3]
    yn = yn.reshape(N, T, Cout, Hout, Wout)
    return yn * p.reshape(1, T, 1, 1, 1)


if __name__ == "__main__":
    key = jax.random.PRNGKey(0)
    N, T = 2, 10            # T = 10 is fixed by TEBN's p parameter (shape (10,1,1,1,1))
    Cin, Cout = 4, 32
    H = W = 16
    ksz, stride, padding = 3, 1, 1

    k1, k2, k3, k4, k5, k6 = jax.random.split(key, 6)
    fan_in = Cin * ksz * ksz
    bound = float(1.0 / (fan_in ** 0.5))
    # Conv2d params (PyTorch default-init-like shapes/ranges), deterministic.
    weight = jax.random.uniform(k1, (Cout, Cin, ksz, ksz), jnp.float32, -bound, bound)
    bias = jax.random.uniform(k2, (Cout,), jnp.float32, -bound, bound)
    # BatchNorm2d affine params and TEBN temporal scale p, perturbed so the
    # elementwise path is exercised.
    gamma = 1.0 + 0.1 * jax.random.normal(k3, (Cout,), jnp.float32)
    beta = 0.1 * jax.random.normal(k4, (Cout,), jnp.float32)
    p = 1.0 + 0.1 * jax.random.normal(k5, (T, 1, 1, 1, 1), jnp.float32)

    x = jax.random.normal(k6, (N, T, Cin, H, W), jnp.float32)

    out = tebn_layer_forward(x, weight, bias, gamma, beta, p,
                             stride=stride, padding=padding)
    out = jax.block_until_ready(out)

    assert out.shape == (N, T, Cout, H, W), out.shape
    ref = tebn_layer_reference(x, weight, bias, gamma, beta, p,
                               stride=stride, padding=padding)
    if not jnp.allclose(out, ref, rtol=1e-2, atol=1e-2):
        max_err = float(jnp.max(jnp.abs(out - ref)))
        raise AssertionError(f"mismatch vs reference, max abs err = {max_err}")
    print("KERNEL_OK")
</pallas_src>

<mosaic_0001>
module attributes {stable_mosaic.version = 11 : i64} {
  func.func @stats_kernel(%arg0: i32, %arg1: memref<5x18x72xf32, #tpu.memory_space<vmem>>, %arg2: memref<3x72x512xf32, #tpu.memory_space<vmem>>, %arg3: memref<1x1x512xf32, #tpu.memory_space<vmem>>, %arg4: memref<1x1x512xf32, #tpu.memory_space<vmem>>) attributes {dimension_semantics = [#tpu.dimension_semantics<parallel>], iteration_bounds = array<i64: 4>, scalar_prefetch = 0 : i64, scratch_operands = 0 : i64, tpu.core_type = #tpu.core_type<tc>, window_params = [{transform_indices = @transform_0, window_bounds = array<i64: 5, 18, 72>}, {pipeline_mode = #tpu.pipeline_mode<synchronous>, transform_indices = @transform_1, window_bounds = array<i64: 3, 72, 512>}, {transform_indices = @transform_2, window_bounds = array<i64: 1, 1, 512>}, {transform_indices = @transform_3, window_bounds = array<i64: 1, 1, 512>}]} {
    %cst = arith.constant 0.000000e+00 : f32
    %0 = vector.broadcast %cst : f32 to vector<1x512xf32>
    %cst_0 = arith.constant 0.000000e+00 : f32
    %1 = vector.broadcast %cst_0 : f32 to vector<1x512xf32>
    %c0 = arith.constant 0 : index
    %c0_1 = arith.constant 0 : index
    %c0_2 = arith.constant 0 : index
    %2 = vector.load %arg1[%c0, %c0_1, %c0_2] : memref<5x18x72xf32, #tpu.memory_space<vmem>>, vector<1x18x72xf32>
    %3 = vector.shape_cast %2 : vector<1x18x72xf32> to vector<18x72xf32>
    %4 = vector.extract_strided_slice %3 {offsets = [0, 0], sizes = [16, 72], strides = [1, 1]} : vector<18x72xf32> to vector<16x72xf32>
    %c0_3 = arith.constant 0 : index
    %c0_4 = arith.constant 0 : index
    %c0_5 = arith.constant 0 : index
    %5 = vector.load %arg2[%c0_3, %c0_4, %c0_5] : memref<3x72x512xf32, #tpu.memory_space<vmem>>, vector<1x72x512xf32>
    %6 = vector.shape_cast %5 : vector<1x72x512xf32> to vector<72x512xf32>
    %cst_6 = arith.constant dense<0.000000e+00> : vector<16x512xf32>
    %7 = tpu.matmul %4, %6, %cst_6 {dimension_numbers = #tpu.dot_dimension_numbers<[1], [0], [0], [1], [0, 0, 1, 1], [], []>} : vector<16x72xf32>, vector<72x512xf32>, vector<16x512xf32> -> vector<16x512xf32>
    %8 = vector.extract_strided_slice %3 {offsets = [1, 0], sizes = [16, 72], strides = [1, 1]} : vector<18x72xf32> to vector<16x72xf32>
    %c1 = arith.constant 1 : index
    %c0_7 = arith.constant 0 : index
    %c0_8 = arith.constant 0 : index
    %9 = vector.load %arg2[%c1, %c0_7, %c0_8] : memref<3x72x512xf32, #tpu.memory_space<vmem>>, vector<1x72x512xf32>
    %10 = vector.shape_cast %9 : vector<1x72x512xf32> to vector<72x512xf32>
    %cst_9 = arith.constant dense<0.000000e+00> : vector<16x512xf32>
    %11 = tpu.matmul %8, %10, %cst_9 {dimension_numbers = #tpu.dot_dimension_numbers<[1], [0], [0], [1], [0, 0, 1, 1], [], []>} : vector<16x72xf32>, vector<72x512xf32>, vector<16x512xf32> -> vector<16x512xf32>
    %12 = arith.addf %7, %11 : vector<16x512xf32>
    %13 = vector.extract_strided_slice %3 {offsets = [2, 0], sizes = [16, 72], strides = [1, 1]} : vector<18x72xf32> to vector<16x72xf32>
    %c2 = arith.constant 2 : index
    %c0_10 = arith.constant 0 : index
    %c0_11 = arith.constant 0 : index
    %14 = vector.load %arg2[%c2, %c0_10, %c0_11] : memref<3x72x512xf32, #tpu.memory_space<vmem>>, vector<1x72x512xf32>
    %15 = vector.shape_cast %14 : vector<1x72x512xf32> to vector<72x512xf32>
    %cst_12 = arith.constant dense<0.000000e+00> : vector<16x512xf32>
    %16 = tpu.matmul %13, %15, %cst_12 {dimension_numbers = #tpu.dot_dimension_numbers<[1], [0], [0], [1], [0, 0, 1, 1], [], []>} : vector<16x72xf32>, vector<72x512xf32>, vector<16x512xf32> -> vector<16x512xf32>
    %17 = arith.addf %12, %16 : vector<16x512xf32>
    %cst_13 = arith.constant dense<0.000000e+00> : vector<512xf32>
    %18 = vector.multi_reduction <add>, %17, %cst_13 [0] : vector<16x512xf32> to vector<512xf32>
    %19 = vector.shape_cast %18 : vector<512xf32> to vector<1x512xf32>
    %20 = arith.addf %0, %19 : vector<1x512xf32>
    %21 = arith.mulf %17, %17 : vector<16x512xf32>
    %cst_14 = arith.constant dense<0.000000e+00> : vector<512xf32>
    %22 = vector.multi_reduction <add>, %21, %cst_14 [0] : vector<16x512xf32> to vector<512xf32>
    %23 = vector.shape_cast %22 : vector<512xf32> to vector<1x512xf32>
    %24 = arith.addf %1, %23 : vector<1x512xf32>
    %c1_15 = arith.constant 1 : index
    %c0_16 = arith.constant 0 : index
    %c0_17 = arith.constant 0 : index
    %25 = vector.load %arg1[%c1_15, %c0_16, %c0_17] : memref<5x18x72xf32, #tpu.memory_space<vmem>>, vector<1x18x72xf32>
    %26 = vector.shape_cast %25 : vector<1x18x72xf32> to vector<18x72xf32>
    %27 = vector.extract_strided_slice %26 {offsets = [0, 0], sizes = [16, 72], strides = [1, 1]} : vector<18x72xf32> to vector<16x72xf32>
    %c0_18 = arith.constant 0 : index
    %c0_19 = arith.constant 0 : index
    %c0_20 = arith.constant 0 : index
    %28 = vector.load %arg2[%c0_18, %c0_19, %c0_20] : memref<3x72x512xf32, #tpu.memory_space<vmem>>, vector<1x72x512xf32>
    %29 = vector.shape_cast %28 : vector<1x72x512xf32> to vector<72x512xf32>
    %cst_21 = arith.constant dense<0.000000e+00> : vector<16x512xf32>
    %30 = tpu.matmul %27, %29, %cst_21 {dimension_numbers = #tpu.dot_dimension_numbers<[1], [0], [0], [1], [0, 0, 1, 1], [], []>} : vector<16x72xf32>, vector<72x512xf32>, vector<16x512xf32> -> vector<16x512xf32>
    %31 = vector.extract_strided_slice %26 {offsets = [1, 0], sizes = [16, 72], strides = [1, 1]} : vector<18x72xf32> to vector<16x72xf32>
    %c1_22 = arith.constant 1 : index
    %c0_23 = arith.constant 0 : index
    %c0_24 = arith.constant 0 : index
    %32 = vector.load %arg2[%c1_22, %c0_23, %c0_24] : memref<3x72x512xf32, #tpu.memory_space<vmem>>, vector<1x72x512xf32>
    %33 = vector.shape_cast %32 : vector<1x72x512xf32> to vector<72x512xf32>
    %cst_25 = arith.constant dense<0.000000e+00> : vector<16x512xf32>
    %34 = tpu.matmul %31, %33, %cst_25 {dimension_numbers = #tpu.dot_dimension_numbers<[1], [0], [0], [1], [0, 0, 1, 1], [], []>} : vector<16x72xf32>, vector<72x512xf32>, vector<16x512xf32> -> vector<16x512xf32>
    %35 = arith.addf %30, %34 : vector<16x512xf32>
    %36 = vector.extract_strided_slice %26 {offsets = [2, 0], sizes = [16, 72], strides = [1, 1]} : vector<18x72xf32> to vector<16x72xf32>
    %c2_26 = arith.constant 2 : index
    %c0_27 = arith.constant 0 : index
    %c0_28 = arith.constant 0 : index
    %37 = vector.load %arg2[%c2_26, %c0_27, %c0_28] : memref<3x72x512xf32, #tpu.memory_space<vmem>>, vector<1x72x512xf32>
    %38 = vector.shape_cast %37 : vector<1x72x512xf32> to vector<72x512xf32>
    %cst_29 = arith.constant dense<0.000000e+00> : vector<16x512xf32>
    %39 = tpu.matmul %36, %38, %cst_29 {dimension_numbers = #tpu.dot_dimension_numbers<[1], [0], [0], [1], [0, 0, 1, 1], [], []>} : vector<16x72xf32>, vector<72x512xf32>, vector<16x512xf32> -> vector<16x512xf32>
    %40 = arith.addf %35, %39 : vector<16x512xf32>
    %cst_30 = arith.constant dense<0.000000e+00> : vector<512xf32>
    %41 = vector.multi_reduction <add>, %40, %cst_30 [0] : vector<16x512xf32> to vector<512xf32>
    %42 = vector.shape_cast %41 : vector<512xf32> to vector<1x512xf32>
    %43 = arith.addf %20, %42 : vector<1x512xf32>
    %44 = arith.mulf %40, %40 : vector<16x512xf32>
    %cst_31 = arith.constant dense<0.000000e+00> : vector<512xf32>
    %45 = vector.multi_reduction <add>, %44, %cst_31 [0] : vector<16x512xf32> to vector<512xf32>
    %46 = vector.shape_cast %45 : vector<512xf32> to vector<1x512xf32>
    %47 = arith.addf %24, %46 : vector<1x512xf32>
    %c2_32 = arith.constant 2 : index
    %c0_33 = arith.constant 0 : index
    %c0_34 = arith.constant 0 : index
    %48 = vector.load %arg1[%c2_32, %c0_33, %c0_34] : memref<5x18x72xf32, #tpu.memory_space<vmem>>, vector<1x18x72xf32>
    %49 = vector.shape_cast %48 : vector<1x18x72xf32> to vector<18x72xf32>
    %50 = vector.extract_strided_slice %49 {offsets = [0, 0], sizes = [16, 72], strides = [1, 1]} : vector<18x72xf32> to vector<16x72xf32>
    %c0_35 = arith.constant 0 : index
    %c0_36 = arith.constant 0 : index
    %c0_37 = arith.constant 0 : index
    %51 = vector.load %arg2[%c0_35, %c0_36, %c0_37] : memref<3x72x512xf32, #tpu.memory_space<vmem>>, vector<1x72x512xf32>
    %52 = vector.shape_cast %51 : vector<1x72x512xf32> to vector<72x512xf32>
    %cst_38 = arith.constant dense<0.000000e+00> : vector<16x512xf32>
    %53 = tpu.matmul %50, %52, %cst_38 {dimension_numbers = #tpu.dot_dimension_numbers<[1], [0], [0], [1], [0, 0, 1, 1], [], []>} : vector<16x72xf32>, vector<72x512xf32>, vector<16x512xf32> -> vector<16x512xf32>
    %54 = vector.extract_strided_slice %49 {offsets = [1, 0], sizes = [16, 72], strides = [1, 1]} : vector<18x72xf32> to vector<16x72xf32>
    %c1_39 = arith.constant 1 : index
    %c0_40 = arith.constant 0 : index
    %c0_41 = arith.constant 0 : index
    %55 = vector.load %arg2[%c1_39, %c0_40, %c0_41] : memref<3x72x512xf32, #tpu.memory_space<vmem>>, vector<1x72x512xf32>
    %56 = vector.shape_cast %55 : vector<1x72x512xf32> to vector<72x512xf32>
    %cst_42 = arith.constant dense<0.000000e+00> : vector<16x512xf32>
    %57 = tpu.matmul %54, %56, %cst_42 {dimension_numbers = #tpu.dot_dimension_numbers<[1], [0], [0], [1], [0, 0, 1, 1], [], []>} : vector<16x72xf32>, vector<72x512xf32>, vector<16x512xf32> -> vector<16x512xf32>
    %58 = arith.addf %53, %57 : vector<16x512xf32>
    %59 = vector.extract_strided_slice %49 {offsets = [2, 0], sizes = [16, 72], strides = [1, 1]} : vector<18x72xf32> to vector<16x72xf32>
    %c2_43 = arith.constant 2 : index
    %c0_44 = arith.constant 0 : index
    %c0_45 = arith.constant 0 : index
    %60 = vector.load %arg2[%c2_43, %c0_44, %c0_45] : memref<3x72x512xf32, #tpu.memory_space<vmem>>, vector<1x72x512xf32>
    %61 = vector.shape_cast %60 : vector<1x72x512xf32> to vector<72x512xf32>
    %cst_46 = arith.constant dense<0.000000e+00> : vector<16x512xf32>
    %62 = tpu.matmul %59, %61, %cst_46 {dimension_numbers = #tpu.dot_dimension_numbers<[1], [0], [0], [1], [0, 0, 1, 1], [], []>} : vector<16x72xf32>, vector<72x512xf32>, vector<16x512xf32> -> vector<16x512xf32>
    %63 = arith.addf %58, %62 : vector<16x512xf32>
    %cst_47 = arith.constant dense<0.000000e+00> : vector<512xf32>
    %64 = vector.multi_reduction <add>, %63, %cst_47 [0] : vector<16x512xf32> to vector<512xf32>
    %65 = vector.shape_cast %64 : vector<512xf32> to vector<1x512xf32>
    %66 = arith.addf %43, %65 : vector<1x512xf32>
    %67 = arith.mulf %63, %63 : vector<16x512xf32>
    %cst_48 = arith.constant dense<0.000000e+00> : vector<512xf32>
    %68 = vector.multi_reduction <add>, %67, %cst_48 [0] : vector<16x512xf32> to vector<512xf32>
    %69 = vector.shape_cast %68 : vector<512xf32> to vector<1x512xf32>
    %70 = arith.addf %47, %69 : vector<1x512xf32>
    %c3 = arith.constant 3 : index
    %c0_49 = arith.constant 0 : index
    %c0_50 = arith.constant 0 : index
    %71 = vector.load %arg1[%c3, %c0_49, %c0_50] : memref<5x18x72xf32, #tpu.memory_space<vmem>>, vector<1x18x72xf32>
    %72 = vector.shape_cast %71 : vector<1x18x72xf32> to vector<18x72xf32>
    %73 = vector.extract_strided_slice %72 {offsets = [0, 0], sizes = [16, 72], strides = [1, 1]} : vector<18x72xf32> to vector<16x72xf32>
    %c0_51 = arith.constant 0 : index
    %c0_52 = arith.constant 0 : index
    %c0_53 = arith.constant 0 : index
    %74 = vector.load %arg2[%c0_51, %c0_52, %c0_53] : memref<3x72x512xf32, #tpu.memory_space<vmem>>, vector<1x72x512xf32>
    %75 = vector.shape_cast %74 : vector<1x72x512xf32> to vector<72x512xf32>
    %cst_54 = arith.constant dense<0.000000e+00> : vector<16x512xf32>
    %76 = tpu.matmul %73, %75, %cst_54 {dimension_numbers = #tpu.dot_dimension_numbers<[1], [0], [0], [1], [0, 0, 1, 1], [], []>} : vector<16x72xf32>, vector<72x512xf32>, vector<16x512xf32> -> vector<16x512xf32>
    %77 = vector.extract_strided_slice %72 {offsets = [1, 0], sizes = [16, 72], strides = [1, 1]} : vector<18x72xf32> to vector<16x72xf32>
    %c1_55 = arith.constant 1 : index
    %c0_56 = arith.constant 0 : index
    %c0_57 = arith.constant 0 : index
    %78 = vector.load %arg2[%c1_55, %c0_56, %c0_57] : memref<3x72x512xf32, #tpu.memory_space<vmem>>, vector<1x72x512xf32>
    %79 = vector.shape_cast %78 : vector<1x72x512xf32> to vector<72x512xf32>
    %cst_58 = arith.constant dense<0.000000e+00> : vector<16x512xf32>
    %80 = tpu.matmul %77, %79, %cst_58 {dimension_numbers = #tpu.dot_dimension_numbers<[1], [0], [0], [1], [0, 0, 1, 1], [], []>} : vector<16x72xf32>, vector<72x512xf32>, vector<16x512xf32> -> vector<16x512xf32>
    %81 = arith.addf %76, %80 : vector<16x512xf32>
    %82 = vector.extract_strided_slice %72 {offsets = [2, 0], sizes = [16, 72], strides = [1, 1]} : vector<18x72xf32> to vector<16x72xf32>
    %c2_59 = arith.constant 2 : index
    %c0_60 = arith.constant 0 : index
    %c0_61 = arith.constant 0 : index
    %83 = vector.load %arg2[%c2_59, %c0_60, %c0_61] : memref<3x72x512xf32, #tpu.memory_space<vmem>>, vector<1x72x512xf32>
    %84 = vector.shape_cast %83 : vector<1x72x512xf32> to vector<72x512xf32>
    %cst_62 = arith.constant dense<0.000000e+00> : vector<16x512xf32>
    %85 = tpu.matmul %82, %84, %cst_62 {dimension_numbers = #tpu.dot_dimension_numbers<[1], [0], [0], [1], [0, 0, 1, 1], [], []>} : vector<16x72xf32>, vector<72x512xf32>, vector<16x512xf32> -> vector<16x512xf32>
    %86 = arith.addf %81, %85 : vector<16x512xf32>
    %cst_63 = arith.constant dense<0.000000e+00> : vector<512xf32>
    %87 = vector.multi_reduction <add>, %86, %cst_63 [0] : vector<16x512xf32> to vector<512xf32>
    %88 = vector.shape_cast %87 : vector<512xf32> to vector<1x512xf32>
    %89 = arith.addf %66, %88 : vector<1x512xf32>
    %90 = arith.mulf %86, %86 : vector<16x512xf32>
    %cst_64 = arith.constant dense<0.000000e+00> : vector<512xf32>
    %91 = vector.multi_reduction <add>, %90, %cst_64 [0] : vector<16x512xf32> to vector<512xf32>
    %92 = vector.shape_cast %91 : vector<512xf32> to vector<1x512xf32>
    %93 = arith.addf %70, %92 : vector<1x512xf32>
    %c4 = arith.constant 4 : index
    %c0_65 = arith.constant 0 : index
    %c0_66 = arith.constant 0 : index
    %94 = vector.load %arg1[%c4, %c0_65, %c0_66] : memref<5x18x72xf32, #tpu.memory_space<vmem>>, vector<1x18x72xf32>
    %95 = vector.shape_cast %94 : vector<1x18x72xf32> to vector<18x72xf32>
    %96 = vector.extract_strided_slice %95 {offsets = [0, 0], sizes = [16, 72], strides = [1, 1]} : vector<18x72xf32> to vector<16x72xf32>
    %c0_67 = arith.constant 0 : index
    %c0_68 = arith.constant 0 : index
    %c0_69 = arith.constant 0 : index
    %97 = vector.load %arg2[%c0_67, %c0_68, %c0_69] : memref<3x72x512xf32, #tpu.memory_space<vmem>>, vector<1x72x512xf32>
    %98 = vector.shape_cast %97 : vector<1x72x512xf32> to vector<72x512xf32>
    %cst_70 = arith.constant dense<0.000000e+00> : vector<16x512xf32>
    %99 = tpu.matmul %96, %98, %cst_70 {dimension_numbers = #tpu.dot_dimension_numbers<[1], [0], [0], [1], [0, 0, 1, 1], [], []>} : vector<16x72xf32>, vector<72x512xf32>, vector<16x512xf32> -> vector<16x512xf32>
    %100 = vector.extract_strided_slice %95 {offsets = [1, 0], sizes = [16, 72], strides = [1, 1]} : vector<18x72xf32> to vector<16x72xf32>
    %c1_71 = arith.constant 1 : index
    %c0_72 = arith.constant 0 : index
    %c0_73 = arith.constant 0 : index
    %101 = vector.load %arg2[%c1_71, %c0_72, %c0_73] : memref<3x72x512xf32, #tpu.memory_space<vmem>>, vector<1x72x512xf32>
    %102 = vector.shape_cast %101 : vector<1x72x512xf32> to vector<72x512xf32>
    %cst_74 = arith.constant dense<0.000000e+00> : vector<16x512xf32>
    %103 = tpu.matmul %100, %102, %cst_74 {dimension_numbers = #tpu.dot_dimension_numbers<[1], [0], [0], [1], [0, 0, 1, 1], [], []>} : vector<16x72xf32>, vector<72x512xf32>, vector<16x512xf32> -> vector<16x512xf32>
    %104 = arith.addf %99, %103 : vector<16x512xf32>
    %105 = vector.extract_strided_slice %95 {offsets = [2, 0], sizes = [16, 72], strides = [1, 1]} : vector<18x72xf32> to vector<16x72xf32>
    %c2_75 = arith.constant 2 : index
    %c0_76 = arith.constant 0 : index
    %c0_77 = arith.constant 0 : index
    %106 = vector.load %arg2[%c2_75, %c0_76, %c0_77] : memref<3x72x512xf32, #tpu.memory_space<vmem>>, vector<1x72x512xf32>
    %107 = vector.shape_cast %106 : vector<1x72x512xf32> to vector<72x512xf32>
    %cst_78 = arith.constant dense<0.000000e+00> : vector<16x512xf32>
    %108 = tpu.matmul %105, %107, %cst_78 {dimension_numbers = #tpu.dot_dimension_numbers<[1], [0], [0], [1], [0, 0, 1, 1], [], []>} : vector<16x72xf32>, vector<72x512xf32>, vector<16x512xf32> -> vector<16x512xf32>
    %109 = arith.addf %104, %108 : vector<16x512xf32>
    %cst_79 = arith.constant dense<0.000000e+00> : vector<512xf32>
    %110 = vector.multi_reduction <add>, %109, %cst_79 [0] : vector<16x512xf32> to vector<512xf32>
    %111 = vector.shape_cast %110 : vector<512xf32> to vector<1x512xf32>
    %112 = arith.addf %89, %111 : vector<1x512xf32>
    %113 = arith.mulf %109, %109 : vector<16x512xf32>
    %cst_80 = arith.constant dense<0.000000e+00> : vector<512xf32>
    %114 = vector.multi_reduction <add>, %113, %cst_80 [0] : vector<16x512xf32> to vector<512xf32>
    %115 = vector.shape_cast %114 : vector<512xf32> to vector<1x512xf32>
    %116 = arith.addf %93, %115 : vector<1x512xf32>
    %117 = vector.shape_cast %112 : vector<1x512xf32> to vector<1x1x512xf32>
    %c0_81 = arith.constant 0 : index
    %c0_82 = arith.constant 0 : index
    %c0_83 = arith.constant 0 : index
    %118 = vector.load %arg3[%c0_81, %c0_82, %c0_83] : memref<1x1x512xf32, #tpu.memory_space<vmem>>, vector<1x1x512xf32>
    tpu.vector_store %arg3[%c0_81, %c0_82, %c0_83], %117 {strides = array<i32>} : memref<1x1x512xf32, #tpu.memory_space<vmem>>, vector<1x1x512xf32>,
    %119 = vector.shape_cast %116 : vector<1x512xf32> to vector<1x1x512xf32>
    %c0_84 = arith.constant 0 : index
    %c0_85 = arith.constant 0 : index
    %c0_86 = arith.constant 0 : index
    %120 = vector.load %arg4[%c0_84, %c0_85, %c0_86] : memref<1x1x512xf32, #tpu.memory_space<vmem>>, vector<1x1x512xf32>
    tpu.vector_store %arg4[%c0_84, %c0_85, %c0_86], %119 {strides = array<i32>} : memref<1x1x512xf32, #tpu.memory_space<vmem>>, vector<1x1x512xf32>,
    return
  }
  func.func @transform_0(%arg0: i32) -> (i32, i32, i32) {
    %c0_i32 = arith.constant 0 : i32
    %c0_i32_0 = arith.constant 0 : i32
    %c0_i32_1 = arith.constant 0 : i32
    return %arg0, %c0_i32, %c0_i32_0 : i32, i32, i32
  }
  func.func @transform_1(%arg0: i32) -> (i32, i32, i32) {
    %c0_i32 = arith.constant 0 : i32
    %c0_i32_0 = arith.constant 0 : i32
    %c0_i32_1 = arith.constant 0 : i32
    %c0_i32_2 = arith.constant 0 : i32
    return %c0_i32, %c0_i32_0, %c0_i32_1 : i32, i32, i32
  }
  func.func @transform_2(%arg0: i32) -> (i32, i32, i32) {
    %c0_i32 = arith.constant 0 : i32
    %c0_i32_0 = arith.constant 0 : i32
    %c0_i32_1 = arith.constant 0 : i32
    return %arg0, %c0_i32, %c0_i32_0 : i32, i32, i32
  }
  func.func @transform_3(%arg0: i32) -> (i32, i32, i32) {
    %c0_i32 = arith.constant 0 : i32
    %c0_i32_0 = arith.constant 0 : i32
    %c0_i32_1 = arith.constant 0 : i32
    return %arg0, %c0_i32, %c0_i32_0 : i32, i32, i32
  }
}

</mosaic_0001>

<llo_original>
// kernel: tpu_custom_call.1
$region0: #{tpu_custom_call.1}
  #allocation0 [shape = 'u32[]', space=smem, size = 0x4, offset = 0x4, fixed_abs, tag = 'smem constant byte address 0x4 - core index']
  #allocation1 [shape = 'u32[144,128]{1,0:T(1,128)}', space=vmem, size = 0x12000, scoped, tag = 'internal scratch']
  %s0 = inlined_call_operand.vmem [shape: f32[20,18,72], index: 0, kind: input, shape index: {}]
  %s1 = inlined_call_operand.vmem [shape: f32[3,72,512], index: 1, kind: input, shape index: {}]
  %s2 = inlined_call_operand.hbm [shape: f32[4,1,512], index: 2, kind: output, shape index: {0}]
  %s3 = inlined_call_operand.hbm [shape: f32[4,1,512], index: 3, kind: output, shape index: {1}]
  %4 = xla_tuple %s2, %s3
  %s5 = sld [smem:[#allocation0]]
  $region49: #{tpu_custom_call.1} parent=0
    _
  %s7 = ssub.s32 1, %s5
  %s8 = scalar_select 0, %s7, %s5
  $region1: #{tpu_custom_call.1} parent=0
    #allocation2 [shape = 'u8[4096]{0}', space=vmem, size = 0x1000, scoped, tag = 'output window, operand 0']
    #allocation3 [shape = 's32[2]{0}', space=sflag, size = 0x8, scoped, tag = 'scoped memory for tpu_custom_call.1']
    #allocation4 [shape = 'u8[4096]{0}', space=vmem, size = 0x1000, scoped, tag = 'output window, operand 1']
    #allocation5 [shape = 's32[2]{0}', space=sflag, size = 0x8, scoped, tag = 'scoped memory for tpu_custom_call.1']
    %9 = vsyncpa [#allocation3], 0
    %s10 = scalar_lea.sflag [#allocation3], 1
    %11 = vsyncpa %s10, 0
    %12 = vsyncpa [#allocation5], 0
    %s13 = scalar_lea.sflag [#allocation5], 1
    %14 = vsyncpa %s13, 0
    loop: start=0, step=1, limit=6
    $region2: #{tpu_custom_call.1} parent=1 // loop_pre_header
      _
    $region3: #{tpu_custom_call.1} parent=1 // loop_header
      %s16 = sphi 0, %s20
      %p17 = scmp.ge.s32.totalorder %s16, 6
      %s26 = sphi 0, %s28
      %s29 = sphi 0, %s26
      %s30 = sphi 0, %s29
      %s46 = sphi 0, %s30
      %s50 = sphi 0, %s50
      %s52 = sphi 0, %s50
      %s53 = sphi 0, %s52
      %s67 = sphi 0, %s53
      %s73 = sphi 0, %s75
      %s76 = sphi 0, %s73
      %s77 = sphi 0, %s76
      %s93 = sphi 0, %s77
      %s99 = sphi 0, %s101
      %s102 = sphi 0, %s99
      %s103 = sphi 0, %s102
      %s119 = sphi 0, %s103
    $region4: #{tpu_custom_call.1} parent=1 // loop_header_branch
      %19 = sbr.rel (%p17) target = $region8
    $region5: #{tpu_custom_call.1} parent=1 // loop_body
      %s21 = ssub.s32 %s16, 1
      %s22 = ssub.s32 %s16, 2
      %s23 = sadd.s32 %s16, 1
      %s24 = ssub.s32 %s16, %s23
      %p25 = scmp.eq.s32.totalorder %s24, 0
      %s27 = sadd.s32 %s26, 1
      %s28 = scalar_select %p25, %s26, %s27
      %p31 = pneg %p25
      %p32 = scmp.eq.s32.totalorder %s16, 3
      %p33 = por %p31, %p32
      %p34 = scmp.ne.s32.totalorder %s26, %s29
      %p35 = scmp.eq.s32.totalorder %s16, 0
      %p36 = por %p34, %p35
      %p37 = scmp.ne.s32.totalorder %s26, %s29
      %p38 = scmp.eq.s32.totalorder %s21, 3
      %p39 = por %p37, %p38
      %p40 = scmp.ne.s32.totalorder %s29, %s30
      %p41 = scmp.eq.s32.totalorder %s21, 0
      %p42 = por %p40, %p41
      %p43 = scmp.ne.s32.totalorder %s29, %s30
      %p44 = scmp.eq.s32.totalorder %s22, 3
      %p45 = por %p43, %p44
      %p47 = scmp.ne.s32.totalorder %s30, %s46
      %p48 = scmp.eq.s32.totalorder %s22, 0
      %p49 = por %p47, %p48
      %s51 = sadd.s32 %s50, 1
      %p54 = scmp.eq.s32.totalorder %s16, 3
      %p55 = scmp.ne.s32.totalorder %s50, %s52
      %p56 = scmp.eq.s32.totalorder %s16, 0
      %p57 = por %p55, %p56
      %p58 = scmp.ne.s32.totalorder %s50, %s52
      %p59 = scmp.eq.s32.totalorder %s21, 3
      %p60 = por %p58, %p59
      %p61 = scmp.ne.s32.totalorder %s52, %s53
      %p62 = scmp.eq.s32.totalorder %s21, 0
      %p63 = por %p61, %p62
      %p64 = scmp.ne.s32.totalorder %s52, %s53
      %p65 = scmp.eq.s32.totalorder %s22, 3
      %p66 = por %p64, %p65
      %p68 = scmp.ne.s32.totalorder %s53, %s67
      %p69 = scmp.eq.s32.totalorder %s22, 0
      %p70 = por %p68, %p69
      %s71 = ssub.s32 %s16, %s23
      %p72 = scmp.eq.s32.totalorder %s71, 0
      %s74 = sadd.s32 %s73, 1
      %s75 = scalar_select %p72, %s73, %s74
      %p78 = pneg %p72
      %p79 = scmp.eq.s32.totalorder %s16, 3
      %p80 = por %p78, %p79
      %p81 = scmp.ne.s32.totalorder %s73, %s76
      %p82 = scmp.eq.s32.totalorder %s16, 0
      %p83 = por %p81, %p82
      %p84 = scmp.ne.s32.totalorder %s73, %s76
      %p85 = scmp.eq.s32.totalorder %s21, 3
      %p86 = por %p84, %p85
      %p87 = scmp.ne.s32.totalorder %s76, %s77
      %p88 = scmp.eq.s32.totalorder %s21, 0
      %p89 = por %p87, %p88
      %p90 = scmp.ne.s32.totalorder %s76, %s77
      %p91 = scmp.eq.s32.totalorder %s22, 3
      %p92 = por %p90, %p91
      %p94 = scmp.ne.s32.totalorder %s77, %s93
      %p95 = scmp.eq.s32.totalorder %s22, 0
      %p96 = por %p94, %p95
      %s97 = ssub.s32 %s16, %s23
      %p98 = scmp.eq.s32.totalorder %s97, 0
      %s100 = sadd.s32 %s99, 1
      %s101 = scalar_select %p98, %s99, %s100
      %p104 = pneg %p98
      %p105 = scmp.eq.s32.totalorder %s16, 3
      %p106 = por %p104, %p105
      %p107 = scmp.ne.s32.totalorder %s99, %s102
      %p108 = scmp.eq.s32.totalorder %s16, 0
      %p109 = por %p107, %p108
      %p110 = scmp.ne.s32.totalorder %s99, %s102
      %p111 = scmp.eq.s32.totalorder %s21, 3
      %p112 = por %p110, %p111
      %p113 = scmp.ne.s32.totalorder %s102, %s103
      %p114 = scmp.eq.s32.totalorder %s21, 0
      %p115 = por %p113, %p114
      %p116 = scmp.ne.s32.totalorder %s102, %s103
      %p117 = scmp.eq.s32.totalorder %s22, 3
      %p118 = por %p116, %p117
      %p120 = scmp.ne.s32.totalorder %s103, %s119
      %p121 = scmp.eq.s32.totalorder %s22, 0
      %p122 = por %p120, %p121
      %p123 = scmp.le.s32.totalorder 1, %s16
      %p124 = scmp.lt.s32.totalorder %s16, 5
      %p125 = pnand %p123, %p124
      %p126 = pneg %p125
      // Predicated region
      $region9: #{tpu_custom_call.1} parent=5 // pred_check
        _
      $region10: #{tpu_custom_call.1} parent=5 // pred_check_branch
        %128 = sbr.rel (%p125) target = $region12
      $region11: #{tpu_custom_call.1} parent=5 // pred_region
        %s129 = ssub.s32 %s16, 1
        // Predicated region
        $region13: #{tpu_custom_call.1} parent=11 // pred_check
          %p130 = pneg %p63
        $region14: #{tpu_custom_call.1} parent=11 // pred_check_branch
          %132 = sbr.rel (%p130) target = $region16
        $region15: #{tpu_custom_call.1} parent=11 // pred_region
          _
        $region16: #{tpu_custom_call.1} parent=11 // pred_fallthru
          _
      $region12: #{tpu_custom_call.1} parent=5 // pred_fallthru
        _
      %p133 = scmp.lt.s32.totalorder %s16, 4
      // Predicated region
      $region17: #{tpu_custom_call.1} parent=5 // pred_check
        %p134 = pneg %p133
      $region18: #{tpu_custom_call.1} parent=5 // pred_check_branch
        %136 = sbr.rel (%p134) target = $region20
      $region19: #{tpu_custom_call.1} parent=5 // pred_region
        // Predicated region
        $region21: #{tpu_custom_call.1} parent=19 // pred_check
          %p137 = pneg %p36
        $region22: #{tpu_custom_call.1} parent=19 // pred_check_branch
          %139 = sbr.rel (%p137) target = $region24
        $region23: #{tpu_custom_call.1} parent=19 // pred_region
          %s140 = smul.u32 5, %s16
          %p141 = scmp.lt.s32.totalorder %s140, 19
          %s142 = scalar_select %p141, %s140, 19
          %s143 = smul.addr %s142, 3
          %s144 = smul.addr %s143, 8
          %s145 = scalar_lea.vmem %s0, %s144
          %s146 = smul.u32 5, %s16
        $region24: #{tpu_custom_call.1} parent=19 // pred_fallthru
          _
      $region20: #{tpu_custom_call.1} parent=5 // pred_fallthru
        _
      %p147 = scmp.le.s32.totalorder 1, %s16
      %p148 = scmp.lt.s32.totalorder %s16, 5
      %p149 = pnand %p147, %p148
      %p150 = pneg %p149
      // Predicated region
      $region25: #{tpu_custom_call.1} parent=5 // pred_check
        _
      $region26: #{tpu_custom_call.1} parent=5 // pred_check_branch
        %152 = sbr.rel (%p149) target = $region28
      $region27: #{tpu_custom_call.1} parent=5 // pred_region
        %s153 = ssub.s32 %s16, 1
        %s154 = smul.u32 5, %s21
        %p155 = scmp.lt.s32.totalorder %s154, 19
        %s156 = scalar_select %p155, %s154, 19
        %s157 = smul.addr %s156, 3
        %s158 = smul.addr %s157, 8
        %s159 = scalar_lea.vmem %s0, %s158
        %p160 = pneg %p42
        %p161 = pneg %p39
        %p162 = pneg %p63
        %p163 = pneg %p60
        %p164 = pneg %p89
        %p165 = pneg %p86
        %s166 = sand.u32 %s76, 1
        %s167 = scalar_lea.sflag [#allocation3], %s166
        %s168 = sand.u32 %s76, 1
        %s169 = smul.addr %s168, 4
        %s170 = scalar_lea.vmem [#allocation2], %s169
        %p171 = pneg %p115
        %p172 = pneg %p112
        %s173 = sand.u32 %s102, 1
        %s174 = scalar_lea.sflag [#allocation5], %s173
        %s175 = sand.u32 %s102, 1
        %s176 = smul.addr %s175, 4
        %s177 = scalar_lea.vmem [#allocation4], %s176
        %s178 = smul.u32 5, %s21
        %p179 = scmp.lt.s32.totalorder %s178, 19
        %s180 = scalar_select %p179, %s178, 19
        %s181 = smul.addr %s180, 3
        %s182 = smul.addr %s181, 8
        %s183 = scalar_lea.vmem %s0, %s182
        %s184 = smul.u32 5, %s21
        %v185 = vld [vmem:[%s183] sm:$0xff]
        %v186 = vld [vmem:[%s183 + $0x8] sm:$0xff]
        %v187 = vld [vmem:[%s183 + $0x10] sm:$0x3]
        %v188 = vld [vmem:[%s1] sm:$0xff]
        %v189 = vld [vmem:[%s1 + $0x8] sm:$0xff]
        %v190 = vld [vmem:[%s1 + $0x10] sm:$0xff]
        %v191 = vld [vmem:[%s1 + $0x18] sm:$0xff]
        %v192 = vld [vmem:[%s1 + $0x20] sm:$0xff]
        %v193 = vld [vmem:[%s1 + $0x28] sm:$0xff]
        %v194 = vld [vmem:[%s1 + $0x30] sm:$0xff]
        %v195 = vld [vmem:[%s1 + $0x38] sm:$0xff]
        %v196 = vld [vmem:[%s1 + $0x40] sm:$0xff]
        %v197 = vld [vmem:[%s1 + $0x48] sm:$0xff]
        %v198 = vld [vmem:[%s1 + $0x50] sm:$0xff]
        %v199 = vld [vmem:[%s1 + $0x58] sm:$0xff]
        %v200 = vld [vmem:[%s1 + $0x60] sm:$0xff]
        %v201 = vld [vmem:[%s1 + $0x68] sm:$0xff]
        %v202 = vld [vmem:[%s1 + $0x70] sm:$0xff]
        %v203 = vld [vmem:[%s1 + $0x78] sm:$0xff]
        %v204 = vld [vmem:[%s1 + $0x80] sm:$0xff]
        %v205 = vld [vmem:[%s1 + $0x88] sm:$0xff]
        %v206 = vld [vmem:[%s1 + $0x90] sm:$0xff]
        %v207 = vld [vmem:[%s1 + $0x98] sm:$0xff]
        %v208 = vld [vmem:[%s1 + $0xa0] sm:$0xff]
        %v209 = vld [vmem:[%s1 + $0xa8] sm:$0xff]
        %v210 = vld [vmem:[%s1 + $0xb0] sm:$0xff]
        %v211 = vld [vmem:[%s1 + $0xb8] sm:$0xff]
        %v212 = vld [vmem:[%s1 + $0xc0] sm:$0xff]
        %v213 = vld [vmem:[%s1 + $0xc8] sm:$0xff]
        %v214 = vld [vmem:[%s1 + $0xd0] sm:$0xff]
        %v215 = vld [vmem:[%s1 + $0xd8] sm:$0xff]
        %v216 = vld [vmem:[%s1 + $0xe0] sm:$0xff]
        %v217 = vld [vmem:[%s1 + $0xe8] sm:$0xff]
        %v218 = vld [vmem:[%s1 + $0xf0] sm:$0xff]
        %v219 = vld [vmem:[%s1 + $0xf8] sm:$0xff]
        %v220 = vld [vmem:[%s1 + $0x100] sm:$0xff]
        %v221 = vld [vmem:[%s1 + $0x108] sm:$0xff]
        %v222 = vld [vmem:[%s1 + $0x110] sm:$0xff]
        %v223 = vld [vmem:[%s1 + $0x118] sm:$0xff]
        %s224 = scalar_lea.vmem %s1, 288
        %v225 = vld [vmem:[%s224] sm:$0xff]
        %v226 = vld [vmem:[%s224 + $0x8] sm:$0xff]
        %v227 = vld [vmem:[%s224 + $0x10] sm:$0xff]
        %v228 = vld [vmem:[%s224 + $0x18] sm:$0xff]
        %v229 = vld [vmem:[%s224 + $0x20] sm:$0xff]
        %v230 = vld [vmem:[%s224 + $0x28] sm:$0xff]
        %v231 = vld [vmem:[%s224 + $0x30] sm:$0xff]
        %v232 = vld [vmem:[%s224 + $0x38] sm:$0xff]
        %v233 = vld [vmem:[%s224 + $0x40] sm:$0xff]
        %v234 = vld [vmem:[%s224 + $0x48] sm:$0xff]
        %v235 = vld [vmem:[%s224 + $0x50] sm:$0xff]
        %v236 = vld [vmem:[%s224 + $0x58] sm:$0xff]
        %v237 = vld [vmem:[%s224 + $0x60] sm:$0xff]
        %v238 = vld [vmem:[%s224 + $0x68] sm:$0xff]
        %v239 = vld [vmem:[%s224 + $0x70] sm:$0xff]
        %v240 = vld [vmem:[%s224 + $0x78] sm:$0xff]
        %v241 = vld [vmem:[%s224 + $0x80] sm:$0xff]
        %v242 = vld [vmem:[%s224 + $0x88] sm:$0xff]
        %v243 = vld [vmem:[%s224 + $0x90] sm:$0xff]
        %v244 = vld [vmem:[%s224 + $0x98] sm:$0xff]
        %v245 = vld [vmem:[%s224 + $0xa0] sm:$0xff]
        %v246 = vld [vmem:[%s224 + $0xa8] sm:$0xff]
        %v247 = vld [vmem:[%s224 + $0xb0] sm:$0xff]
        %v248 = vld [vmem:[%s224 + $0xb8] sm:$0xff]
        %v249 = vld [vmem:[%s224 + $0xc0] sm:$0xff]
        %v250 = vld [vmem:[%s224 + $0xc8] sm:$0xff]
        %v251 = vld [vmem:[%s224 + $0xd0] sm:$0xff]
        %v252 = vld [vmem:[%s224 + $0xd8] sm:$0xff]
        %v253 = vld [vmem:[%s224 + $0xe0] sm:$0xff]
        %v254 = vld [vmem:[%s224 + $0xe8] sm:$0xff]
        %v255 = vld [vmem:[%s224 + $0xf0] sm:$0xff]
        %v256 = vld [vmem:[%s224 + $0xf8] sm:$0xff]
        %v257 = vld [vmem:[%s224 + $0x100] sm:$0xff]
        %v258 = vld [vmem:[%s224 + $0x108] sm:$0xff]
        %v259 = vld [vmem:[%s224 + $0x110] sm:$0xff]
        %v260 = vld [vmem:[%s224 + $0x118] sm:$0xff]
        %vm264 = vcmask 1046528
        %v265 = vrot.slane %v185, 1
        %v266 = vrot.slane %v186, 1
        %v267 = vsel %vm264, %v265, %v266
        %v268 = vrot.slane %v187, 1
        %v269 = vsel %vm264, %v266, %v268
        %vm270 = vcmask 588800
        %v271 = vsel %vm270, %v267, 0
        %v273 = vsel %vm270, %v269, 0
        %275 = vmatprep.subr.mxu0 %v226
        %276 = vmatpush1.msra.mxu0 %v225
        %277 = vmatprep.subr.mxu0 %v230
        %278 = vmatpush1.msra.mxu0 %v229
        %279 = vmatprep.subr.mxu0 %v234
        %280 = vmatpush1.msra.mxu0 %v233
        %281 = vmatprep.subr.mxu0 %v238
        %282 = vmatpush1.msra.mxu0 %v237
        %283 = vmatprep.subr.mxu0 %v242
        %284 = vmatpush1.msra.mxu0 %v241
        %285 = vmatprep.subr.mxu0 %v246
        %286 = vmatpush1.msra.mxu0 %v245
        %287 = vmatprep.subr.mxu0 %v250
        %288 = vmatpush1.msra.mxu0 %v249
        %289 = vmatprep.subr.mxu0 %v254
        %290 = vmatpush1.msra.mxu0 %v253
        %291 = vmatprep.subr.mxu0 %v258
        %292 = vmatpush1.msra.mxu0 %v257
        %293 = vmatprep.subr.mxu0 0.0
        %294 = vmatpush1.msra.mxu0 0.0
        %295 = vmatprep.subr.mxu0 0.0
        %296 = vmatpush1.msra.mxu0 0.0
        %297 = vmatprep.subr.mxu0 0.0
        %298 = vmatpush1.msra.mxu0 0.0
        %299 = vmatprep.subr.mxu0 0.0
        %300 = vmatpush1.msra.mxu0 0.0
        %301 = vmatprep.subr.mxu0 0.0
        %302 = vmatpush1.msra.mxu0 0.0
        %303 = vmatprep.subr.mxu0 0.0
        %304 = vmatpush1.msra.mxu0 0.0
        %305 = vmatprep.subr.mxu0 0.0
        %306 = vmatpush1.msra.mxu0 0.0
        %307 = vmatprep.subr.mxu0 0.0
        %308 = vmatpush1.msra.mxu0 0.0
        %309 = vmatprep.subr.mxu0 0.0
        %310 = vmatpush1.msra.mxu0 0.0
        %311 = vmatprep.subr.mxu0 0.0
        %312 = vmatpush1.msra.mxu0 0.0
        %313 = vmatprep.subr.mxu0 0.0
        %314 = vmatpush1.msra.mxu0 0.0
        %315 = vmatprep.subr.mxu0 0.0
        %316 = vmatpush1.msra.mxu0 0.0
        %317 = vmatprep.subr.mxu0 0.0
        %318 = vmatpush1.msra.mxu0 0.0
        %319 = vmatprep.subr.mxu0 0.0
        %320 = vmatpush1.msra.mxu0 0.0
        %321 = vmatprep.subr.mxu0 0.0
        %322 = vmatpush1.msra.mxu0 0.0
        %323 = vmatprep.subr.mxu0 0.0
        %324 = vmatpush1.msra.mxu0 0.0
        %325 = vmatprep.subr.mxu0 0.0
        %326 = vmatpush1.msra.mxu0 0.0
        %327 = vmatprep.subr.mxu0 0.0
        %328 = vmatpush1.msra.mxu0 0.0
        %329 = vmatprep.subr.mxu0 0.0
        %330 = vmatpush1.msra.mxu0 0.0
        %331 = vmatprep.subr.mxu0 0.0
        %332 = vmatpush1.msra.mxu0 0.0
        %333 = vmatprep.subr.mxu0 0.0
        %334 = vmatpush1.msra.mxu0 0.0
        %335 = vmatprep.subr.mxu0 0.0
        %336 = vmatpush1.msra.mxu0 0.0
        %337 = vmatprep.subr.mxu0 0.0
        %338 = vmatpush1.msra.mxu0 0.0
        %339 = vmatprep.mubr.f32.mxu0 0.0
        %340 = vmatmul.mubr.f32.gmra.mrb[0].mxu0 %v271
        %v341 = vpop.f32.mrb[0].mxu0
        %v342 = vadd.f32 0.0, %v341
        %v343 = vpop.f32.mrb[0].mxu0
        %v344 = vadd.f32 0.0, %v343
        %345 = vmatprep.mubr.f32.mxu0 0.0
        %346 = vmatmul.mubr.f32.gmra.mrb[0].mxu0 %v273
        %v347 = vpop.f32.mrb[0].mxu0
        %v348 = vadd.f32 0.0, %v347
        %v349 = vpop.f32.mrb[0].mxu0
        %v350 = vadd.f32 0.0, %v349
        %351 = vdwg.mxu0
        %352 = vmatprep.subr.mxu0 %v228
        %353 = vmatpush1.msra.mxu0 %v227
        %354 = vmatprep.subr.mxu0 %v232
        %355 = vmatpush1.msra.mxu0 %v231
        %356 = vmatprep.subr.mxu0 %v236
        %357 = vmatpush1.msra.mxu0 %v235
        %358 = vmatprep.subr.mxu0 %v240
        %359 = vmatpush1.msra.mxu0 %v239
        %360 = vmatprep.subr.mxu0 %v244
        %361 = vmatpush1.msra.mxu0 %v243
        %362 = vmatprep.subr.mxu0 %v248
        %363 = vmatpush1.msra.mxu0 %v247
        %364 = vmatprep.subr.mxu0 %v252
        %365 = vmatpush1.msra.mxu0 %v251
        %366 = vmatprep.subr.mxu0 %v256
        %367 = vmatpush1.msra.mxu0 %v255
        %368 = vmatprep.subr.mxu0 %v260
        %369 = vmatpush1.msra.mxu0 %v259
        %370 = vmatprep.subr.mxu0 0.0
        %371 = vmatpush1.msra.mxu0 0.0
        %372 = vmatprep.subr.mxu0 0.0
        %373 = vmatpush1.msra.mxu0 0.0
        %374 = vmatprep.subr.mxu0 0.0
        %375 = vmatpush1.msra.mxu0 0.0
        %376 = vmatprep.subr.mxu0 0.0
        %377 = vmatpush1.msra.mxu0 0.0
        %378 = vmatprep.subr.mxu0 0.0
        %379 = vmatpush1.msra.mxu0 0.0
        %380 = vmatprep.subr.mxu0 0.0
        %381 = vmatpush1.msra.mxu0 0.0
        %382 = vmatprep.subr.mxu0 0.0
        %383 = vmatpush1.msra.mxu0 0.0
        %384 = vmatprep.subr.mxu0 0.0
        %385 = vmatpush1.msra.mxu0 0.0
        %386 = vmatprep.subr.mxu0 0.0
        %387 = vmatpush1.msra.mxu0 0.0
        %388 = vmatprep.subr.mxu0 0.0
        %389 = vmatpush1.msra.mxu0 0.0
        %390 = vmatprep.subr.mxu0 0.0
        %391 = vmatpush1.msra.mxu0 0.0
        %392 = vmatprep.subr.mxu0 0.0
        %393 = vmatpush1.msra.mxu0 0.0
        %394 = vmatprep.subr.mxu0 0.0
        %395 = vmatpush1.msra.mxu0 0.0
        %396 = vmatprep.subr.mxu0 0.0
        %397 = vmatpush1.msra.mxu0 0.0
        %398 = vmatprep.subr.mxu0 0.0
        %399 = vmatpush1.msra.mxu0 0.0
        %400 = vmatprep.subr.mxu0 0.0
        %401 = vmatpush1.msra.mxu0 0.0
        %402 = vmatprep.subr.mxu0 0.0
        %403 = vmatpush1.msra.mxu0 0.0
        %404 = vmatprep.subr.mxu0 0.0
        %405 = vmatpush1.msra.mxu0 0.0
        %406 = vmatprep.subr.mxu0 0.0
        %407 = vmatpush1.msra.mxu0 0.0
        %408 = vmatprep.subr.mxu0 0.0
        %409 = vmatpush1.msra.mxu0 0.0
        %410 = vmatprep.subr.mxu0 0.0
        %411 = vmatpush1.msra.mxu0 0.0
        %412 = vmatprep.subr.mxu0 0.0
        %413 = vmatpush1.msra.mxu0 0.0
        %414 = vmatprep.subr.mxu0 0.0
        %415 = vmatpush1.msra.mxu0 0.0
        %416 = vmatprep.mubr.f32.mxu0 0.0
        %417 = vmatmul.mubr.f32.gmra.mrb[0].mxu0 %v271
        %v418 = vpop.f32.mrb[0].mxu0
        %v419 = vadd.f32 0.0, %v418
        %v420 = vpop.f32.mrb[0].mxu0
        %v421 = vadd.f32 0.0, %v420
        %422 = vmatprep.mubr.f32.mxu0 0.0
        %423 = vmatmul.mubr.f32.gmra.mrb[0].mxu0 %v273
        %v424 = vpop.f32.mrb[0].mxu0
        %v425 = vadd.f32 0.0, %v424
        %v426 = vpop.f32.mrb[0].mxu0
        %v427 = vadd.f32 0.0, %v426
        %428 = vdwg.mxu0
        %v429 = vsel %vm270, %v185, 0
        %v431 = vsel %vm270, %v186, 0
        %433 = vmatprep.subr.mxu0 %v189
        %434 = vmatpush1.msra.mxu0 %v188
        %435 = vmatprep.subr.mxu0 %v193
        %436 = vmatpush1.msra.mxu0 %v192
        %437 = vmatprep.subr.mxu0 %v197
        %438 = vmatpush1.msra.mxu0 %v196
        %439 = vmatprep.subr.mxu0 %v201
        %440 = vmatpush1.msra.mxu0 %v200
        %441 = vmatprep.subr.mxu0 %v205
        %442 = vmatpush1.msra.mxu0 %v204
        %443 = vmatprep.subr.mxu0 %v209
        %444 = vmatpush1.msra.mxu0 %v208
        %445 = vmatprep.subr.mxu0 %v213
        %446 = vmatpush1.msra.mxu0 %v212
        %447 = vmatprep.subr.mxu0 %v217
        %448 = vmatpush1.msra.mxu0 %v216
        %449 = vmatprep.subr.mxu0 %v221
        %450 = vmatpush1.msra.mxu0 %v220
        %451 = vmatprep.subr.mxu0 0.0
        %452 = vmatpush1.msra.mxu0 0.0
        %453 = vmatprep.subr.mxu0 0.0
        %454 = vmatpush1.msra.mxu0 0.0
        %455 = vmatprep.subr.mxu0 0.0
        %456 = vmatpush1.msra.mxu0 0.0
        %457 = vmatprep.subr.mxu0 0.0
        %458 = vmatpush1.msra.mxu0 0.0
        %459 = vmatprep.subr.mxu0 0.0
        %460 = vmatpush1.msra.mxu0 0.0
        %461 = vmatprep.subr.mxu0 0.0
        %462 = vmatpush1.msra.mxu0 0.0
        %463 = vmatprep.subr.mxu0 0.0
        %464 = vmatpush1.msra.mxu0 0.0
        %465 = vmatprep.subr.mxu0 0.0
        %466 = vmatpush1.msra.mxu0 0.0
        %467 = vmatprep.subr.mxu0 0.0
        %468 = vmatpush1.msra.mxu0 0.0
        %469 = vmatprep.subr.mxu0 0.0
        %470 = vmatpush1.msra.mxu0 0.0
        %471 = vmatprep.subr.mxu0 0.0
        %472 = vmatpush1.msra.mxu0 0.0
        %473 = vmatprep.subr.mxu0 0.0
        %474 = vmatpush1.msra.mxu0 0.0
        %475 = vmatprep.subr.mxu0 0.0
        %476 = vmatpush1.msra.mxu0 0.0
        %477 = vmatprep.subr.mxu0 0.0
        %478 = vmatpush1.msra.mxu0 0.0
        %479 = vmatprep.subr.mxu0 0.0
        %480 = vmatpush1.msra.mxu0 0.0
        %481 = vmatprep.subr.mxu0 0.0
        %482 = vmatpush1.msra.mxu0 0.0
        %483 = vmatprep.subr.mxu0 0.0
        %484 = vmatpush1.msra.mxu0 0.0
        %485 = vmatprep.subr.mxu0 0.0
        %486 = vmatpush1.msra.mxu0 0.0
        %487 = vmatprep.subr.mxu0 0.0
        %488 = vmatpush1.msra.mxu0 0.0
        %489 = vmatprep.subr.mxu0 0.0
        %490 = vmatpush1.msra.mxu0 0.0
        %491 = vmatprep.subr.mxu0 0.0
        %492 = vmatpush1.msra.mxu0 0.0
        %493 = vmatprep.subr.mxu0 0.0
        %494 = vmatpush1.msra.mxu0 0.0
        %495 = vmatprep.subr.mxu0 0.0
        %496 = vmatpush1.msra.mxu0 0.0
        %497 = vmatprep.mubr.f32.mxu0 0.0
        %498 = vmatmul.mubr.f32.gmra.mrb[0].mxu0 %v429
        %v499 = vpop.f32.mrb[0].mxu0
        %v500 = vadd.f32 %v342, %v499
        %v501 = vpop.f32.mrb[0].mxu0
        %v502 = vadd.f32 %v344, %v501
        %503 = vmatprep.mubr.f32.mxu0 0.0
        %504 = vmatmul.mubr.f32.gmra.mrb[0].mxu0 %v431
        %v505 = vpop.f32.mrb[0].mxu0
        %v506 = vadd.f32 %v348, %v505
        %v507 = vpop.f32.mrb[0].mxu0
        %v508 = vadd.f32 %v350, %v507
        %509 = vdwg.mxu0
        %510 = vmatprep.subr.mxu0 %v191
        %511 = vmatpush1.msra.mxu0 %v190
        %512 = vmatprep.subr.mxu0 %v195
        %513 = vmatpush1.msra.mxu0 %v194
        %514 = vmatprep.subr.mxu0 %v199
        %515 = vmatpush1.msra.mxu0 %v198
        %516 = vmatprep.subr.mxu0 %v203
        %517 = vmatpush1.msra.mxu0 %v202
        %518 = vmatprep.subr.mxu0 %v207
        %519 = vmatpush1.msra.mxu0 %v206
        %520 = vmatprep.subr.mxu0 %v211
        %521 = vmatpush1.msra.mxu0 %v210
        %522 = vmatprep.subr.mxu0 %v215
        %523 = vmatpush1.msra.mxu0 %v214
        %524 = vmatprep.subr.mxu0 %v219
        %525 = vmatpush1.msra.mxu0 %v218
        %526 = vmatprep.subr.mxu0 %v223
        %527 = vmatpush1.msra.mxu0 %v222
        %528 = vmatprep.subr.mxu0 0.0
        %529 = vmatpush1.msra.mxu0 0.0
        %530 = vmatprep.subr.mxu0 0.0
        %531 = vmatpush1.msra.mxu0 0.0
        %532 = vmatprep.subr.mxu0 0.0
        %533 = vmatpush1.msra.mxu0 0.0
        %534 = vmatprep.subr.mxu0 0.0
        %535 = vmatpush1.msra.mxu0 0.0
        %536 = vmatprep.subr.mxu0 0.0
        %537 = vmatpush1.msra.mxu0 0.0
        %538 = vmatprep.subr.mxu0 0.0
        %539 = vmatpush1.msra.mxu0 0.0
        %540 = vmatprep.subr.mxu0 0.0
        %541 = vmatpush1.msra.mxu0 0.0
        %542 = vmatprep.subr.mxu0 0.0
        %543 = vmatpush1.msra.mxu0 0.0
        %544 = vmatprep.subr.mxu0 0.0
        %545 = vmatpush1.msra.mxu0 0.0
        %546 = vmatprep.subr.mxu0 0.0
        %547 = vmatpush1.msra.mxu0 0.0
        %548 = vmatprep.subr.mxu0 0.0
        %549 = vmatpush1.msra.mxu0 0.0
        %550 = vmatprep.subr.mxu0 0.0
        %551 = vmatpush1.msra.mxu0 0.0
        %552 = vmatprep.subr.mxu0 0.0
        %553 = vmatpush1.msra.mxu0 0.0
        %554 = vmatprep.subr.mxu0 0.0
        %555 = vmatpush1.msra.mxu0 0.0
        %556 = vmatprep.subr.mxu0 0.0
        %557 = vmatpush1.msra.mxu0 0.0
        %558 = vmatprep.subr.mxu0 0.0
        %559 = vmatpush1.msra.mxu0 0.0
        %560 = vmatprep.subr.mxu0 0.0
        %561 = vmatpush1.msra.mxu0 0.0
        %562 = vmatprep.subr.mxu0 0.0
        %563 = vmatpush1.msra.mxu0 0.0
        %564 = vmatprep.subr.mxu0 0.0
        %565 = vmatpush1.msra.mxu0 0.0
        %566 = vmatprep.subr.mxu0 0.0
        %567 = vmatpush1.msra.mxu0 0.0
        %568 = vmatprep.subr.mxu0 0.0
        %569 = vmatpush1.msra.mxu0 0.0
        %570 = vmatprep.subr.mxu0 0.0
        %571 = vmatpush1.msra.mxu0 0.0
        %572 = vmatprep.subr.mxu0 0.0
        %573 = vmatpush1.msra.mxu0 0.0
        %574 = vmatprep.mubr.f32.mxu0 0.0
        %575 = vmatmul.mubr.f32.gmra.mrb[0].mxu0 %v429
        %v576 = vpop.f32.mrb[0].mxu0
        %v577 = vadd.f32 %v419, %v576
        %v578 = vpop.f32.mrb[0].mxu0
        %v579 = vadd.f32 %v421, %v578
        %580 = vmatprep.mubr.f32.mxu0 0.0
        %581 = vmatmul.mubr.f32.gmra.mrb[0].mxu0 %v431
        %v582 = vpop.f32.mrb[0].mxu0
        %v583 = vadd.f32 %v425, %v582
        %v584 = vpop.f32.mrb[0].mxu0
        %v585 = vadd.f32 %v427, %v584
        %586 = vdwg.mxu0
        %s587 = scalar_lea.vmem %s1, 576
        %v588 = vld [vmem:[%s587] sm:$0xff]
        %v589 = vld [vmem:[%s587 + $0x8] sm:$0xff]
        %v590 = vld [vmem:[%s587 + $0x10] sm:$0xff]
        %v591 = vld [vmem:[%s587 + $0x18] sm:$0xff]
        %v592 = vld [vmem:[%s587 + $0x20] sm:$0xff]
        %v593 = vld [vmem:[%s587 + $0x28] sm:$0xff]
        %v594 = vld [vmem:[%s587 + $0x30] sm:$0xff]
        %v595 = vld [vmem:[%s587 + $0x38] sm:$0xff]
        %v596 = vld [vmem:[%s587 + $0x40] sm:$0xff]
        %v597 = vld [vmem:[%s587 + $0x48] sm:$0xff]
        %v598 = vld [vmem:[%s587 + $0x50] sm:$0xff]
        %v599 = vld [vmem:[%s587 + $0x58] sm:$0xff]
        %v600 = vld [vmem:[%s587 + $0x60] sm:$0xff]
        %v601 = vld [vmem:[%s587 + $0x68] sm:$0xff]
        %v602 = vld [vmem:[%s587 + $0x70] sm:$0xff]
        %v603 = vld [vmem:[%s587 + $0x78] sm:$0xff]
        %v604 = vld [vmem:[%s587 + $0x80] sm:$0xff]
        %v605 = vld [vmem:[%s587 + $0x88] sm:$0xff]
        %v606 = vld [vmem:[%s587 + $0x90] sm:$0xff]
        %v607 = vld [vmem:[%s587 + $0x98] sm:$0xff]
        %v608 = vld [vmem:[%s587 + $0xa0] sm:$0xff]
        %v609 = vld [vmem:[%s587 + $0xa8] sm:$0xff]
        %v610 = vld [vmem:[%s587 + $0xb0] sm:$0xff]
        %v611 = vld [vmem:[%s587 + $0xb8] sm:$0xff]
        %v612 = vld [vmem:[%s587 + $0xc0] sm:$0xff]
        %v613 = vld [vmem:[%s587 + $0xc8] sm:$0xff]
        %v614 = vld [vmem:[%s587 + $0xd0] sm:$0xff]
        %v615 = vld [vmem:[%s587 + $0xd8] sm:$0xff]
        %v616 = vld [vmem:[%s587 + $0xe0] sm:$0xff]
        %v617 = vld [vmem:[%s587 + $0xe8] sm:$0xff]
        %v618 = vld [vmem:[%s587 + $0xf0] sm:$0xff]
        %v619 = vld [vmem:[%s587 + $0xf8] sm:$0xff]
        %v620 = vld [vmem:[%s587 + $0x100] sm:$0xff]
        %v621 = vld [vmem:[%s587 + $0x108] sm:$0xff]
        %v622 = vld [vmem:[%s587 + $0x110] sm:$0xff]
        %v623 = vld [vmem:[%s587 + $0x118] sm:$0xff]
        %vm624 = vcmask 1045504
        %v625 = vrot.slane %v185, 2
        %v626 = vrot.slane %v186, 2
        %v627 = vsel %vm624, %v625, %v626
        %v628 = vrot.slane %v187, 2
        %v629 = vsel %vm624, %v626, %v628
        %v630 = vsel %vm270, %v627, 0
        %v632 = vsel %vm270, %v629, 0
        %634 = vmatprep.subr.mxu0 %v589
        %635 = vmatpush1.msra.mxu0 %v588
        %636 = vmatprep.subr.mxu0 %v593
        %637 = vmatpush1.msra.mxu0 %v592
        %638 = vmatprep.subr.mxu0 %v597
        %639 = vmatpush1.msra.mxu0 %v596
        %640 = vmatprep.subr.mxu0 %v601
        %641 = vmatpush1.msra.mxu0 %v600
        %642 = vmatprep.subr.mxu0 %v605
        %643 = vmatpush1.msra.mxu0 %v604
        %644 = vmatprep.subr.mxu0 %v609
        %645 = vmatpush1.msra.mxu0 %v608
        %646 = vmatprep.subr.mxu0 %v613
        %647 = vmatpush1.msra.mxu0 %v612
        %648 = vmatprep.subr.mxu0 %v617
        %649 = vmatpush1.msra.mxu0 %v616
        %650 = vmatprep.subr.mxu0 %v621
        %651 = vmatpush1.msra.mxu0 %v620
        %652 = vmatprep.subr.mxu0 0.0
        %653 = vmatpush1.msra.mxu0 0.0
        %654 = vmatprep.subr.mxu0 0.0
        %655 = vmatpush1.msra.mxu0 0.0
        %656 = vmatprep.subr.mxu0 0.0
        %657 = vmatpush1.msra.mxu0 0.0
        %658 = vmatprep.subr.mxu0 0.0
        %659 = vmatpush1.msra.mxu0 0.0
        %660 = vmatprep.subr.mxu0 0.0
        %661 = vmatpush1.msra.mxu0 0.0
        %662 = vmatprep.subr.mxu0 0.0
        %663 = vmatpush1.msra.mxu0 0.0
        %664 = vmatprep.subr.mxu0 0.0
        %665 = vmatpush1.msra.mxu0 0.0
        %666 = vmatprep.subr.mxu0 0.0
        %667 = vmatpush1.msra.mxu0 0.0
        %668 = vmatprep.subr.mxu0 0.0
        %669 = vmatpush1.msra.mxu0 0.0
        %670 = vmatprep.subr.mxu0 0.0
        %671 = vmatpush1.msra.mxu0 0.0
        %672 = vmatprep.subr.mxu0 0.0
        %673 = vmatpush1.msra.mxu0 0.0
        %674 = vmatprep.subr.mxu0 0.0
        %675 = vmatpush1.msra.mxu0 0.0
        %676 = vmatprep.subr.mxu0 0.0
        %677 = vmatpush1.msra.mxu0 0.0
        %678 = vmatprep.subr.mxu0 0.0
        %679 = vmatpush1.msra.mxu0 0.0
        %680 = vmatprep.subr.mxu0 0.0
        %681 = vmatpush1.msra.mxu0 0.0
        %682 = vmatprep.subr.mxu0 0.0
        %683 = vmatpush1.msra.mxu0 0.0
        %684 = vmatprep.subr.mxu0 0.0
        %685 = vmatpush1.msra.mxu0 0.0
        %686 = vmatprep.subr.mxu0 0.0
        %687 = vmatpush1.msra.mxu0 0.0
        %688 = vmatprep.subr.mxu0 0.0
        %689 = vmatpush1.msra.mxu0 0.0
        %690 = vmatprep.subr.mxu0 0.0
        %691 = vmatpush1.msra.mxu0 0.0
        %692 = vmatprep.subr.mxu0 0.0
        %693 = vmatpush1.msra.mxu0 0.0
        %694 = vmatprep.subr.mxu0 0.0
        %695 = vmatpush1.msra.mxu0 0.0
        %696 = vmatprep.subr.mxu0 0.0
        %697 = vmatpush1.msra.mxu0 0.0
        %698 = vmatprep.mubr.f32.mxu0 0.0
        %699 = vmatmul.mubr.f32.gmra.mrb[0].mxu0 %v630
        %v700 = vpop.f32.mrb[0].mxu0
        %v701 = vadd.f32 0.0, %v700
        %v702 = vpop.f32.mrb[0].mxu0
        %v703 = vadd.f32 0.0, %v702
        %704 = vmatprep.mubr.f32.mxu0 0.0
        %705 = vmatmul.mubr.f32.gmra.mrb[0].mxu0 %v632
        %v706 = vpop.f32.mrb[0].mxu0
        %v707 = vadd.f32 0.0, %v706
        %v708 = vpop.f32.mrb[0].mxu0
        %v709 = vadd.f32 0.0, %v708
        %710 = vdwg.mxu0
        %711 = vmatprep.subr.mxu0 %v591
        %712 = vmatpush1.msra.mxu0 %v590
        %713 = vmatprep.subr.mxu0 %v595
        %714 = vmatpush1.msra.mxu0 %v594
        %715 = vmatprep.subr.mxu0 %v599
        %716 = vmatpush1.msra.mxu0 %v598
        %717 = vmatprep.subr.mxu0 %v603
        %718 = vmatpush1.msra.mxu0 %v602
        %719 = vmatprep.subr.mxu0 %v607
        %720 = vmatpush1.msra.mxu0 %v606
        %721 = vmatprep.subr.mxu0 %v611
        %722 = vmatpush1.msra.mxu0 %v610
        %723 = vmatprep.subr.mxu0 %v615
        %724 = vmatpush1.msra.mxu0 %v614
        %725 = vmatprep.subr.mxu0 %v619
        %726 = vmatpush1.msra.mxu0 %v618
        %727 = vmatprep.subr.mxu0 %v623
        %728 = vmatpush1.msra.mxu0 %v622
        %729 = vmatprep.subr.mxu0 0.0
        %730 = vmatpush1.msra.mxu0 0.0
        %731 = vmatprep.subr.mxu0 0.0
        %732 = vmatpush1.msra.mxu0 0.0
        %733 = vmatprep.subr.mxu0 0.0
        %734 = vmatpush1.msra.mxu0 0.0
        %735 = vmatprep.subr.mxu0 0.0
        %736 = vmatpush1.msra.mxu0 0.0
        %737 = vmatprep.subr.mxu0 0.0
        %738 = vmatpush1.msra.mxu0 0.0
        %739 = vmatprep.subr.mxu0 0.0
        %740 = vmatpush1.msra.mxu0 0.0
        %741 = vmatprep.subr.mxu0 0.0
        %742 = vmatpush1.msra.mxu0 0.0
        %743 = vmatprep.subr.mxu0 0.0
        %744 = vmatpush1.msra.mxu0 0.0
        %745 = vmatprep.subr.mxu0 0.0
        %746 = vmatpush1.msra.mxu0 0.0
        %747 = vmatprep.subr.mxu0 0.0
        %748 = vmatpush1.msra.mxu0 0.0
        %749 = vmatprep.subr.mxu0 0.0
        %750 = vmatpush1.msra.mxu0 0.0
        %751 = vmatprep.subr.mxu0 0.0
        %752 = vmatpush1.msra.mxu0 0.0
        %753 = vmatprep.subr.mxu0 0.0
        %754 = vmatpush1.msra.mxu0 0.0
        %755 = vmatprep.subr.mxu0 0.0
        %756 = vmatpush1.msra.mxu0 0.0
        %757 = vmatprep.subr.mxu0 0.0
        %758 = vmatpush1.msra.mxu0 0.0
        %759 = vmatprep.subr.mxu0 0.0
        %760 = vmatpush1.msra.mxu0 0.0
        %761 = vmatprep.subr.mxu0 0.0
        %762 = vmatpush1.msra.mxu0 0.0
        %763 = vmatprep.subr.mxu0 0.0
        %764 = vmatpush1.msra.mxu0 0.0
        %765 = vmatprep.subr.mxu0 0.0
        %766 = vmatpush1.msra.mxu0 0.0
        %767 = vmatprep.subr.mxu0 0.0
        %768 = vmatpush1.msra.mxu0 0.0
        %769 = vmatprep.subr.mxu0 0.0
        %770 = vmatpush1.msra.mxu0 0.0
        %771 = vmatprep.subr.mxu0 0.0
        %772 = vmatpush1.msra.mxu0 0.0
        %773 = vmatprep.subr.mxu0 0.0
        %774 = vmatpush1.msra.mxu0 0.0
        %775 = vmatprep.mubr.f32.mxu0 0.0
        %776 = vmatmul.mubr.f32.gmra.mrb[0].mxu0 %v630
        %v777 = vpop.f32.mrb[0].mxu0
        %v778 = vadd.f32 0.0, %v777
        %v779 = vpop.f32.mrb[0].mxu0
        %v780 = vadd.f32 0.0, %v779
        %781 = vmatprep.mubr.f32.mxu0 0.0
        %782 = vmatmul.mubr.f32.gmra.mrb[0].mxu0 %v632
        %v783 = vpop.f32.mrb[0].mxu0
        %v784 = vadd.f32 0.0, %v783
        %v785 = vpop.f32.mrb[0].mxu0
        %v786 = vadd.f32 0.0, %v785
        %787 = vdwg.mxu0
        %v788 = vadd.f32 %v500, %v701
        %v789 = vadd.f32 %v502, %v703
        %v790 = vadd.f32 %v577, %v778
        %v791 = vadd.f32 %v579, %v780
        %v792 = vadd.f32 %v506, %v707
        %v793 = vadd.f32 %v508, %v709
        %v794 = vadd.f32 %v583, %v784
        %v795 = vadd.f32 %v585, %v786
        %v796 = vadd.f32 %v788, %v792
        %v797 = vrot.slane %v796, 4
        %v798 = vadd.f32 %v796, %v797
        %v799 = vrot.slane %v798, 2
        %v800 = vadd.f32 %v798, %v799
        %v801 = vrot.slane %v800, 1
        %v802 = vadd.f32 %v800, %v801
        %v803 = vadd.f32 %v789, %v793
        %v804 = vrot.slane %v803, 4
        %v805 = vadd.f32 %v803, %v804
        %v806 = vrot.slane %v805, 2
        %v807 = vadd.f32 %v805, %v806
        %v808 = vrot.slane %v807, 1
        %v809 = vadd.f32 %v807, %v808
        %v810 = vadd.f32 %v790, %v794
        %v811 = vrot.slane %v810, 4
        %v812 = vadd.f32 %v810, %v811
        %v813 = vrot.slane %v812, 2
        %v814 = vadd.f32 %v812, %v813
        %v815 = vrot.slane %v814, 1
        %v816 = vadd.f32 %v814, %v815
        %v817 = vadd.f32 %v791, %v795
        %v818 = vrot.slane %v817, 4
        %v819 = vadd.f32 %v817, %v818
        %v820 = vrot.slane %v819, 2
        %v821 = vadd.f32 %v819, %v820
        %v822 = vrot.slane %v821, 1
        %v823 = vadd.f32 %v821, %v822
        %v824 = vadd.f32 %v802, 0.0
        %v825 = vadd.f32 %v809, 0.0
        %v826 = vadd.f32 %v816, 0.0
        %v827 = vadd.f32 %v823, 0.0
        %v828 = vmul.f32 %v788, %v788
        %v829 = vmul.f32 %v789, %v789
        %v830 = vmul.f32 %v790, %v790
        %v831 = vmul.f32 %v791, %v791
        %v832 = vmul.f32 %v792, %v792
        %v833 = vmul.f32 %v793, %v793
        %v834 = vmul.f32 %v794, %v794
        %v835 = vmul.f32 %v795, %v795
        %v836 = vadd.f32 %v828, %v832
        %v837 = vrot.slane %v836, 4
        %v838 = vadd.f32 %v836, %v837
        %v839 = vrot.slane %v838, 2
        %v840 = vadd.f32 %v838, %v839
        %v841 = vrot.slane %v840, 1
        %v842 = vadd.f32 %v840, %v841
        %v843 = vadd.f32 %v829, %v833
        %v844 = vrot.slane %v843, 4
        %v845 = vadd.f32 %v843, %v844
        %v846 = vrot.slane %v845, 2
        %v847 = vadd.f32 %v845, %v846
        %v848 = vrot.slane %v847, 1
        %v849 = vadd.f32 %v847, %v848
        %v850 = vadd.f32 %v830, %v834
        %v851 = vrot.slane %v850, 4
        %v852 = vadd.f32 %v850, %v851
        %v853 = vrot.slane %v852, 2
        %v854 = vadd.f32 %v852, %v853
        %v855 = vrot.slane %v854, 1
        %v856 = vadd.f32 %v854, %v855
        %v857 = vadd.f32 %v831, %v835
        %v858 = vrot.slane %v857, 4
        %v859 = vadd.f32 %v857, %v858
        %v860 = vrot.slane %v859, 2
        %v861 = vadd.f32 %v859, %v860
        %v862 = vrot.slane %v861, 1
        %v863 = vadd.f32 %v861, %v862
        %v864 = vadd.f32 %v842, 0.0
        %v865 = vadd.f32 %v849, 0.0
        %v866 = vadd.f32 %v856, 0.0
        %v867 = vadd.f32 %v863, 0.0
        %s868 = scalar_lea.vmem %s183, 24
        %v869 = vld [vmem:[%s868] sm:$0xff]
        %v870 = vld [vmem:[%s868 + $0x8] sm:$0xff]
        %v871 = vld [vmem:[%s868 + $0x10] sm:$0x3]
        %v875 = vrot.slane %v869, 1
        %v876 = vrot.slane %v870, 1
        %v877 = vsel %vm264, %v875, %v876
        %v878 = vrot.slane %v871, 1
        %v879 = vsel %vm264, %v876, %v878
        %v880 = vsel %vm270, %v877, 0
        %v882 = vsel %vm270, %v879, 0
        %884 = vmatprep.subr.mxu0 %v226
        %885 = vmatpush1.msra.mxu0 %v225
        %886 = vmatprep.subr.mxu0 %v230
        %887 = vmatpush1.msra.mxu0 %v229
        %888 = vmatprep.subr.mxu0 %v234
        %889 = vmatpush1.msra.mxu0 %v233
        %890 = vmatprep.subr.mxu0 %v238
        %891 = vmatpush1.msra.mxu0 %v237
        %892 = vmatprep.subr.mxu0 %v242
        %893 = vmatpush1.msra.mxu0 %v241
        %894 = vmatprep.subr.mxu0 %v246
        %895 = vmatpush1.msra.mxu0 %v245
        %896 = vmatprep.subr.mxu0 %v250
        %897 = vmatpush1.msra.mxu0 %v249
        %898 = vmatprep.subr.mxu0 %v254
        %899 = vmatpush1.msra.mxu0 %v253
        %900 = vmatprep.subr.mxu0 %v258
        %901 = vmatpush1.msra.mxu0 %v257
        %902 = vmatprep.subr.mxu0 0.0
        %903 = vmatpush1.msra.mxu0 0.0
        %904 = vmatprep.subr.mxu0 0.0
        %905 = vmatpush1.msra.mxu0 0.0
        %906 = vmatprep.subr.mxu0 0.0
        %907 = vmatpush1.msra.mxu0 0.0
        %908 = vmatprep.subr.mxu0 0.0
        %909 = vmatpush1.msra.mxu0 0.0
        %910 = vmatprep.subr.mxu0 0.0
        %911 = vmatpush1.msra.mxu0 0.0
        %912 = vmatprep.subr.mxu0 0.0
        %913 = vmatpush1.msra.mxu0 0.0
        %914 = vmatprep.subr.mxu0 0.0
        %915 = vmatpush1.msra.mxu0 0.0
        %916 = vmatprep.subr.mxu0 0.0
        %917 = vmatpush1.msra.mxu0 0.0
        %918 = vmatprep.subr.mxu0 0.0
        %919 = vmatpush1.msra.mxu0 0.0
        %920 = vmatprep.subr.mxu0 0.0
        %921 = vmatpush1.msra.mxu0 0.0
        %922 = vmatprep.subr.mxu0 0.0
        %923 = vmatpush1.msra.mxu0 0.0
        %924 = vmatprep.subr.mxu0 0.0
        %925 = vmatpush1.msra.mxu0 0.0
        %926 = vmatprep.subr.mxu0 0.0
        %927 = vmatpush1.msra.mxu0 0.0
        %928 = vmatprep.subr.mxu0 0.0
        %929 = vmatpush1.msra.mxu0 0.0
        %930 = vmatprep.subr.mxu0 0.0
        %931 = vmatpush1.msra.mxu0 0.0
        %932 = vmatprep.subr.mxu0 0.0
        %933 = vmatpush1.msra.mxu0 0.0
        %934 = vmatprep.subr.mxu0 0.0
        %935 = vmatpush1.msra.mxu0 0.0
        %936 = vmatprep.subr.mxu0 0.0
        %937 = vmatpush1.msra.mxu0 0.0
        %938 = vmatprep.subr.mxu0 0.0
        %939 = vmatpush1.msra.mxu0 0.0
        %940 = vmatprep.subr.mxu0 0.0
        %941 = vmatpush1.msra.mxu0 0.0
        %942 = vmatprep.subr.mxu0 0.0
        %943 = vmatpush1.msra.mxu0 0.0
        %944 = vmatprep.subr.mxu0 0.0
        %945 = vmatpush1.msra.mxu0 0.0
        %946 = vmatprep.subr.mxu0 0.0
        %947 = vmatpush1.msra.mxu0 0.0
        %948 = vmatprep.mubr.f32.mxu0 0.0
        %949 = vmatmul.mubr.f32.gmra.mrb[0].mxu0 %v880
        %v950 = vpop.f32.mrb[0].mxu0
        %v951 = vadd.f32 0.0, %v950
        %v952 = vpop.f32.mrb[0].mxu0
        %v953 = vadd.f32 0.0, %v952
        %954 = vmatprep.mubr.f32.mxu0 0.0
        %955 = vmatmul.mubr.f32.gmra.mrb[0].mxu0 %v882
        %v956 = vpop.f32.mrb[0].mxu0
        %v957 = vadd.f32 0.0, %v956
        %v958 = vpop.f32.mrb[0].mxu0
        %v959 = vadd.f32 0.0, %v958
        %960 = vdwg.mxu0
        %961 = vmatprep.subr.mxu0 %v228
        %962 = vmatpush1.msra.mxu0 %v227
        %963 = vmatprep.subr.mxu0 %v232
        %964 = vmatpush1.msra.mxu0 %v231
        %965 = vmatprep.subr.mxu0 %v236
        %966 = vmatpush1.msra.mxu0 %v235
        %967 = vmatprep.subr.mxu0 %v240
        %968 = vmatpush1.msra.mxu0 %v239
        %969 = vmatprep.subr.mxu0 %v244
        %970 = vmatpush1.msra.mxu0 %v243
        %971 = vmatprep.subr.mxu0 %v248
        %972 = vmatpush1.msra.mxu0 %v247
        %973 = vmatprep.subr.mxu0 %v252
        %974 = vmatpush1.msra.mxu0 %v251
        %975 = vmatprep.subr.mxu0 %v256
        %976 = vmatpush1.msra.mxu0 %v255
        %977 = vmatprep.subr.mxu0 %v260
        %978 = vmatpush1.msra.mxu0 %v259
        %979 = vmatprep.subr.mxu0 0.0
        %980 = vmatpush1.msra.mxu0 0.0
        %981 = vmatprep.subr.mxu0 0.0
        %982 = vmatpush1.msra.mxu0 0.0
        %983 = vmatprep.subr.mxu0 0.0
        %984 = vmatpush1.msra.mxu0 0.0
        %985 = vmatprep.subr.mxu0 0.0
        %986 = vmatpush1.msra.mxu0 0.0
        %987 = vmatprep.subr.mxu0 0.0
        %988 = vmatpush1.msra.mxu0 0.0
        %989 = vmatprep.subr.mxu0 0.0
        %990 = vmatpush1.msra.mxu0 0.0
        %991 = vmatprep.subr.mxu0 0.0
        %992 = vmatpush1.msra.mxu0 0.0
        %993 = vmatprep.subr.mxu0 0.0
        %994 = vmatpush1.msra.mxu0 0.0
        %995 = vmatprep.subr.mxu0 0.0
        %996 = vmatpush1.msra.mxu0 0.0
        %997 = vmatprep.subr.mxu0 0.0
        %998 = vmatpush1.msra.mxu0 0.0
        %999 = vmatprep.subr.mxu0 0.0
        %1000 = vmatpush1.msra.mxu0 0.0
        %1001 = vmatprep.subr.mxu0 0.0
        %1002 = vmatpush1.msra.mxu0 0.0
        %1003 = vmatprep.subr.mxu0 0.0
        %1004 = vmatpush1.msra.mxu0 0.0
        %1005 = vmatprep.subr.mxu0 0.0
        %1006 = vmatpush1.msra.mxu0 0.0
        %1007 = vmatprep.subr.mxu0 0.0
        %1008 = vmatpush1.msra.mxu0 0.0
        %1009 = vmatprep.subr.mxu0 0.0
        %1010 = vmatpush1.msra.mxu0 0.0
        %1011 = vmatprep.subr.mxu0 0.0
        %1012 = vmatpush1.msra.mxu0 0.0
        %1013 = vmatprep.subr.mxu0 0.0
        %1014 = vmatpush1.msra.mxu0 0.0
        %1015 = vmatprep.subr.mxu0 0.0
        %1016 = vmatpush1.msra.mxu0 0.0
        %1017 = vmatprep.subr.mxu0 0.0
        %1018 = vmatpush1.msra.mxu0 0.0
        %1019 = vmatprep.subr.mxu0 0.0
        %1020 = vmatpush1.msra.mxu0 0.0
        %1021 = vmatprep.subr.mxu0 0.0
        %1022 = vmatpush1.msra.mxu0 0.0
        %1023 = vmatprep.subr.mxu0 0.0
        %1024 = vmatpush1.msra.mxu0 0.0
        %1025 = vmatprep.mubr.f32.mxu0 0.0
        %1026 = vmatmul.mubr.f32.gmra.mrb[0].mxu0 %v880
        %v1027 = vpop.f32.mrb[0].mxu0
        %v1028 = vadd.f32 0.0, %v1027
        %v1029 = vpop.f32.mrb[0].mxu0
        %v1030 = vadd.f32 0.0, %v1029
        %1031 = vmatprep.mubr.f32.mxu0 0.0
        %1032 = vmatmul.mubr.f32.gmra.mrb[0].mxu0 %v882
        %v1033 = vpop.f32.mrb[0].mxu0
        %v1034 = vadd.f32 0.0, %v1033
        %v1035 = vpop.f32.mrb[0].mxu0
        %v1036 = vadd.f32 0.0, %v1035
        %1037 = vdwg.mxu0
        %v1038 = vsel %vm270, %v869, 0
        %v1040 = vsel %vm270, %v870, 0
        %1042 = vmatprep.subr.mxu0 %v189
        %1043 = vmatpush1.msra.mxu0 %v188
        %1044 = vmatprep.subr.mxu0 %v193
        %1045 = vmatpush1.msra.mxu0 %v192
        %1046 = vmatprep.subr.mxu0 %v197
        %1047 = vmatpush1.msra.mxu0 %v196
        %1048 = vmatprep.subr.mxu0 %v201
        %1049 = vmatpush1.msra.mxu0 %v200
        %1050 = vmatprep.subr.mxu0 %v205
        %1051 = vmatpush1.msra.mxu0 %v204
        %1052 = vmatprep.subr.mxu0 %v209
        %1053 = vmatpush1.msra.mxu0 %v208
        %1054 = vmatprep.subr.mxu0 %v213
        %1055 = vmatpush1.msra.mxu0 %v212
        %1056 = vmatprep.subr.mxu0 %v217
        %1057 = vmatpush1.msra.mxu0 %v216
        %1058 = vmatprep.subr.mxu0 %v221
        %1059 = vmatpush1.msra.mxu0 %v220
        %1060 = vmatprep.subr.mxu0 0.0
        %1061 = vmatpush1.msra.mxu0 0.0
        %1062 = vmatprep.subr.mxu0 0.0
        %1063 = vmatpush1.msra.mxu0 0.0
        %1064 = vmatprep.subr.mxu0 0.0
        %1065 = vmatpush1.msra.mxu0 0.0
        %1066 = vmatprep.subr.mxu0 0.0
        %1067 = vmatpush1.msra.mxu0 0.0
        %1068 = vmatprep.subr.mxu0 0.0
        %1069 = vmatpush1.msra.mxu0 0.0
        %1070 = vmatprep.subr.mxu0 0.0
        %1071 = vmatpush1.msra.mxu0 0.0
        %1072 = vmatprep.subr.mxu0 0.0
        %1073 = vmatpush1.msra.mxu0 0.0
        %1074 = vmatprep.subr.mxu0 0.0
        %1075 = vmatpush1.msra.mxu0 0.0
        %1076 = vmatprep.subr.mxu0 0.0
        %1077 = vmatpush1.msra.mxu0 0.0
        %1078 = vmatprep.subr.mxu0 0.0
        %1079 = vmatpush1.msra.mxu0 0.0
        %1080 = vmatprep.subr.mxu0 0.0
        %1081 = vmatpush1.msra.mxu0 0.0
        %1082 = vmatprep.subr.mxu0 0.0
        %1083 = vmatpush1.msra.mxu0 0.0
        %1084 = vmatprep.subr.mxu0 0.0
        %1085 = vmatpush1.msra.mxu0 0.0
        %1086 = vmatprep.subr.mxu0 0.0
        %1087 = vmatpush1.msra.mxu0 0.0
        %1088 = vmatprep.subr.mxu0 0.0
        %1089 = vmatpush1.msra.mxu0 0.0
        %1090 = vmatprep.subr.mxu0 0.0
        %1091 = vmatpush1.msra.mxu0 0.0
        %1092 = vmatprep.subr.mxu0 0.0
        %1093 = vmatpush1.msra.mxu0 0.0
        %1094 = vmatprep.subr.mxu0 0.0
        %1095 = vmatpush1.msra.mxu0 0.0
        %1096 = vmatprep.subr.mxu0 0.0
        %1097 = vmatpush1.msra.mxu0 0.0
        %1098 = vmatprep.subr.mxu0 0.0
        %1099 = vmatpush1.msra.mxu0 0.0
        %1100 = vmatprep.subr.mxu0 0.0
        %1101 = vmatpush1.msra.mxu0 0.0
        %1102 = vmatprep.subr.mxu0 0.0
        %1103 = vmatpush1.msra.mxu0 0.0
        %1104 = vmatprep.subr.mxu0 0.0
        %1105 = vmatpush1.msra.mxu0 0.0
        %1106 = vmatprep.mubr.f32.mxu0 0.0
        %1107 = vmatmul.mubr.f32.gmra.mrb[0].mxu0 %v1038
        %v1108 = vpop.f32.mrb[0].mxu0
        %v1109 = vadd.f32 %v951, %v1108
        %v1110 = vpop.f32.mrb[0].mxu0
        %v1111 = vadd.f32 %v953, %v1110
        %1112 = vmatprep.mubr.f32.mxu0 0.0
        %1113 = vmatmul.mubr.f32.gmra.mrb[0].mxu0 %v1040
        %v1114 = vpop.f32.mrb[0].mxu0
        %v1115 = vadd.f32 %v957, %v1114
        %v1116 = vpop.f32.mrb[0].mxu0
        %v1117 = vadd.f32 %v959, %v1116
        %1118 = vdwg.mxu0
        %1119 = vmatprep.subr.mxu0 %v191
        %1120 = vmatpush1.msra.mxu0 %v190
        %1121 = vmatprep.subr.mxu0 %v195
        %1122 = vmatpush1.msra.mxu0 %v194
        %1123 = vmatprep.subr.mxu0 %v199
        %1124 = vmatpush1.msra.mxu0 %v198
        %1125 = vmatprep.subr.mxu0 %v203
        %1126 = vmatpush1.msra.mxu0 %v202
        %1127 = vmatprep.subr.mxu0 %v207
        %1128 = vmatpush1.msra.mxu0 %v206
        %1129 = vmatprep.subr.mxu0 %v211
        %1130 = vmatpush1.msra.mxu0 %v210
        %1131 = vmatprep.subr.mxu0 %v215
        %1132 = vmatpush1.msra.mxu0 %v214
        %1133 = vmatprep.subr.mxu0 %v219
        %1134 = vmatpush1.msra.mxu0 %v218
        %1135 = vmatprep.subr.mxu0 %v223
        %1136 = vmatpush1.msra.mxu0 %v222
        %1137 = vmatprep.subr.mxu0 0.0
        %1138 = vmatpush1.msra.mxu0 0.0
        %1139 = vmatprep.subr.mxu0 0.0
        %1140 = vmatpush1.msra.mxu0 0.0
        %1141 = vmatprep.subr.mxu0 0.0
        %1142 = vmatpush1.msra.mxu0 0.0
        %1143 = vmatprep.subr.mxu0 0.0
        %1144 = vmatpush1.msra.mxu0 0.0
        %1145 = vmatprep.subr.mxu0 0.0
        %1146 = vmatpush1.msra.mxu0 0.0
        %1147 = vmatprep.subr.mxu0 0.0
        %1148 = vmatpush1.msra.mxu0 0.0
        %1149 = vmatprep.subr.mxu0 0.0
        %1150 = vmatpush1.msra.mxu0 0.0
        %1151 = vmatprep.subr.mxu0 0.0
        %1152 = vmatpush1.msra.mxu0 0.0
        %1153 = vmatprep.subr.mxu0 0.0
        %1154 = vmatpush1.msra.mxu0 0.0
        %1155 = vmatprep.subr.mxu0 0.0
        %1156 = vmatpush1.msra.mxu0 0.0
        %1157 = vmatprep.subr.mxu0 0.0
        %1158 = vmatpush1.msra.mxu0 0.0
        %1159 = vmatprep.subr.mxu0 0.0
        %1160 = vmatpush1.msra.mxu0 0.0
        %1161 = vmatprep.subr.mxu0 0.0
        %1162 = vmatpush1.msra.mxu0 0.0
        %1163 = vmatprep.subr.mxu0 0.0
        %1164 = vmatpush1.msra.mxu0 0.0
        %1165 = vmatprep.subr.mxu0 0.0
        %1166 = vmatpush1.msra.mxu0 0.0
        %1167 = vmatprep.subr.mxu0 0.0
        %1168 = vmatpush1.msra.mxu0 0.0
        %1169 = vmatprep.subr.mxu0 0.0
        %1170 = vmatpush1.msra.mxu0 0.0
        %1171 = vmatprep.subr.mxu0 0.0
        %1172 = vmatpush1.msra.mxu0 0.0
        %1173 = vmatprep.subr.mxu0 0.0
        %1174 = vmatpush1.msra.mxu0 0.0
        %1175 = vmatprep.subr.mxu0 0.0
        %1176 = vmatpush1.msra.mxu0 0.0
        %1177 = vmatprep.subr.mxu0 0.0
        %1178 = vmatpush1.msra.mxu0 0.0
        %1179 = vmatprep.subr.mxu0 0.0
        %1180 = vmatpush1.msra.mxu0 0.0
        %1181 = vmatprep.subr.mxu0 0.0
        %1182 = vmatpush1.msra.mxu0 0.0
        %1183 = vmatprep.mubr.f32.mxu0 0.0
        %1184 = vmatmul.mubr.f32.gmra.mrb[0].mxu0 %v1038
        %v1185 = vpop.f32.mrb[0].mxu0
        %v1186 = vadd.f32 %v1028, %v1185
        %v1187 = vpop.f32.mrb[0].mxu0
        %v1188 = vadd.f32 %v1030, %v1187
        %1189 = vmatprep.mubr.f32.mxu0 0.0
        %1190 = vmatmul.mubr.f32.gmra.mrb[0].mxu0 %v1040
        %v1191 = vpop.f32.mrb[0].mxu0
        %v1192 = vadd.f32 %v1034, %v1191
        %v1193 = vpop.f32.mrb[0].mxu0
        %v1194 = vadd.f32 %v1036, %v1193
        %1195 = vdwg.mxu0
        %v1196 = vrot.slane %v869, 2
        %v1197 = vrot.slane %v870, 2
        %v1198 = vsel %vm624, %v1196, %v1197
        %v1199 = vrot.slane %v871, 2
        %v1200 = vsel %vm624, %v1197, %v1199
        %v1201 = vsel %vm270, %v1198, 0
        %v1203 = vsel %vm270, %v1200, 0
        %1205 = vmatprep.subr.mxu0 %v589
        %1206 = vmatpush1.msra.mxu0 %v588
        %1207 = vmatprep.subr.mxu0 %v593
        %1208 = vmatpush1.msra.mxu0 %v592
        %1209 = vmatprep.subr.mxu0 %v597
        %1210 = vmatpush1.msra.mxu0 %v596
        %1211 = vmatprep.subr.mxu0 %v601
        %1212 = vmatpush1.msra.mxu0 %v600
        %1213 = vmatprep.subr.mxu0 %v605
        %1214 = vmatpush1.msra.mxu0 %v604
        %1215 = vmatprep.subr.mxu0 %v609
        %1216 = vmatpush1.msra.mxu0 %v608
        %1217 = vmatprep.subr.mxu0 %v613
        %1218 = vmatpush1.msra.mxu0 %v612
        %1219 = vmatprep.subr.mxu0 %v617
        %1220 = vmatpush1.msra.mxu0 %v616
        %1221 = vmatprep.subr.mxu0 %v621
        %1222 = vmatpush1.msra.mxu0 %v620
        %1223 = vmatprep.subr.mxu0 0.0
        %1224 = vmatpush1.msra.mxu0 0.0
        %1225 = vmatprep.subr.mxu0 0.0
        %1226 = vmatpush1.msra.mxu0 0.0
        %1227 = vmatprep.subr.mxu0 0.0
        %1228 = vmatpush1.msra.mxu0 0.0
        %1229 = vmatprep.subr.mxu0 0.0
        %1230 = vmatpush1.msra.mxu0 0.0
        %1231 = vmatprep.subr.mxu0 0.0
        %1232 = vmatpush1.msra.mxu0 0.0
        %1233 = vmatprep.subr.mxu0 0.0
        %1234 = vmatpush1.msra.mxu0 0.0
        %1235 = vmatprep.subr.mxu0 0.0
        %1236 = vmatpush1.msra.mxu0 0.0
        %1237 = vmatprep.subr.mxu0 0.0
        %1238 = vmatpush1.msra.mxu0 0.0
        %1239 = vmatprep.subr.mxu0 0.0
        %1240 = vmatpush1.msra.mxu0 0.0
        %1241 = vmatprep.subr.mxu0 0.0
        %1242 = vmatpush1.msra.mxu0 0.0
        %1243 = vmatprep.subr.mxu0 0.0
        %1244 = vmatpush1.msra.mxu0 0.0
        %1245 = vmatprep.subr.mxu0 0.0
        %1246 = vmatpush1.msra.mxu0 0.0
        %1247 = vmatprep.subr.mxu0 0.0
        %1248 = vmatpush1.msra.mxu0 0.0
        %1249 = vmatprep.subr.mxu0 0.0
        %1250 = vmatpush1.msra.mxu0 0.0
        %1251 = vmatprep.subr.mxu0 0.0
        %1252 = vmatpush1.msra.mxu0 0.0
        %1253 = vmatprep.subr.mxu0 0.0
        %1254 = vmatpush1.msra.mxu0 0.0
        %1255 = vmatprep.subr.mxu0 0.0
        %1256 = vmatpush1.msra.mxu0 0.0
        %1257 = vmatprep.subr.mxu0 0.0
        %1258 = vmatpush1.msra.mxu0 0.0
        %1259 = vmatprep.subr.mxu0 0.0
        %1260 = vmatpush1.msra.mxu0 0.0
        %1261 = vmatprep.subr.mxu0 0.0
        %1262 = vmatpush1.msra.mxu0 0.0
        %1263 = vmatprep.subr.mxu0 0.0
        %1264 = vmatpush1.msra.mxu0 0.0
        %1265 = vmatprep.subr.mxu0 0.0
        %1266 = vmatpush1.msra.mxu0 0.0
        %1267 = vmatprep.subr.mxu0 0.0
        %1268 = vmatpush1.msra.mxu0 0.0
        %1269 = vmatprep.mubr.f32.mxu0 0.0
        %1270 = vmatmul.mubr.f32.gmra.mrb[0].mxu0 %v1201
        %v1271 = vpop.f32.mrb[0].mxu0
        %v1272 = vadd.f32 0.0, %v1271
        %v1273 = vpop.f32.mrb[0].mxu0
        %v1274 = vadd.f32 0.0, %v1273
        %1275 = vmatprep.mubr.f32.mxu0 0.0
        %1276 = vmatmul.mubr.f32.gmra.mrb[0].mxu0 %v1203
        %v1277 = vpop.f32.mrb[0].mxu0
        %v1278 = vadd.f32 0.0, %v1277
        %v1279 = vpop.f32.mrb[0].mxu0
        %v1280 = vadd.f32 0.0, %v1279
        %1281 = vdwg.mxu0
        %1282 = vmatprep.subr.mxu0 %v591
        %1283 = vmatpush1.msra.mxu0 %v590
        %1284 = vmatprep.subr.mxu0 %v595
        %1285 = vmatpush1.msra.mxu0 %v594
        %1286 = vmatprep.subr.mxu0 %v599
        %1287 = vmatpush1.msra.mxu0 %v598
        %1288 = vmatprep.subr.mxu0 %v603
        %1289 = vmatpush1.msra.mxu0 %v602
        %1290 = vmatprep.subr.mxu0 %v607
        %1291 = vmatpush1.msra.mxu0 %v606
        %1292 = vmatprep.subr.mxu0 %v611
        %1293 = vmatpush1.msra.mxu0 %v610
        %1294 = vmatprep.subr.mxu0 %v615
        %1295 = vmatpush1.msra.mxu0 %v614
        %1296 = vmatprep.subr.mxu0 %v619
        %1297 = vmatpush1.msra.mxu0 %v618
        %1298 = vmatprep.subr.mxu0 %v623
        %1299 = vmatpush1.msra.mxu0 %v622
        %1300 = vmatprep.subr.mxu0 0.0
        %1301 = vmatpush1.msra.mxu0 0.0
        %1302 = vmatprep.subr.mxu0 0.0
        %1303 = vmatpush1.msra.mxu0 0.0
        %1304 = vmatprep.subr.mxu0 0.0
        %1305 = vmatpush1.msra.mxu0 0.0
        %1306 = vmatprep.subr.mxu0 0.0
        %1307 = vmatpush1.msra.mxu0 0.0
        %1308 = vmatprep.subr.mxu0 0.0
        %1309 = vmatpush1.msra.mxu0 0.0
        %1310 = vmatprep.subr.mxu0 0.0
        %1311 = vmatpush1.msra.mxu0 0.0
        %1312 = vmatprep.subr.mxu0 0.0
        %1313 = vmatpush1.msra.mxu0 0.0
        %1314 = vmatprep.subr.mxu0 0.0
        %1315 = vmatpush1.msra.mxu0 0.0
        %1316 = vmatprep.subr.mxu0 0.0
        %1317 = vmatpush1.msra.mxu0 0.0
        %1318 = vmatprep.subr.mxu0 0.0
        %1319 = vmatpush1.msra.mxu0 0.0
        %1320 = vmatprep.subr.mxu0 0.0
        %1321 = vmatpush1.msra.mxu0 0.0
        %1322 = vmatprep.subr.mxu0 0.0
        %1323 = vmatpush1.msra.mxu0 0.0
        %1324 = vmatprep.subr.mxu0 0.0
        %1325 = vmatpush1.msra.mxu0 0.0
        %1326 = vmatprep.subr.mxu0 0.0
        %1327 = vmatpush1.msra.mxu0 0.0
        %1328 = vmatprep.subr.mxu0 0.0
        %1329 = vmatpush1.msra.mxu0 0.0
        %1330 = vmatprep.subr.mxu0 0.0
        %1331 = vmatpush1.msra.mxu0 0.0
        %1332 = vmatprep.subr.mxu0 0.0
        %1333 = vmatpush1.msra.mxu0 0.0
        %1334 = vmatprep.subr.mxu0 0.0
        %1335 = vmatpush1.msra.mxu0 0.0
        %1336 = vmatprep.subr.mxu0 0.0
        %1337 = vmatpush1.msra.mxu0 0.0
        %1338 = vmatprep.subr.mxu0 0.0
        %1339 = vmatpush1.msra.mxu0 0.0
        %1340 = vmatprep.subr.mxu0 0.0
        %1341 = vmatpush1.msra.mxu0 0.0
        %1342 = vmatprep.subr.mxu0 0.0
        %1343 = vmatpush1.msra.mxu0 0.0
        %1344 = vmatprep.subr.mxu0 0.0
        %1345 = vmatpush1.msra.mxu0 0.0
        %1346 = vmatprep.mubr.f32.mxu0 0.0
        %1347 = vmatmul.mubr.f32.gmra.mrb[0].mxu0 %v1201
        %v1348 = vpop.f32.mrb[0].mxu0
        %v1349 = vadd.f32 0.0, %v1348
        %v1350 = vpop.f32.mrb[0].mxu0
        %v1351 = vadd.f32 0.0, %v1350
        %1352 = vmatprep.mubr.f32.mxu0 0.0
        %1353 = vmatmul.mubr.f32.gmra.mrb[0].mxu0 %v1203
        %v1354 = vpop.f32.mrb[0].mxu0
        %v1355 = vadd.f32 0.0, %v1354
        %v1356 = vpop.f32.mrb[0].mxu0
        %v1357 = vadd.f32 0.0, %v1356
        %1358 = vdwg.mxu0
        %v1359 = vadd.f32 %v1109, %v1272
        %v1360 = vadd.f32 %v1111, %v1274
        %v1361 = vadd.f32 %v1186, %v1349
        %v1362 = vadd.f32 %v1188, %v1351
        %v1363 = vadd.f32 %v1115, %v1278
        %v1364 = vadd.f32 %v1117, %v1280
        %v1365 = vadd.f32 %v1192, %v1355
        %v1366 = vadd.f32 %v1194, %v1357
        %v1367 = vadd.f32 %v1359, %v1363
        %v1368 = vrot.slane %v1367, 4
        %v1369 = vadd.f32 %v1367, %v1368
        %v1370 = vrot.slane %v1369, 2
        %v1371 = vadd.f32 %v1369, %v1370
        %v1372 = vrot.slane %v1371, 1
        %v1373 = vadd.f32 %v1371, %v1372
        %v1374 = vadd.f32 %v1360, %v1364
        %v1375 = vrot.slane %v1374, 4
        %v1376 = vadd.f32 %v1374, %v1375
        %v1377 = vrot.slane %v1376, 2
        %v1378 = vadd.f32 %v1376, %v1377
        %v1379 = vrot.slane %v1378, 1
        %v1380 = vadd.f32 %v1378, %v1379
        %v1381 = vadd.f32 %v1361, %v1365
        %v1382 = vrot.slane %v1381, 4
        %v1383 = vadd.f32 %v1381, %v1382
        %v1384 = vrot.slane %v1383, 2
        %v1385 = vadd.f32 %v1383, %v1384
        %v1386 = vrot.slane %v1385, 1
        %v1387 = vadd.f32 %v1385, %v1386
        %v1388 = vadd.f32 %v1362, %v1366
        %v1389 = vrot.slane %v1388, 4
        %v1390 = vadd.f32 %v1388, %v1389
        %v1391 = vrot.slane %v1390, 2
        %v1392 = vadd.f32 %v1390, %v1391
        %v1393 = vrot.slane %v1392, 1
        %v1394 = vadd.f32 %v1392, %v1393
        %v1395 = vadd.f32 %v824, %v1373
        %v1396 = vadd.f32 %v825, %v1380
        %v1397 = vadd.f32 %v826, %v1387
        %v1398 = vadd.f32 %v827, %v1394
        %v1399 = vmul.f32 %v1359, %v1359
        %v1400 = vmul.f32 %v1360, %v1360
        %v1401 = vmul.f32 %v1361, %v1361
        %v1402 = vmul.f32 %v1362, %v1362
        %v1403 = vmul.f32 %v1363, %v1363
        %v1404 = vmul.f32 %v1364, %v1364
        %v1405 = vmul.f32 %v1365, %v1365
        %v1406 = vmul.f32 %v1366, %v1366
        %v1407 = vadd.f32 %v1399, %v1403
        %v1408 = vrot.slane %v1407, 4
        %v1409 = vadd.f32 %v1407, %v1408
        %v1410 = vrot.slane %v1409, 2
        %v1411 = vadd.f32 %v1409, %v1410
        %v1412 = vrot.slane %v1411, 1
        %v1413 = vadd.f32 %v1411, %v1412
        %v1414 = vadd.f32 %v1400, %v1404
        %v1415 = vrot.slane %v1414, 4
        %v1416 = vadd.f32 %v1414, %v1415
        %v1417 = vrot.slane %v1416, 2
        %v1418 = vadd.f32 %v1416, %v1417
        %v1419 = vrot.slane %v1418, 1
        %v1420 = vadd.f32 %v1418, %v1419
        %v1421 = vadd.f32 %v1401, %v1405
        %v1422 = vrot.slane %v1421, 4
        %v1423 = vadd.f32 %v1421, %v1422
        %v1424 = vrot.slane %v1423, 2
        %v1425 = vadd.f32 %v1423, %v1424
        %v1426 = vrot.slane %v1425, 1
        %v1427 = vadd.f32 %v1425, %v1426
        %v1428 = vadd.f32 %v1402, %v1406
        %v1429 = vrot.slane %v1428, 4
        %v1430 = vadd.f32 %v1428, %v1429
        %v1431 = vrot.slane %v1430, 2
        %v1432 = vadd.f32 %v1430, %v1431
        %v1433 = vrot.slane %v1432, 1
        %v1434 = vadd.f32 %v1432, %v1433
        %v1435 = vadd.f32 %v864, %v1413
        %v1436 = vadd.f32 %v865, %v1420
        %v1437 = vadd.f32 %v866, %v1427
        %v1438 = vadd.f32 %v867, %v1434
        %s1439 = scalar_lea.vmem %s183, 48
        %v1440 = vld [vmem:[%s1439] sm:$0xff]
        %v1441 = vld [vmem:[%s1439 + $0x8] sm:$0xff]
        %v1442 = vld [vmem:[%s1439 + $0x10] sm:$0x3]
        %v1446 = vrot.slane %v1440, 1
        %v1447 = vrot.slane %v1441, 1
        %v1448 = vsel %vm264, %v1446, %v1447
        %v1449 = vrot.slane %v1442, 1
        %v1450 = vsel %vm264, %v1447, %v1449
        %v1451 = vsel %vm270, %v1448, 0
        %v1453 = vsel %vm270, %v1450, 0
        %1455 = vmatprep.subr.mxu0 %v226
        %1456 = vmatpush1.msra.mxu0 %v225
        %1457 = vmatprep.subr.mxu0 %v230
        %1458 = vmatpush1.msra.mxu0 %v229
        %1459 = vmatprep.subr.mxu0 %v234
        %1460 = vmatpush1.msra.mxu0 %v233
        %1461 = vmatprep.subr.mxu0 %v238
        %1462 = vmatpush1.msra.mxu0 %v237
        %1463 = vmatprep.subr.mxu0 %v242
        %1464 = vmatpush1.msra.mxu0 %v241
        %1465 = vmatprep.subr.mxu0 %v246
        %1466 = vmatpush1.msra.mxu0 %v245
        %1467 = vmatprep.subr.mxu0 %v250
        %1468 = vmatpush1.msra.mxu0 %v249
        %1469 = vmatprep.subr.mxu0 %v254
        %1470 = vmatpush1.msra.mxu0 %v253
        %1471 = vmatprep.subr.mxu0 %v258
        %1472 = vmatpush1.msra.mxu0 %v257
        %1473 = vmatprep.subr.mxu0 0.0
        %1474 = vmatpush1.msra.mxu0 0.0
        %1475 = vmatprep.subr.mxu0 0.0
        %1476 = vmatpush1.msra.mxu0 0.0
        %1477 = vmatprep.subr.mxu0 0.0
        %1478 = vmatpush1.msra.mxu0 0.0
        %1479 = vmatprep.subr.mxu0 0.0
        %1480 = vmatpush1.msra.mxu0 0.0
        %1481 = vmatprep.subr.mxu0 0.0
        %1482 = vmatpush1.msra.mxu0 0.0
        %1483 = vmatprep.subr.mxu0 0.0
        %1484 = vmatpush1.msra.mxu0 0.0
        %1485 = vmatprep.subr.mxu0 0.0
        %1486 = vmatpush1.msra.mxu0 0.0
        %1487 = vmatprep.subr.mxu0 0.0
        %1488 = vmatpush1.msra.mxu0 0.0
        %1489 = vmatprep.subr.mxu0 0.0
        %1490 = vmatpush1.msra.mxu0 0.0
        %1491 = vmatprep.subr.mxu0 0.0
        %1492 = vmatpush1.msra.mxu0 0.0
        %1493 = vmatprep.subr.mxu0 0.0
        %1494 = vmatpush1.msra.mxu0 0.0
        %1495 = vmatprep.subr.mxu0 0.0
        %1496 = vmatpush1.msra.mxu0 0.0
        %1497 = vmatprep.subr.mxu0 0.0
        %1498 = vmatpush1.msra.mxu0 0.0
        %1499 = vmatprep.subr.mxu0 0.0
        %1500 = vmatpush1.msra.mxu0 0.0
        %1501 = vmatprep.subr.mxu0 0.0
        %1502 = vmatpush1.msra.mxu0 0.0
        %1503 = vmatprep.subr.mxu0 0.0
        %1504 = vmatpush1.msra.mxu0 0.0
        %1505 = vmatprep.subr.mxu0 0.0
        %1506 = vmatpush1.msra.mxu0 0.0
        %1507 = vmatprep.subr.mxu0 0.0
        %1508 = vmatpush1.msra.mxu0 0.0
        %1509 = vmatprep.subr.mxu0 0.0
        %1510 = vmatpush1.msra.mxu0 0.0
        %1511 = vmatprep.subr.mxu0 0.0
        %1512 = vmatpush1.msra.mxu0 0.0
        %1513 = vmatprep.subr.mxu0 0.0
        %1514 = vmatpush1.msra.mxu0 0.0
        %1515 = vmatprep.subr.mxu0 0.0
        %1516 = vmatpush1.msra.mxu0 0.0
        %1517 = vmatprep.subr.mxu0 0.0
        %1518 = vmatpush1.msra.mxu0 0.0
        %1519 = vmatprep.mubr.f32.mxu0 0.0
        %1520 = vmatmul.mubr.f32.gmra.mrb[0].mxu0 %v1451
        %v1521 = vpop.f32.mrb[0].mxu0
        %v1522 = vadd.f32 0.0, %v1521
        %v1523 = vpop.f32.mrb[0].mxu0
        %v1524 = vadd.f32 0.0, %v1523
        %1525 = vmatprep.mubr.f32.mxu0 0.0
        %1526 = vmatmul.mubr.f32.gmra.mrb[0].mxu0 %v1453
        %v1527 = vpop.f32.mrb[0].mxu0
        %v1528 = vadd.f32 0.0, %v1527
        %v1529 = vpop.f32.mrb[0].mxu0
        %v1530 = vadd.f32 0.0, %v1529
        %1531 = vdwg.mxu0
        %1532 = vmatprep.subr.mxu0 %v228
        %1533 = vmatpush1.msra.mxu0 %v227
        %1534 = vmatprep.subr.mxu0 %v232
        %1535 = vmatpush1.msra.mxu0 %v231
        %1536 = vmatprep.subr.mxu0 %v236
        %1537 = vmatpush1.msra.mxu0 %v235
        %1538 = vmatprep.subr.mxu0 %v240
        %1539 = vmatpush1.msra.mxu0 %v239
        %1540 = vmatprep.subr.mxu0 %v244
        %1541 = vmatpush1.msra.mxu0 %v243
        %1542 = vmatprep.subr.mxu0 %v248
        %1543 = vmatpush1.msra.mxu0 %v247
        %1544 = vmatprep.subr.mxu0 %v252
        %1545 = vmatpush1.msra.mxu0 %v251
        %1546 = vmatprep.subr.mxu0 %v256
        %1547 = vmatpush1.msra.mxu0 %v255
        %1548 = vmatprep.subr.mxu0 %v260
        %1549 = vmatpush1.msra.mxu0 %v259
        %1550 = vmatprep.subr.mxu0 0.0
        %1551 = vmatpush1.msra.mxu0 0.0
        %1552 = vmatprep.subr.mxu0 0.0
        %1553 = vmatpush1.msra.mxu0 0.0
        %1554 = vmatprep.subr.mxu0 0.0
        %1555 = vmatpush1.msra.mxu0 0.0
        %1556 = vmatprep.subr.mxu0 0.0
        %1557 = vmatpush1.msra.mxu0 0.0
        %1558 = vmatprep.subr.mxu0 0.0
        %1559 = vmatpush1.msra.mxu0 0.0
        %1560 = vmatprep.subr.mxu0 0.0
        %1561 = vmatpush1.msra.mxu0 0.0
        %1562 = vmatprep.subr.mxu0 0.0
        %1563 = vmatpush1.msra.mxu0 0.0
        %1564 = vmatprep.subr.mxu0 0.0
        %1565 = vmatpush1.msra.mxu0 0.0
        %1566 = vmatprep.subr.mxu0 0.0
        %1567 = vmatpush1.msra.mxu0 0.0
        %1568 = vmatprep.subr.mxu0 0.0
        %1569 = vmatpush1.msra.mxu0 0.0
        %1570 = vmatprep.subr.mxu0 0.0
        %1571 = vmatpush1.msra.mxu0 0.0
        %1572 = vmatprep.subr.mxu0 0.0
        %1573 = vmatpush1.msra.mxu0 0.0
        %1574 = vmatprep.subr.mxu0 0.0
        %1575 = vmatpush1.msra.mxu0 0.0
        %1576 = vmatprep.subr.mxu0 0.0
        %1577 = vmatpush1.msra.mxu0 0.0
        %1578 = vmatprep.subr.mxu0 0.0
        %1579 = vmatpush1.msra.mxu0 0.0
        %1580 = vmatprep.subr.mxu0 0.0
        %1581 = vmatpush1.msra.mxu0 0.0
        %1582 = vmatprep.subr.mxu0 0.0
        %1583 = vmatpush1.msra.mxu0 0.0
        %1584 = vmatprep.subr.mxu0 0.0
        %1585 = vmatpush1.msra.mxu0 0.0
        %1586 = vmatprep.subr.mxu0 0.0
        %1587 = vmatpush1.msra.mxu0 0.0
        %1588 = vmatprep.subr.mxu0 0.0
        %1589 = vmatpush1.msra.mxu0 0.0
        %1590 = vmatprep.subr.mxu0 0.0
        %1591 = vmatpush1.msra.mxu0 0.0
        %1592 = vmatprep.subr.mxu0 0.0
        %1593 = vmatpush1.msra.mxu0 0.0
        %1594 = vmatprep.subr.mxu0 0.0
        %1595 = vmatpush1.msra.mxu0 0.0
        %1596 = vmatprep.mubr.f32.mxu0 0.0
        %1597 = vmatmul.mubr.f32.gmra.mrb[0].mxu0 %v1451
        %v1598 = vpop.f32.mrb[0].mxu0
        %v1599 = vadd.f32 0.0, %v1598
        %v1600 = vpop.f32.mrb[0].mxu0
        %v1601 = vadd.f32 0.0, %v1600
        %1602 = vmatprep.mubr.f32.mxu0 0.0
        %1603 = vmatmul.mubr.f32.gmra.mrb[0].mxu0 %v1453
        %v1604 = vpop.f32.mrb[0].mxu0
        %v1605 = vadd.f32 0.0, %v1604
        %v1606 = vpop.f32.mrb[0].mxu0
        %v1607 = vadd.f32 0.0, %v1606
        %1608 = vdwg.mxu0
        %v1609 = vsel %vm270, %v1440, 0
        %v1611 = vsel %vm270, %v1441, 0
        %1613 = vmatprep.subr.mxu0 %v189
        %1614 = vmatpush1.msra.mxu0 %v188
        %1615 = vmatprep.subr.mxu0 %v193
        %1616 = vmatpush1.msra.mxu0 %v192
        %1617 = vmatprep.subr.mxu0 %v197
        %1618 = vmatpush1.msra.mxu0 %v196
        %1619 = vmatprep.subr.mxu0 %v201
        %1620 = vmatpush1.msra.mxu0 %v200
        %1621 = vmatprep.subr.mxu0 %v205
        %1622 = vmatpush1.msra.mxu0 %v204
        %1623 = vmatprep.subr.mxu0 %v209
        %1624 = vmatpush1.msra.mxu0 %v208
        %1625 = vmatprep.subr.mxu0 %v213
        %1626 = vmatpush1.msra.mxu0 %v212
        %1627 = vmatprep.subr.mxu0 %v217
        %1628 = vmatpush1.msra.mxu0 %v216
        %1629 = vmatprep.subr.mxu0 %v221
        %1630 = vmatpush1.msra.mxu0 %v220
        %1631 = vmatprep.subr.mxu0 0.0
        %1632 = vmatpush1.msra.mxu0 0.0
        %1633 = vmatprep.subr.mxu0 0.0
        %1634 = vmatpush1.msra.mxu0 0.0
        %1635 = vmatprep.subr.mxu0 0.0
        %1636 = vmatpush1.msra.mxu0 0.0
        %1637 = vmatprep.subr.mxu0 0.0
        %1638 = vmatpush1.msra.mxu0 0.0
        %1639 = vmatprep.subr.mxu0 0.0
        %1640 = vmatpush1.msra.mxu0 0.0
        %1641 = vmatprep.subr.mxu0 0.0
        %1642 = vmatpush1.msra.mxu0 0.0
        %1643 = vmatprep.subr.mxu0 0.0
        %1644 = vmatpush1.msra.mxu0 0.0
        %1645 = vmatprep.subr.mxu0 0.0
        %1646 = vmatpush1.msra.mxu0 0.0
        %1647 = vmatprep.subr.mxu0 0.0
        %1648 = vmatpush1.msra.mxu0 0.0
        %1649 = vmatprep.subr.mxu0 0.0
        %1650 = vmatpush1.msra.mxu0 0.0
        %1651 = vmatprep.subr.mxu0 0.0
        %1652 = vmatpush1.msra.mxu0 0.0
        %1653 = vmatprep.subr.mxu0 0.0
        %1654 = vmatpush1.msra.mxu0 0.0
        %1655 = vmatprep.subr.mxu0 0.0
        %1656 = vmatpush1.msra.mxu0 0.0
        %1657 = vmatprep.subr.mxu0 0.0
        %1658 = vmatpush1.msra.mxu0 0.0
        %1659 = vmatprep.subr.mxu0 0.0
        %1660 = vmatpush1.msra.mxu0 0.0
        %1661 = vmatprep.subr.mxu0 0.0
        %1662 = vmatpush1.msra.mxu0 0.0
        %1663 = vmatprep.subr.mxu0 0.0
        %1664 = vmatpush1.msra.mxu0 0.0
        %1665 = vmatprep.subr.mxu0 0.0
        %1666 = vmatpush1.msra.mxu0 0.0
        %1667 = vmatprep.subr.mxu0 0.0
        %1668 = vmatpush1.msra.mxu0 0.0
        %1669 = vmatprep.subr.mxu0 0.0
        %1670 = vmatpush1.msra.mxu0 0.0
        %1671 = vmatprep.subr.mxu0 0.0
        %1672 = vmatpush1.msra.mxu0 0.0
        %1673 = vmatprep.subr.mxu0 0.0
        %1674 = vmatpush1.msra.mxu0 0.0
        %1675 = vmatprep.subr.mxu0 0.0
        %1676 = vmatpush1.msra.mxu0 0.0
        %1677 = vmatprep.mubr.f32.mxu0 0.0
        %1678 = vmatmul.mubr.f32.gmra.mrb[0].mxu0 %v1609
        %v1679 = vpop.f32.mrb[0].mxu0
        %v1680 = vadd.f32 %v1522, %v1679
        %v1681 = vpop.f32.mrb[0].mxu0
        %v1682 = vadd.f32 %v1524, %v1681
        %1683 = vmatprep.mubr.f32.mxu0 0.0
        %1684 = vmatmul.mubr.f32.gmra.mrb[0].mxu0 %v1611
        %v1685 = vpop.f32.mrb[0].mxu0
        %v1686 = vadd.f32 %v1528, %v1685
        %v1687 = vpop.f32.mrb[0].mxu0
        %v1688 = vadd.f32 %v1530, %v1687
        %1689 = vdwg.mxu0
        %1690 = vmatprep.subr.mxu0 %v191
        %1691 = vmatpush1.msra.mxu0 %v190
        %1692 = vmatprep.subr.mxu0 %v195
        %1693 = vmatpush1.msra.mxu0 %v194
        %1694 = vmatprep.subr.mxu0 %v199
        %1695 = vmatpush1.msra.mxu0 %v198
        %1696 = vmatprep.subr.mxu0 %v203
        %1697 = vmatpush1.msra.mxu0 %v202
        %1698 = vmatprep.subr.mxu0 %v207
        %1699 = vmatpush1.msra.mxu0 %v206
        %1700 = vmatprep.subr.mxu0 %v211
        %1701 = vmatpush1.msra.mxu0 %v210
        %1702 = vmatprep.subr.mxu0 %v215
        %1703 = vmatpush1.msra.mxu0 %v214
        %1704 = vmatprep.subr.mxu0 %v219
        %1705 = vmatpush1.msra.mxu0 %v218
        %1706 = vmatprep.subr.mxu0 %v223
        %1707 = vmatpush1.msra.mxu0 %v222
        %1708 = vmatprep.subr.mxu0 0.0
        %1709 = vmatpush1.msra.mxu0 0.0
        %1710 = vmatprep.subr.mxu0 0.0
        %1711 = vmatpush1.msra.mxu0 0.0
        %1712 = vmatprep.subr.mxu0 0.0
        %1713 = vmatpush1.msra.mxu0 0.0
        %1714 = vmatprep.subr.mxu0 0.0
        %1715 = vmatpush1.msra.mxu0 0.0
        %1716 = vmatprep.subr.mxu0 0.0
        %1717 = vmatpush1.msra.mxu0 0.0
        %1718 = vmatprep.subr.mxu0 0.0
        %1719 = vmatpush1.msra.mxu0 0.0
        %1720 = vmatprep.subr.mxu0 0.0
        %1721 = vmatpush1.msra.mxu0 0.0
        %1722 = vmatprep.subr.mxu0 0.0
        %1723 = vmatpush1.msra.mxu0 0.0
        %1724 = vmatprep.subr.mxu0 0.0
        %1725 = vmatpush1.msra.mxu0 0.0
        %1726 = vmatprep.subr.mxu0 0.0
        %1727 = vmatpush1.msra.mxu0 0.0
        %1728 = vmatprep.subr.mxu0 0.0
        %1729 = vmatpush1.msra.mxu0 0.0
        %1730 = vmatprep.subr.mxu0 0.0
        %1731 = vmatpush1.msra.mxu0 0.0
        %1732 = vmatprep.subr.mxu0 0.0
        %1733 = vmatpush1.msra.mxu0 0.0
        %1734 = vmatprep.subr.mxu0 0.0
        %1735 = vmatpush1.msra.mxu0 0.0
        %1736 = vmatprep.subr.mxu0 0.0
        %1737 = vmatpush1.msra.mxu0 0.0
        %1738 = vmatprep.subr.mxu0 0.0
        %1739 = vmatpush1.msra.mxu0 0.0
        %1740 = vmatprep.subr.mxu0 0.0
        %1741 = vmatpush1.msra.mxu0 0.0
        %1742 = vmatprep.subr.mxu0 0.0
        %1743 = vmatpush1.msra.mxu0 0.0
        %1744 = vmatprep.subr.mxu0 0.0
        %1745 = vmatpush1.msra.mxu0 0.0
        %1746 = vmatprep.subr.mxu0 0.0
        %1747 = vmatpush1.msra.mxu0 0.0
        %1748 = vmatprep.subr.mxu0 0.0
        %1749 = vmatpush1.msra.mxu0 0.0
        %1750 = vmatprep.subr.mxu0 0.0
        %1751 = vmatpush1.msra.mxu0 0.0
        %1752 = vmatprep.subr.mxu0 0.0
        %1753 = vmatpush1.msra.mxu0 0.0
        %1754 = vmatprep.mubr.f32.mxu0 0.0
        %1755 = vmatmul.mubr.f32.gmra.mrb[0].mxu0 %v1609
        %v1756 = vpop.f32.mrb[0].mxu0
        %v1757 = vadd.f32 %v1599, %v1756
        %v1758 = vpop.f32.mrb[0].mxu0
        %v1759 = vadd.f32 %v1601, %v1758
        %1760 = vmatprep.mubr.f32.mxu0 0.0
        %1761 = vmatmul.mubr.f32.gmra.mrb[0].mxu0 %v1611
        %v1762 = vpop.f32.mrb[0].mxu0
        %v1763 = vadd.f32 %v1605, %v1762
        %v1764 = vpop.f32.mrb[0].mxu0
        %v1765 = vadd.f32 %v1607, %v1764
        %1766 = vdwg.mxu0
        %v1767 = vrot.slane %v1440, 2
        %v1768 = vrot.slane %v1441, 2
        %v1769 = vsel %vm624, %v1767, %v1768
        %v1770 = vrot.slane %v1442, 2
        %v1771 = vsel %vm624, %v1768, %v1770
        %v1772 = vsel %vm270, %v1769, 0
        %v1774 = vsel %vm270, %v1771, 0
        %1776 = vmatprep.subr.mxu0 %v589
        %1777 = vmatpush1.msra.mxu0 %v588
        %1778 = vmatprep.subr.mxu0 %v593
        %1779 = vmatpush1.msra.mxu0 %v592
        %1780 = vmatprep.subr.mxu0 %v597
        %1781 = vmatpush1.msra.mxu0 %v596
        %1782 = vmatprep.subr.mxu0 %v601
        %1783 = vmatpush1.msra.mxu0 %v600
        %1784 = vmatprep.subr.mxu0 %v605
        %1785 = vmatpush1.msra.mxu0 %v604
        %1786 = vmatprep.subr.mxu0 %v609
        %1787 = vmatpush1.msra.mxu0 %v608
        %1788 = vmatprep.subr.mxu0 %v613
        %1789 = vmatpush1.msra.mxu0 %v612
        %1790 = vmatprep.subr.mxu0 %v617
        %1791 = vmatpush1.msra.mxu0 %v616
        %1792 = vmatprep.subr.mxu0 %v621
        %1793 = vmatpush1.msra.mxu0 %v620
        %1794 = vmatprep.subr.mxu0 0.0
        %1795 = vmatpush1.msra.mxu0 0.0
        %1796 = vmatprep.subr.mxu0 0.0
        %1797 = vmatpush1.msra.mxu0 0.0
        %1798 = vmatprep.subr.mxu0 0.0
        %1799 = vmatpush1.msra.mxu0 0.0
        %1800 = vmatprep.subr.mxu0 0.0
        %1801 = vmatpush1.msra.mxu0 0.0
        %1802 = vmatprep.subr.mxu0 0.0
        %1803 = vmatpush1.msra.mxu0 0.0
        %1804 = vmatprep.subr.mxu0 0.0
        %1805 = vmatpush1.msra.mxu0 0.0
        %1806 = vmatprep.subr.mxu0 0.0
        %1807 = vmatpush1.msra.mxu0 0.0
        %1808 = vmatprep.subr.mxu0 0.0
        %1809 = vmatpush1.msra.mxu0 0.0
        %1810 = vmatprep.subr.mxu0 0.0
        %1811 = vmatpush1.msra.mxu0 0.0
        %1812 = vmatprep.subr.mxu0 0.0
        %1813 = vmatpush1.msra.mxu0 0.0
        %1814 = vmatprep.subr.mxu0 0.0
        %1815 = vmatpush1.msra.mxu0 0.0
        %1816 = vmatprep.subr.mxu0 0.0
        %1817 = vmatpush1.msra.mxu0 0.0
        %1818 = vmatprep.subr.mxu0 0.0
        %1819 = vmatpush1.msra.mxu0 0.0
        %1820 = vmatprep.subr.mxu0 0.0
        %1821 = vmatpush1.msra.mxu0 0.0
        %1822 = vmatprep.subr.mxu0 0.0
        %1823 = vmatpush1.msra.mxu0 0.0
        %1824 = vmatprep.subr.mxu0 0.0
        %1825 = vmatpush1.msra.mxu0 0.0
        %1826 = vmatprep.subr.mxu0 0.0
        %1827 = vmatpush1.msra.mxu0 0.0
        %1828 = vmatprep.subr.mxu0 0.0
        %1829 = vmatpush1.msra.mxu0 0.0
        %1830 = vmatprep.subr.mxu0 0.0
        %1831 = vmatpush1.msra.mxu0 0.0
        %1832 = vmatprep.subr.mxu0 0.0
        %1833 = vmatpush1.msra.mxu0 0.0
        %1834 = vmatprep.subr.mxu0 0.0
        %1835 = vmatpush1.msra.mxu0 0.0
        %1836 = vmatprep.subr.mxu0 0.0
        %1837 = vmatpush1.msra.mxu0 0.0
        %1838 = vmatprep.subr.mxu0 0.0
        %1839 = vmatpush1.msra.mxu0 0.0
        %1840 = vmatprep.mubr.f32.mxu0 0.0
        %1841 = vmatmul.mubr.f32.gmra.mrb[0].mxu0 %v1772
        %v1842 = vpop.f32.mrb[0].mxu0
        %v1843 = vadd.f32 0.0, %v1842
        %v1844 = vpop.f32.mrb[0].mxu0
        %v1845 = vadd.f32 0.0, %v1844
        %1846 = vmatprep.mubr.f32.mxu0 0.0
        %1847 = vmatmul.mubr.f32.gmra.mrb[0].mxu0 %v1774
        %v1848 = vpop.f32.mrb[0].mxu0
        %v1849 = vadd.f32 0.0, %v1848
        %v1850 = vpop.f32.mrb[0].mxu0
        %v1851 = vadd.f32 0.0, %v1850
        %1852 = vdwg.mxu0
        %1853 = vmatprep.subr.mxu0 %v591
        %1854 = vmatpush1.msra.mxu0 %v590
        %1855 = vmatprep.subr.mxu0 %v595
        %1856 = vmatpush1.msra.mxu0 %v594
        %1857 = vmatprep.subr.mxu0 %v599
        %1858 = vmatpush1.msra.mxu0 %v598
        %1859 = vmatprep.subr.mxu0 %v603
        %1860 = vmatpush1.msra.mxu0 %v602
        %1861 = vmatprep.subr.mxu0 %v607
        %1862 = vmatpush1.msra.mxu0 %v606
        %1863 = vmatprep.subr.mxu0 %v611
        %1864 = vmatpush1.msra.mxu0 %v610
        %1865 = vmatprep.subr.mxu0 %v615
        %1866 = vmatpush1.msra.mxu0 %v614
        %1867 = vmatprep.subr.mxu0 %v619
        %1868 = vmatpush1.msra.mxu0 %v618
        %1869 = vmatprep.subr.mxu0 %v623
        %1870 = vmatpush1.msra.mxu0 %v622
        %1871 = vmatprep.subr.mxu0 0.0
        %1872 = vmatpush1.msra.mxu0 0.0
        %1873 = vmatprep.subr.mxu0 0.0
        %1874 = vmatpush1.msra.mxu0 0.0
        %1875 = vmatprep.subr.mxu0 0.0
        %1876 = vmatpush1.msra.mxu0 0.0
        %1877 = vmatprep.subr.mxu0 0.0
        %1878 = vmatpush1.msra.mxu0 0.0
        %1879 = vmatprep.subr.mxu0 0.0
        %1880 = vmatpush1.msra.mxu0 0.0
        %1881 = vmatprep.subr.mxu0 0.0
        %1882 = vmatpush1.msra.mxu0 0.0
        %1883 = vmatprep.subr.mxu0 0.0
        %1884 = vmatpush1.msra.mxu0 0.0
        %1885 = vmatprep.subr.mxu0 0.0
        %1886 = vmatpush1.msra.mxu0 0.0
        %1887 = vmatprep.subr.mxu0 0.0
        %1888 = vmatpush1.msra.mxu0 0.0
        %1889 = vmatprep.subr.mxu0 0.0
        %1890 = vmatpush1.msra.mxu0 0.0
        %1891 = vmatprep.subr.mxu0 0.0
        %1892 = vmatpush1.msra.mxu0 0.0
        %1893 = vmatprep.subr.mxu0 0.0
        %1894 = vmatpush1.msra.mxu0 0.0
        %1895 = vmatprep.subr.mxu0 0.0
        %1896 = vmatpush1.msra.mxu0 0.0
        %1897 = vmatprep.subr.mxu0 0.0
        %1898 = vmatpush1.msra.mxu0 0.0
        %1899 = vmatprep.subr.mxu0 0.0
        %1900 = vmatpush1.msra.mxu0 0.0
        %1901 = vmatprep.subr.mxu0 0.0
        %1902 = vmatpush1.msra.mxu0 0.0
        %1903 = vmatprep.subr.mxu0 0.0
        %1904 = vmatpush1.msra.mxu0 0.0
        %1905 = vmatprep.subr.mxu0 0.0
        %1906 = vmatpush1.msra.mxu0 0.0
        %1907 = vmatprep.subr.mxu0 0.0
        %1908 = vmatpush1.msra.mxu0 0.0
        %1909 = vmatprep.subr.mxu0 0.0
        %1910 = vmatpush1.msra.mxu0 0.0
        %1911 = vmatprep.subr.mxu0 0.0
        %1912 = vmatpush1.msra.mxu0 0.0
        %1913 = vmatprep.subr.mxu0 0.0
        %1914 = vmatpush1.msra.mxu0 0.0
        %1915 = vmatprep.subr.mxu0 0.0
        %1916 = vmatpush1.msra.mxu0 0.0
        %1917 = vmatprep.mubr.f32.mxu0 0.0
        %1918 = vmatmul.mubr.f32.gmra.mrb[0].mxu0 %v1772
        %v1919 = vpop.f32.mrb[0].mxu0
        %v1920 = vadd.f32 0.0, %v1919
        %v1921 = vpop.f32.mrb[0].mxu0
        %v1922 = vadd.f32 0.0, %v1921
        %1923 = vmatprep.mubr.f32.mxu0 0.0
        %1924 = vmatmul.mubr.f32.gmra.mrb[0].mxu0 %v1774
        %v1925 = vpop.f32.mrb[0].mxu0
        %v1926 = vadd.f32 0.0, %v1925
        %v1927 = vpop.f32.mrb[0].mxu0
        %v1928 = vadd.f32 0.0, %v1927
        %1929 = vdwg.mxu0
        %v1930 = vadd.f32 %v1680, %v1843
        %v1931 = vadd.f32 %v1682, %v1845
        %v1932 = vadd.f32 %v1757, %v1920
        %v1933 = vadd.f32 %v1759, %v1922
        %v1934 = vadd.f32 %v1686, %v1849
        %v1935 = vadd.f32 %v1688, %v1851
        %v1936 = vadd.f32 %v1763, %v1926
        %v1937 = vadd.f32 %v1765, %v1928
        %v1938 = vadd.f32 %v1930, %v1934
        %v1939 = vrot.slane %v1938, 4
        %v1940 = vadd.f32 %v1938, %v1939
        %v1941 = vrot.slane %v1940, 2
        %v1942 = vadd.f32 %v1940, %v1941
        %v1943 = vrot.slane %v1942, 1
        %v1944 = vadd.f32 %v1942, %v1943
        %v1945 = vadd.f32 %v1931, %v1935
        %v1946 = vrot.slane %v1945, 4
        %v1947 = vadd.f32 %v1945, %v1946
        %v1948 = vrot.slane %v1947, 2
        %v1949 = vadd.f32 %v1947, %v1948
        %v1950 = vrot.slane %v1949, 1
        %v1951 = vadd.f32 %v1949, %v1950
        %v1952 = vadd.f32 %v1932, %v1936
        %v1953 = vrot.slane %v1952, 4
        %v1954 = vadd.f32 %v1952, %v1953
        %v1955 = vrot.slane %v1954, 2
        %v1956 = vadd.f32 %v1954, %v1955
        %v1957 = vrot.slane %v1956, 1
        %v1958 = vadd.f32 %v1956, %v1957
        %v1959 = vadd.f32 %v1933, %v1937
        %v1960 = vrot.slane %v1959, 4
        %v1961 = vadd.f32 %v1959, %v1960
        %v1962 = vrot.slane %v1961, 2
        %v1963 = vadd.f32 %v1961, %v1962
        %v1964 = vrot.slane %v1963, 1
        %v1965 = vadd.f32 %v1963, %v1964
        %v1966 = vadd.f32 %v1395, %v1944
        %v1967 = vadd.f32 %v1396, %v1951
        %v1968 = vadd.f32 %v1397, %v1958
        %v1969 = vadd.f32 %v1398, %v1965
        %v1970 = vmul.f32 %v1930, %v1930
        %v1971 = vmul.f32 %v1931, %v1931
        %v1972 = vmul.f32 %v1932, %v1932
        %v1973 = vmul.f32 %v1933, %v1933
        %v1974 = vmul.f32 %v1934, %v1934
        %v1975 = vmul.f32 %v1935, %v1935
        %v1976 = vmul.f32 %v1936, %v1936
        %v1977 = vmul.f32 %v1937, %v1937
        %v1978 = vadd.f32 %v1970, %v1974
        %v1979 = vrot.slane %v1978, 4
        %v1980 = vadd.f32 %v1978, %v1979
        %v1981 = vrot.slane %v1980, 2
        %v1982 = vadd.f32 %v1980, %v1981
        %v1983 = vrot.slane %v1982, 1
        %v1984 = vadd.f32 %v1982, %v1983
        %v1985 = vadd.f32 %v1971, %v1975
        %v1986 = vrot.slane %v1985, 4
        %v1987 = vadd.f32 %v1985, %v1986
        %v1988 = vrot.slane %v1987, 2
        %v1989 = vadd.f32 %v1987, %v1988
        %v1990 = vrot.slane %v1989, 1
        %v1991 = vadd.f32 %v1989, %v1990
        %v1992 = vadd.f32 %v1972, %v1976
        %v1993 = vrot.slane %v1992, 4
        %v1994 = vadd.f32 %v1992, %v1993
        %v1995 = vrot.slane %v1994, 2
        %v1996 = vadd.f32 %v1994, %v1995
        %v1997 = vrot.slane %v1996, 1
        %v1998 = vadd.f32 %v1996, %v1997
        %v1999 = vadd.f32 %v1973, %v1977
        %v2000 = vrot.slane %v1999, 4
        %v2001 = vadd.f32 %v1999, %v2000
        %v2002 = vrot.slane %v2001, 2
        %v2003 = vadd.f32 %v2001, %v2002
        %v2004 = vrot.slane %v2003, 1
        %v2005 = vadd.f32 %v2003, %v2004
        %v2006 = vadd.f32 %v1435, %v1984
        %v2007 = vadd.f32 %v1436, %v1991
        %v2008 = vadd.f32 %v1437, %v1998
        %v2009 = vadd.f32 %v1438, %v2005
        %s2010 = scalar_lea.vmem %s183, 72
        %v2011 = vld [vmem:[%s2010] sm:$0xff]
        %v2012 = vld [vmem:[%s2010 + $0x8] sm:$0xff]
        %v2013 = vld [vmem:[%s2010 + $0x10] sm:$0x3]
        %v2017 = vrot.slane %v2011, 1
        %v2018 = vrot.slane %v2012, 1
        %v2019 = vsel %vm264, %v2017, %v2018
        %v2020 = vrot.slane %v2013, 1
        %v2021 = vsel %vm264, %v2018, %v2020
        %v2022 = vsel %vm270, %v2019, 0
        %v2024 = vsel %vm270, %v2021, 0
        %2026 = vmatprep.subr.mxu0 %v226
        %2027 = vmatpush1.msra.mxu0 %v225
        %2028 = vmatprep.subr.mxu0 %v230
        %2029 = vmatpush1.msra.mxu0 %v229
        %2030 = vmatprep.subr.mxu0 %v234
        %2031 = vmatpush1.msra.mxu0 %v233
        %2032 = vmatprep.subr.mxu0 %v238
        %2033 = vmatpush1.msra.mxu0 %v237
        %2034 = vmatprep.subr.mxu0 %v242
        %2035 = vmatpush1.msra.mxu0 %v241
        %2036 = vmatprep.subr.mxu0 %v246
        %2037 = vmatpush1.msra.mxu0 %v245
        %2038 = vmatprep.subr.mxu0 %v250
        %2039 = vmatpush1.msra.mxu0 %v249
        %2040 = vmatprep.subr.mxu0 %v254
        %2041 = vmatpush1.msra.mxu0 %v253
        %2042 = vmatprep.subr.mxu0 %v258
        %2043 = vmatpush1.msra.mxu0 %v257
        %2044 = vmatprep.subr.mxu0 0.0
        %2045 = vmatpush1.msra.mxu0 0.0
        %2046 = vmatprep.subr.mxu0 0.0
        %2047 = vmatpush1.msra.mxu0 0.0
        %2048 = vmatprep.subr.mxu0 0.0
        %2049 = vmatpush1.msra.mxu0 0.0
        %2050 = vmatprep.subr.mxu0 0.0
        %2051 = vmatpush1.msra.mxu0 0.0
        %2052 = vmatprep.subr.mxu0 0.0
        %2053 = vmatpush1.msra.mxu0 0.0
        %2054 = vmatprep.subr.mxu0 0.0
        %2055 = vmatpush1.msra.mxu0 0.0
        %2056 = vmatprep.subr.mxu0 0.0
        %2057 = vmatpush1.msra.mxu0 0.0
        %2058 = vmatprep.subr.mxu0 0.0
        %2059 = vmatpush1.msra.mxu0 0.0
        %2060 = vmatprep.subr.mxu0 0.0
        %2061 = vmatpush1.msra.mxu0 0.0
        %2062 = vmatprep.subr.mxu0 0.0
        %2063 = vmatpush1.msra.mxu0 0.0
        %2064 = vmatprep.subr.mxu0 0.0
        %2065 = vmatpush1.msra.mxu0 0.0
        %2066 = vmatprep.subr.mxu0 0.0
        %2067 = vmatpush1.msra.mxu0 0.0
        %2068 = vmatprep.subr.mxu0 0.0
        %2069 = vmatpush1.msra.mxu0 0.0
        %2070 = vmatprep.subr.mxu0 0.0
        %2071 = vmatpush1.msra.mxu0 0.0
        %2072 = vmatprep.subr.mxu0 0.0
        %2073 = vmatpush1.msra.mxu0 0.0
        %2074 = vmatprep.subr.mxu0 0.0
        %2075 = vmatpush1.msra.mxu0 0.0
        %2076 = vmatprep.subr.mxu0 0.0
        %2077 = vmatpush1.msra.mxu0 0.0
        %2078 = vmatprep.subr.mxu0 0.0
        %2079 = vmatpush1.msra.mxu0 0.0
        %2080 = vmatprep.subr.mxu0 0.0
        %2081 = vmatpush1.msra.mxu0 0.0
        %2082 = vmatprep.subr.mxu0 0.0
        %2083 = vmatpush1.msra.mxu0 0.0
        %2084 = vmatprep.subr.mxu0 0.0
        %2085 = vmatpush1.msra.mxu0 0.0
        %2086 = vmatprep.subr.mxu0 0.0
        %2087 = vmatpush1.msra.mxu0 0.0
        %2088 = vmatprep.subr.mxu0 0.0
        %2089 = vmatpush1.msra.mxu0 0.0
        %2090 = vmatprep.mubr.f32.mxu0 0.0
        %2091 = vmatmul.mubr.f32.gmra.mrb[0].mxu0 %v2022
        %v2092 = vpop.f32.mrb[0].mxu0
        %v2093 = vadd.f32 0.0, %v2092
        %v2094 = vpop.f32.mrb[0].mxu0
        %v2095 = vadd.f32 0.0, %v2094
        %2096 = vmatprep.mubr.f32.mxu0 0.0
        %2097 = vmatmul.mubr.f32.gmra.mrb[0].mxu0 %v2024
        %v2098 = vpop.f32.mrb[0].mxu0
        %v2099 = vadd.f32 0.0, %v2098
        %v2100 = vpop.f32.mrb[0].mxu0
        %v2101 = vadd.f32 0.0, %v2100
        %2102 = vdwg.mxu0
        %2103 = vmatprep.subr.mxu0 %v228
        %2104 = vmatpush1.msra.mxu0 %v227
        %2105 = vmatprep.subr.mxu0 %v232
        %2106 = vmatpush1.msra.mxu0 %v231
        %2107 = vmatprep.subr.mxu0 %v236
        %2108 = vmatpush1.msra.mxu0 %v235
        %2109 = vmatprep.subr.mxu0 %v240
        %2110 = vmatpush1.msra.mxu0 %v239
        %2111 = vmatprep.subr.mxu0 %v244
        %2112 = vmatpush1.msra.mxu0 %v243
        %2113 = vmatprep.subr.mxu0 %v248
        %2114 = vmatpush1.msra.mxu0 %v247
        %2115 = vmatprep.subr.mxu0 %v252
        %2116 = vmatpush1.msra.mxu0 %v251
        %2117 = vmatprep.subr.mxu0 %v256
        %2118 = vmatpush1.msra.mxu0 %v255
        %2119 = vmatprep.subr.mxu0 %v260
        %2120 = vmatpush1.msra.mxu0 %v259
        %2121 = vmatprep.subr.mxu0 0.0
        %2122 = vmatpush1.msra.mxu0 0.0
        %2123 = vmatprep.subr.mxu0 0.0
        %2124 = vmatpush1.msra.mxu0 0.0
        %2125 = vmatprep.subr.mxu0 0.0
        %2126 = vmatpush1.msra.mxu0 0.0
        %2127 = vmatprep.subr.mxu0 0.0
        %2128 = vmatpush1.msra.mxu0 0.0
        %2129 = vmatprep.subr.mxu0 0.0
        %2130 = vmatpush1.msra.mxu0 0.0
        %2131 = vmatprep.subr.mxu0 0.0
        %2132 = vmatpush1.msra.mxu0 0.0
        %2133 = vmatprep.subr.mxu0 0.0
        %2134 = vmatpush1.msra.mxu0 0.0
        %2135 = vmatprep.subr.mxu0 0.0
        %2136 = vmatpush1.msra.mxu0 0.0
        %2137 = vmatprep.subr.mxu0 0.0
        %2138 = vmatpush1.msra.mxu0 0.0
        %2139 = vmatprep.subr.mxu0 0.0
        %2140 = vmatpush1.msra.mxu0 0.0
        %2141 = vmatprep.subr.mxu0 0.0
        %2142 = vmatpush1.msra.mxu0 0.0
        %2143 = vmatprep.subr.mxu0 0.0
        %2144 = vmatpush1.msra.mxu0 0.0
        %2145 = vmatprep.subr.mxu0 0.0
        %2146 = vmatpush1.msra.mxu0 0.0
        %2147 = vmatprep.subr.mxu0 0.0
        %2148 = vmatpush1.msra.mxu0 0.0
        %2149 = vmatprep.subr.mxu0 0.0
        %2150 = vmatpush1.msra.mxu0 0.0
        %2151 = vmatprep.subr.mxu0 0.0
        %2152 = vmatpush1.msra.mxu0 0.0
        %2153 = vmatprep.subr.mxu0 0.0
        %2154 = vmatpush1.msra.mxu0 0.0
        %2155 = vmatprep.subr.mxu0 0.0
        %2156 = vmatpush1.msra.mxu0 0.0
        %2157 = vmatprep.subr.mxu0 0.0
        %2158 = vmatpush1.msra.mxu0 0.0
        %2159 = vmatprep.subr.mxu0 0.0
        %2160 = vmatpush1.msra.mxu0 0.0
        %2161 = vmatprep.subr.mxu0 0.0
        %2162 = vmatpush1.msra.mxu0 0.0
        %2163 = vmatprep.subr.mxu0 0.0
        %2164 = vmatpush1.msra.mxu0 0.0
        %2165 = vmatprep.subr.mxu0 0.0
        %2166 = vmatpush1.msra.mxu0 0.0
        %2167 = vmatprep.mubr.f32.mxu0 0.0
        %2168 = vmatmul.mubr.f32.gmra.mrb[0].mxu0 %v2022
        %v2169 = vpop.f32.mrb[0].mxu0
        %v2170 = vadd.f32 0.0, %v2169
        %v2171 = vpop.f32.mrb[0].mxu0
        %v2172 = vadd.f32 0.0, %v2171
        %2173 = vmatprep.mubr.f32.mxu0 0.0
        %2174 = vmatmul.mubr.f32.gmra.mrb[0].mxu0 %v2024
        %v2175 = vpop.f32.mrb[0].mxu0
        %v2176 = vadd.f32 0.0, %v2175
        %v2177 = vpop.f32.mrb[0].mxu0
        %v2178 = vadd.f32 0.0, %v2177
        %2179 = vdwg.mxu0
        %v2180 = vsel %vm270, %v2011, 0
        %v2182 = vsel %vm270, %v2012, 0
        %2184 = vmatprep.subr.mxu0 %v189
        %2185 = vmatpush1.msra.mxu0 %v188
        %2186 = vmatprep.subr.mxu0 %v193
        %2187 = vmatpush1.msra.mxu0 %v192
        %2188 = vmatprep.subr.mxu0 %v197
        %2189 = vmatpush1.msra.mxu0 %v196
        %2190 = vmatprep.subr.mxu0 %v201
        %2191 = vmatpush1.msra.mxu0 %v200
        %2192 = vmatprep.subr.mxu0 %v205
        %2193 = vmatpush1.msra.mxu0 %v204
        %2194 = vmatprep.subr.mxu0 %v209
        %2195 = vmatpush1.msra.mxu0 %v208
        %2196 = vmatprep.subr.mxu0 %v213
        %2197 = vmatpush1.msra.mxu0 %v212
        %2198 = vmatprep.subr.mxu0 %v217
        %2199 = vmatpush1.msra.mxu0 %v216
        %2200 = vmatprep.subr.mxu0 %v221
        %2201 = vmatpush1.msra.mxu0 %v220
        %2202 = vmatprep.subr.mxu0 0.0
        %2203 = vmatpush1.msra.mxu0 0.0
        %2204 = vmatprep.subr.mxu0 0.0
        %2205 = vmatpush1.msra.mxu0 0.0
        %2206 = vmatprep.subr.mxu0 0.0
        %2207 = vmatpush1.msra.mxu0 0.0
        %2208 = vmatprep.subr.mxu0 0.0
        %2209 = vmatpush1.msra.mxu0 0.0
        %2210 = vmatprep.subr.mxu0 0.0
        %2211 = vmatpush1.msra.mxu0 0.0
        %2212 = vmatprep.subr.mxu0 0.0
        %2213 = vmatpush1.msra.mxu0 0.0
        %2214 = vmatprep.subr.mxu0 0.0
        %2215 = vmatpush1.msra.mxu0 0.0
        %2216 = vmatprep.subr.mxu0 0.0
        %2217 = vmatpush1.msra.mxu0 0.0
        %2218 = vmatprep.subr.mxu0 0.0
        %2219 = vmatpush1.msra.mxu0 0.0
        %2220 = vmatprep.subr.mxu0 0.0
        %2221 = vmatpush1.msra.mxu0 0.0
        %2222 = vmatprep.subr.mxu0 0.0
        %2223 = vmatpush1.msra.mxu0 0.0
        %2224 = vmatprep.subr.mxu0 0.0
        %2225 = vmatpush1.msra.mxu0 0.0
        %2226 = vmatprep.subr.mxu0 0.0
        %2227 = vmatpush1.msra.mxu0 0.0
        %2228 = vmatprep.subr.mxu0 0.0
        %2229 = vmatpush1.msra.mxu0 0.0
        %2230 = vmatprep.subr.mxu0 0.0
        %2231 = vmatpush1.msra.mxu0 0.0
        %2232 = vmatprep.subr.mxu0 0.0
        %2233 = vmatpush1.msra.mxu0 0.0
        %2234 = vmatprep.subr.mxu0 0.0
        %2235 = vmatpush1.msra.mxu0 0.0
        %2236 = vmatprep.subr.mxu0 0.0
        %2237 = vmatpush1.msra.mxu0 0.0
        %2238 = vmatprep.subr.mxu0 0.0
        %2239 = vmatpush1.msra.mxu0 0.0
        %2240 = vmatprep.subr.mxu0 0.0
        %2241 = vmatpush1.msra.mxu0 0.0
        %2242 = vmatprep.subr.mxu0 0.0
        %2243 = vmatpush1.msra.mxu0 0.0
        %2244 = vmatprep.subr.mxu0 0.0
        %2245 = vmatpush1.msra.mxu0 0.0
        %2246 = vmatprep.subr.mxu0 0.0
        %2247 = vmatpush1.msra.mxu0 0.0
        %2248 = vmatprep.mubr.f32.mxu0 0.0
        %2249 = vmatmul.mubr.f32.gmra.mrb[0].mxu0 %v2180
        %v2250 = vpop.f32.mrb[0].mxu0
        %v2251 = vadd.f32 %v2093, %v2250
        %v2252 = vpop.f32.mrb[0].mxu0
        %v2253 = vadd.f32 %v2095, %v2252
        %2254 = vmatprep.mubr.f32.mxu0 0.0
        %2255 = vmatmul.mubr.f32.gmra.mrb[0].mxu0 %v2182
        %v2256 = vpop.f32.mrb[0].mxu0
        %v2257 = vadd.f32 %v2099, %v2256
        %v2258 = vpop.f32.mrb[0].mxu0
        %v2259 = vadd.f32 %v2101, %v2258
        %2260 = vdwg.mxu0
        %2261 = vmatprep.subr.mxu0 %v191
        %2262 = vmatpush1.msra.mxu0 %v190
        %2263 = vmatprep.subr.mxu0 %v195
        %2264 = vmatpush1.msra.mxu0 %v194
        %2265 = vmatprep.subr.mxu0 %v199
        %2266 = vmatpush1.msra.mxu0 %v198
        %2267 = vmatprep.subr.mxu0 %v203
        %2268 = vmatpush1.msra.mxu0 %v202
        %2269 = vmatprep.subr.mxu0 %v207
        %2270 = vmatpush1.msra.mxu0 %v206
        %2271 = vmatprep.subr.mxu0 %v211
        %2272 = vmatpush1.msra.mxu0 %v210
        %2273 = vmatprep.subr.mxu0 %v215
        %2274 = vmatpush1.msra.mxu0 %v214
        %2275 = vmatprep.subr.mxu0 %v219
        %2276 = vmatpush1.msra.mxu0 %v218
        %2277 = vmatprep.subr.mxu0 %v223
        %2278 = vmatpush1.msra.mxu0 %v222
        %2279 = vmatprep.subr.mxu0 0.0
        %2280 = vmatpush1.msra.mxu0 0.0
        %2281 = vmatprep.subr.mxu0 0.0
        %2282 = vmatpush1.msra.mxu0 0.0
        %2283 = vmatprep.subr.mxu0 0.0
        %2284 = vmatpush1.msra.mxu0 0.0
        %2285 = vmatprep.subr.mxu0 0.0
        %2286 = vmatpush1.msra.mxu0 0.0
        %2287 = vmatprep.subr.mxu0 0.0
        %2288 = vmatpush1.msra.mxu0 0.0
        %2289 = vmatprep.subr.mxu0 0.0
        %2290 = vmatpush1.msra.mxu0 0.0
        %2291 = vmatprep.subr.mxu0 0.0
        %2292 = vmatpush1.msra.mxu0 0.0
        %2293 = vmatprep.subr.mxu0 0.0
        %2294 = vmatpush1.msra.mxu0 0.0
        %2295 = vmatprep.subr.mxu0 0.0
        %2296 = vmatpush1.msra.mxu0 0.0
        %2297 = vmatprep.subr.mxu0 0.0
        %2298 = vmatpush1.msra.mxu0 0.0
        %2299 = vmatprep.subr.mxu0 0.0
        %2300 = vmatpush1.msra.mxu0 0.0
        %2301 = vmatprep.subr.mxu0 0.0
        %2302 = vmatpush1.msra.mxu0 0.0
        %2303 = vmatprep.subr.mxu0 0.0
        %2304 = vmatpush1.msra.mxu0 0.0
        %2305 = vmatprep.subr.mxu0 0.0
        %2306 = vmatpush1.msra.mxu0 0.0
        %2307 = vmatprep.subr.mxu0 0.0
        %2308 = vmatpush1.msra.mxu0 0.0
        %2309 = vmatprep.subr.mxu0 0.0
        %2310 = vmatpush1.msra.mxu0 0.0
        %2311 = vmatprep.subr.mxu0 0.0
        %2312 = vmatpush1.msra.mxu0 0.0
        %2313 = vmatprep.subr.mxu0 0.0
        %2314 = vmatpush1.msra.mxu0 0.0
        %2315 = vmatprep.subr.mxu0 0.0
        %2316 = vmatpush1.msra.mxu0 0.0
        %2317 = vmatprep.subr.mxu0 0.0
        %2318 = vmatpush1.msra.mxu0 0.0
        %2319 = vmatprep.subr.mxu0 0.0
        %2320 = vmatpush1.msra.mxu0 0.0
        %2321 = vmatprep.subr.mxu0 0.0
        %2322 = vmatpush1.msra.mxu0 0.0
        %2323 = vmatprep.subr.mxu0 0.0
        %2324 = vmatpush1.msra.mxu0 0.0
        %2325 = vmatprep.mubr.f32.mxu0 0.0
        %2326 = vmatmul.mubr.f32.gmra.mrb[0].mxu0 %v2180
        %v2327 = vpop.f32.mrb[0].mxu0
        %v2328 = vadd.f32 %v2170, %v2327
        %v2329 = vpop.f32.mrb[0].mxu0
        %v2330 = vadd.f32 %v2172, %v2329
        %2331 = vmatprep.mubr.f32.mxu0 0.0
        %2332 = vmatmul.mubr.f32.gmra.mrb[0].mxu0 %v2182
        %v2333 = vpop.f32.mrb[0].mxu0
        %v2334 = vadd.f32 %v2176, %v2333
        %v2335 = vpop.f32.mrb[0].mxu0
        %v2336 = vadd.f32 %v2178, %v2335
        %2337 = vdwg.mxu0
        %v2338 = vrot.slane %v2011, 2
        %v2339 = vrot.slane %v2012, 2
        %v2340 = vsel %vm624, %v2338, %v2339
        %v2341 = vrot.slane %v2013, 2
        %v2342 = vsel %vm624, %v2339, %v2341
        %v2343 = vsel %vm270, %v2340, 0
        %v2345 = vsel %vm270, %v2342, 0
        %2347 = vmatprep.subr.mxu0 %v589
        %2348 = vmatpush1.msra.mxu0 %v588
        %2349 = vmatprep.subr.mxu0 %v593
        %2350 = vmatpush1.msra.mxu0 %v592
        %2351 = vmatprep.subr.mxu0 %v597
        %2352 = vmatpush1.msra.mxu0 %v596
        %2353 = vmatprep.subr.mxu0 %v601
        %2354 = vmatpush1.msra.mxu0 %v600
        %2355 = vmatprep.subr.mxu0 %v605
        %2356 = vmatpush1.msra.mxu0 %v604
        %2357 = vmatprep.subr.mxu0 %v609
        %2358 = vmatpush1.msra.mxu0 %v608
        %2359 = vmatprep.subr.mxu0 %v613
        %2360 = vmatpush1.msra.mxu0 %v612
        %2361 = vmatprep.subr.mxu0 %v617
        %2362 = vmatpush1.msra.mxu0 %v616
        %2363 = vmatprep.subr.mxu0 %v621
        %2364 = vmatpush1.msra.mxu0 %v620
        %2365 = vmatprep.subr.mxu0 0.0
        %2366 = vmatpush1.msra.mxu0 0.0
        %2367 = vmatprep.subr.mxu0 0.0
        %2368 = vmatpush1.msra.mxu0 0.0
        %2369 = vmatprep.subr.mxu0 0.0
        %2370 = vmatpush1.msra.mxu0 0.0
        %2371 = vmatprep.subr.mxu0 0.0
        %2372 = vmatpush1.msra.mxu0 0.0
        %2373 = vmatprep.subr.mxu0 0.0
        %2374 = vmatpush1.msra.mxu0 0.0
        %2375 = vmatprep.subr.mxu0 0.0
        %2376 = vmatpush1.msra.mxu0 0.0
        %2377 = vmatprep.subr.mxu0 0.0
        %2378 = vmatpush1.msra.mxu0 0.0
        %2379 = vmatprep.subr.mxu0 0.0
        %2380 = vmatpush1.msra.mxu0 0.0
        %2381 = vmatprep.subr.mxu0 0.0
        %2382 = vmatpush1.msra.mxu0 0.0
        %2383 = vmatprep.subr.mxu0 0.0
        %2384 = vmatpush1.msra.mxu0 0.0
        %2385 = vmatprep.subr.mxu0 0.0
        %2386 = vmatpush1.msra.mxu0 0.0
        %2387 = vmatprep.subr.mxu0 0.0
        %2388 = vmatpush1.msra.mxu0 0.0
        %2389 = vmatprep.subr.mxu0 0.0
        %2390 = vmatpush1.msra.mxu0 0.0
        %2391 = vmatprep.subr.mxu0 0.0
        %2392 = vmatpush1.msra.mxu0 0.0
        %2393 = vmatprep.subr.mxu0 0.0
        %2394 = vmatpush1.msra.mxu0 0.0
        %2395 = vmatprep.subr.mxu0 0.0
        %2396 = vmatpush1.msra.mxu0 0.0
        %2397 = vmatprep.subr.mxu0 0.0
        %2398 = vmatpush1.msra.mxu0 0.0
        %2399 = vmatprep.subr.mxu0 0.0
        %2400 = vmatpush1.msra.mxu0 0.0
        %2401 = vmatprep.subr.mxu0 0.0
        %2402 = vmatpush1.msra.mxu0 0.0
        %2403 = vmatprep.subr.mxu0 0.0
        %2404 = vmatpush1.msra.mxu0 0.0
        %2405 = vmatprep.subr.mxu0 0.0
        %2406 = vmatpush1.msra.mxu0 0.0
        %2407 = vmatprep.subr.mxu0 0.0
        %2408 = vmatpush1.msra.mxu0 0.0
        %2409 = vmatprep.subr.mxu0 0.0
        %2410 = vmatpush1.msra.mxu0 0.0
        %2411 = vmatprep.mubr.f32.mxu0 0.0
        %2412 = vmatmul.mubr.f32.gmra.mrb[0].mxu0 %v2343
        %v2413 = vpop.f32.mrb[0].mxu0
        %v2414 = vadd.f32 0.0, %v2413
        %v2415 = vpop.f32.mrb[0].mxu0
        %v2416 = vadd.f32 0.0, %v2415
        %2417 = vmatprep.mubr.f32.mxu0 0.0
        %2418 = vmatmul.mubr.f32.gmra.mrb[0].mxu0 %v2345
        %v2419 = vpop.f32.mrb[0].mxu0
        %v2420 = vadd.f32 0.0, %v2419
        %v2421 = vpop.f32.mrb[0].mxu0
        %v2422 = vadd.f32 0.0, %v2421
        %2423 = vdwg.mxu0
        %2424 = vmatprep.subr.mxu0 %v591
        %2425 = vmatpush1.msra.mxu0 %v590
        %2426 = vmatprep.subr.mxu0 %v595
        %2427 = vmatpush1.msra.mxu0 %v594
        %2428 = vmatprep.subr.mxu0 %v599
        %2429 = vmatpush1.msra.mxu0 %v598
        %2430 = vmatprep.subr.mxu0 %v603
        %2431 = vmatpush1.msra.mxu0 %v602
        %2432 = vmatprep.subr.mxu0 %v607
        %2433 = vmatpush1.msra.mxu0 %v606
        %2434 = vmatprep.subr.mxu0 %v611
        %2435 = vmatpush1.msra.mxu0 %v610
        %2436 = vmatprep.subr.mxu0 %v615
        %2437 = vmatpush1.msra.mxu0 %v614
        %2438 = vmatprep.subr.mxu0 %v619
        %2439 = vmatpush1.msra.mxu0 %v618
        %2440 = vmatprep.subr.mxu0 %v623
        %2441 = vmatpush1.msra.mxu0 %v622
        %2442 = vmatprep.subr.mxu0 0.0
        %2443 = vmatpush1.msra.mxu0 0.0
        %2444 = vmatprep.subr.mxu0 0.0
        %2445 = vmatpush1.msra.mxu0 0.0
        %2446 = vmatprep.subr.mxu0 0.0
        %2447 = vmatpush1.msra.mxu0 0.0
        %2448 = vmatprep.subr.mxu0 0.0
        %2449 = vmatpush1.msra.mxu0 0.0
        %2450 = vmatprep.subr.mxu0 0.0
        %2451 = vmatpush1.msra.mxu0 0.0
        %2452 = vmatprep.subr.mxu0 0.0
        %2453 = vmatpush1.msra.mxu0 0.0
        %2454 = vmatprep.subr.mxu0 0.0
        %2455 = vmatpush1.msra.mxu0 0.0
        %2456 = vmatprep.subr.mxu0 0.0
        %2457 = vmatpush1.msra.mxu0 0.0
        %2458 = vmatprep.subr.mxu0 0.0
        %2459 = vmatpush1.msra.mxu0 0.0
        %2460 = vmatprep.subr.mxu0 0.0
        %2461 = vmatpush1.msra.mxu0 0.0
        %2462 = vmatprep.subr.mxu0 0.0
        %2463 = vmatpush1.msra.mxu0 0.0
        %2464 = vmatprep.subr.mxu0 0.0
        %2465 = vmatpush1.msra.mxu0 0.0
        %2466 = vmatprep.subr.mxu0 0.0
        %2467 = vmatpush1.msra.mxu0 0.0
        %2468 = vmatprep.subr.mxu0 0.0
        %2469 = vmatpush1.msra.mxu0 0.0
        %2470 = vmatprep.subr.mxu0 0.0
        %2471 = vmatpush1.msra.mxu0 0.0
        %2472 = vmatprep.subr.mxu0 0.0
        %2473 = vmatpush1.msra.mxu0 0.0
        %2474 = vmatprep.subr.mxu0 0.0
        %2475 = vmatpush1.msra.mxu0 0.0
        %2476 = vmatprep.subr.mxu0 0.0
        %2477 = vmatpush1.msra.mxu0 0.0
        %2478 = vmatprep.subr.mxu0 0.0
        %2479 = vmatpush1.msra.mxu0 0.0
        %2480 = vmatprep.subr.mxu0 0.0
        %2481 = vmatpush1.msra.mxu0 0.0
        %2482 = vmatprep.subr.mxu0 0.0
        %2483 = vmatpush1.msra.mxu0 0.0
        %2484 = vmatprep.subr.mxu0 0.0
        %2485 = vmatpush1.msra.mxu0 0.0
        %2486 = vmatprep.subr.mxu0 0.0
        %2487 = vmatpush1.msra.mxu0 0.0
        %2488 = vmatprep.mubr.f32.mxu0 0.0
        %2489 = vmatmul.mubr.f32.gmra.mrb[0].mxu0 %v2343
        %v2490 = vpop.f32.mrb[0].mxu0
        %v2491 = vadd.f32 0.0, %v2490
        %v2492 = vpop.f32.mrb[0].mxu0
        %v2493 = vadd.f32 0.0, %v2492
        %2494 = vmatprep.mubr.f32.mxu0 0.0
        %2495 = vmatmul.mubr.f32.gmra.mrb[0].mxu0 %v2345
        %v2496 = vpop.f32.mrb[0].mxu0
        %v2497 = vadd.f32 0.0, %v2496
        %v2498 = vpop.f32.mrb[0].mxu0
        %v2499 = vadd.f32 0.0, %v2498
        %2500 = vdwg.mxu0
        %v2501 = vadd.f32 %v2251, %v2414
        %v2502 = vadd.f32 %v2253, %v2416
        %v2503 = vadd.f32 %v2328, %v2491
        %v2504 = vadd.f32 %v2330, %v2493
        %v2505 = vadd.f32 %v2257, %v2420
        %v2506 = vadd.f32 %v2259, %v2422
        %v2507 = vadd.f32 %v2334, %v2497
        %v2508 = vadd.f32 %v2336, %v2499
        %v2509 = vadd.f32 %v2501, %v2505
        %v2510 = vrot.slane %v2509, 4
        %v2511 = vadd.f32 %v2509, %v2510
        %v2512 = vrot.slane %v2511, 2
        %v2513 = vadd.f32 %v2511, %v2512
        %v2514 = vrot.slane %v2513, 1
        %v2515 = vadd.f32 %v2513, %v2514
        %v2516 = vadd.f32 %v2502, %v2506
        %v2517 = vrot.slane %v2516, 4
        %v2518 = vadd.f32 %v2516, %v2517
        %v2519 = vrot.slane %v2518, 2
        %v2520 = vadd.f32 %v2518, %v2519
        %v2521 = vrot.slane %v2520, 1
        %v2522 = vadd.f32 %v2520, %v2521
        %v2523 = vadd.f32 %v2503, %v2507
        %v2524 = vrot.slane %v2523, 4
        %v2525 = vadd.f32 %v2523, %v2524
        %v2526 = vrot.slane %v2525, 2
        %v2527 = vadd.f32 %v2525, %v2526
        %v2528 = vrot.slane %v2527, 1
        %v2529 = vadd.f32 %v2527, %v2528
        %v2530 = vadd.f32 %v2504, %v2508
        %v2531 = vrot.slane %v2530, 4
        %v2532 = vadd.f32 %v2530, %v2531
        %v2533 = vrot.slane %v2532, 2
        %v2534 = vadd.f32 %v2532, %v2533
        %v2535 = vrot.slane %v2534, 1
        %v2536 = vadd.f32 %v2534, %v2535
        %v2537 = vadd.f32 %v1966, %v2515
        %v2538 = vadd.f32 %v1967, %v2522
        %v2539 = vadd.f32 %v1968, %v2529
        %v2540 = vadd.f32 %v1969, %v2536
        %v2541 = vmul.f32 %v2501, %v2501
        %v2542 = vmul.f32 %v2502, %v2502
        %v2543 = vmul.f32 %v2503, %v2503
        %v2544 = vmul.f32 %v2504, %v2504
        %v2545 = vmul.f32 %v2505, %v2505
        %v2546 = vmul.f32 %v2506, %v2506
        %v2547 = vmul.f32 %v2507, %v2507
        %v2548 = vmul.f32 %v2508, %v2508
        %v2549 = vadd.f32 %v2541, %v2545
        %v2550 = vrot.slane %v2549, 4
        %v2551 = vadd.f32 %v2549, %v2550
        %v2552 = vrot.slane %v2551, 2
        %v2553 = vadd.f32 %v2551, %v2552
        %v2554 = vrot.slane %v2553, 1
        %v2555 = vadd.f32 %v2553, %v2554
        %v2556 = vadd.f32 %v2542, %v2546
        %v2557 = vrot.slane %v2556, 4
        %v2558 = vadd.f32 %v2556, %v2557
        %v2559 = vrot.slane %v2558, 2
        %v2560 = vadd.f32 %v2558, %v2559
        %v2561 = vrot.slane %v2560, 1
        %v2562 = vadd.f32 %v2560, %v2561
        %v2563 = vadd.f32 %v2543, %v2547
        %v2564 = vrot.slane %v2563, 4
        %v2565 = vadd.f32 %v2563, %v2564
        %v2566 = vrot.slane %v2565, 2
        %v2567 = vadd.f32 %v2565, %v2566
        %v2568 = vrot.slane %v2567, 1
        %v2569 = vadd.f32 %v2567, %v2568
        %v2570 = vadd.f32 %v2544, %v2548
        %v2571 = vrot.slane %v2570, 4
        %v2572 = vadd.f32 %v2570, %v2571
        %v2573 = vrot.slane %v2572, 2
        %v2574 = vadd.f32 %v2572, %v2573
        %v2575 = vrot.slane %v2574, 1
        %v2576 = vadd.f32 %v2574, %v2575
        %v2577 = vadd.f32 %v2006, %v2555
        %v2578 = vadd.f32 %v2007, %v2562
        %v2579 = vadd.f32 %v2008, %v2569
        %v2580 = vadd.f32 %v2009, %v2576
        %s2581 = scalar_lea.vmem %s183, 96
        %v2582 = vld [vmem:[%s2581] sm:$0xff]
        %v2583 = vld [vmem:[%s2581 + $0x8] sm:$0xff]
        %v2584 = vld [vmem:[%s2581 + $0x10] sm:$0x3]
        %v2588 = vrot.slane %v2582, 1
        %v2589 = vrot.slane %v2583, 1
        %v2590 = vsel %vm264, %v2588, %v2589
        %v2591 = vrot.slane %v2584, 1
        %v2592 = vsel %vm264, %v2589, %v2591
        %v2593 = vsel %vm270, %v2590, 0
        %v2595 = vsel %vm270, %v2592, 0
        %2597 = vmatprep.subr.mxu0 %v226
        %2598 = vmatpush1.msra.mxu0 %v225
        %2599 = vmatprep.subr.mxu0 %v230
        %2600 = vmatpush1.msra.mxu0 %v229
        %2601 = vmatprep.subr.mxu0 %v234
        %2602 = vmatpush1.msra.mxu0 %v233
        %2603 = vmatprep.subr.mxu0 %v238
        %2604 = vmatpush1.msra.mxu0 %v237
        %2605 = vmatprep.subr.mxu0 %v242
        %2606 = vmatpush1.msra.mxu0 %v241
        %2607 = vmatprep.subr.mxu0 %v246
        %2608 = vmatpush1.msra.mxu0 %v245
        %2609 = vmatprep.subr.mxu0 %v250
        %2610 = vmatpush1.msra.mxu0 %v249
        %2611 = vmatprep.subr.mxu0 %v254
        %2612 = vmatpush1.msra.mxu0 %v253
        %2613 = vmatprep.subr.mxu0 %v258
        %2614 = vmatpush1.msra.mxu0 %v257
        %2615 = vmatprep.subr.mxu0 0.0
        %2616 = vmatpush1.msra.mxu0 0.0
        %2617 = vmatprep.subr.mxu0 0.0
        %2618 = vmatpush1.msra.mxu0 0.0
        %2619 = vmatprep.subr.mxu0 0.0
        %2620 = vmatpush1.msra.mxu0 0.0
        %2621 = vmatprep.subr.mxu0 0.0
        %2622 = vmatpush1.msra.mxu0 0.0
        %2623 = vmatprep.subr.mxu0 0.0
        %2624 = vmatpush1.msra.mxu0 0.0
        %2625 = vmatprep.subr.mxu0 0.0
        %2626 = vmatpush1.msra.mxu0 0.0
        %2627 = vmatprep.subr.mxu0 0.0
        %2628 = vmatpush1.msra.mxu0 0.0
        %2629 = vmatprep.subr.mxu0 0.0
        %2630 = vmatpush1.msra.mxu0 0.0
        %2631 = vmatprep.subr.mxu0 0.0
        %2632 = vmatpush1.msra.mxu0 0.0
        %2633 = vmatprep.subr.mxu0 0.0
        %2634 = vmatpush1.msra.mxu0 0.0
        %2635 = vmatprep.subr.mxu0 0.0
        %2636 = vmatpush1.msra.mxu0 0.0
        %2637 = vmatprep.subr.mxu0 0.0
        %2638 = vmatpush1.msra.mxu0 0.0
        %2639 = vmatprep.subr.mxu0 0.0
        %2640 = vmatpush1.msra.mxu0 0.0
        %2641 = vmatprep.subr.mxu0 0.0
        %2642 = vmatpush1.msra.mxu0 0.0
        %2643 = vmatprep.subr.mxu0 0.0
        %2644 = vmatpush1.msra.mxu0 0.0
        %2645 = vmatprep.subr.mxu0 0.0
        %2646 = vmatpush1.msra.mxu0 0.0
        %2647 = vmatprep.subr.mxu0 0.0
        %2648 = vmatpush1.msra.mxu0 0.0
        %2649 = vmatprep.subr.mxu0 0.0
        %2650 = vmatpush1.msra.mxu0 0.0
        %2651 = vmatprep.subr.mxu0 0.0
        %2652 = vmatpush1.msra.mxu0 0.0
        %2653 = vmatprep.subr.mxu0 0.0
        %2654 = vmatpush1.msra.mxu0 0.0
        %2655 = vmatprep.subr.mxu0 0.0
        %2656 = vmatpush1.msra.mxu0 0.0
        %2657 = vmatprep.subr.mxu0 0.0
        %2658 = vmatpush1.msra.mxu0 0.0
        %2659 = vmatprep.subr.mxu0 0.0
        %2660 = vmatpush1.msra.mxu0 0.0
        %2661 = vmatprep.mubr.f32.mxu0 0.0
        %2662 = vmatmul.mubr.f32.gmra.mrb[0].mxu0 %v2593
        %v2663 = vpop.f32.mrb[0].mxu0
        %v2664 = vadd.f32 0.0, %v2663
        %v2665 = vpop.f32.mrb[0].mxu0
        %v2666 = vadd.f32 0.0, %v2665
        %2667 = vmatprep.mubr.f32.mxu0 0.0
        %2668 = vmatmul.mubr.f32.gmra.mrb[0].mxu0 %v2595
        %v2669 = vpop.f32.mrb[0].mxu0
        %v2670 = vadd.f32 0.0, %v2669
        %v2671 = vpop.f32.mrb[0].mxu0
        %v2672 = vadd.f32 0.0, %v2671
        %2673 = vdwg.mxu0
        %2674 = vmatprep.subr.mxu0 %v228
        %2675 = vmatpush1.msra.mxu0 %v227
        %2676 = vmatprep.subr.mxu0 %v232
        %2677 = vmatpush1.msra.mxu0 %v231
        %2678 = vmatprep.subr.mxu0 %v236
        %2679 = vmatpush1.msra.mxu0 %v235
        %2680 = vmatprep.subr.mxu0 %v240
        %2681 = vmatpush1.msra.mxu0 %v239
        %2682 = vmatprep.subr.mxu0 %v244
        %2683 = vmatpush1.msra.mxu0 %v243
        %2684 = vmatprep.subr.mxu0 %v248
        %2685 = vmatpush1.msra.mxu0 %v247
        %2686 = vmatprep.subr.mxu0 %v252
        %2687 = vmatpush1.msra.mxu0 %v251
        %2688 = vmatprep.subr.mxu0 %v256
        %2689 = vmatpush1.msra.mxu0 %v255
        %2690 = vmatprep.subr.mxu0 %v260
        %2691 = vmatpush1.msra.mxu0 %v259
        %2692 = vmatprep.subr.mxu0 0.0
        %2693 = vmatpush1.msra.mxu0 0.0
        %2694 = vmatprep.subr.mxu0 0.0
        %2695 = vmatpush1.msra.mxu0 0.0
        %2696 = vmatprep.subr.mxu0 0.0
        %2697 = vmatpush1.msra.mxu0 0.0
        %2698 = vmatprep.subr.mxu0 0.0
        %2699 = vmatpush1.msra.mxu0 0.0
        %2700 = vmatprep.subr.mxu0 0.0
        %2701 = vmatpush1.msra.mxu0 0.0
        %2702 = vmatprep.subr.mxu0 0.0
        %2703 = vmatpush1.msra.mxu0 0.0
        %2704 = vmatprep.subr.mxu0 0.0
        %2705 = vmatpush1.msra.mxu0 0.0
        %2706 = vmatprep.subr.mxu0 0.0
        %2707 = vmatpush1.msra.mxu0 0.0
        %2708 = vmatprep.subr.mxu0 0.0
        %2709 = vmatpush1.msra.mxu0 0.0
        %2710 = vmatprep.subr.mxu0 0.0
        %2711 = vmatpush1.msra.mxu0 0.0
        %2712 = vmatprep.subr.mxu0 0.0
        %2713 = vmatpush1.msra.mxu0 0.0
        %2714 = vmatprep.subr.mxu0 0.0
        %2715 = vmatpush1.msra.mxu0 0.0
        %2716 = vmatprep.subr.mxu0 0.0
        %2717 = vmatpush1.msra.mxu0 0.0
        %2718 = vmatprep.subr.mxu0 0.0
        %2719 = vmatpush1.msra.mxu0 0.0
        %2720 = vmatprep.subr.mxu0 0.0
        %2721 = vmatpush1.msra.mxu0 0.0
        %2722 = vmatprep.subr.mxu0 0.0
        %2723 = vmatpush1.msra.mxu0 0.0
        %2724 = vmatprep.subr.mxu0 0.0
        %2725 = vmatpush1.msra.mxu0 0.0
        %2726 = vmatprep.subr.mxu0 0.0
        %2727 = vmatpush1.msra.mxu0 0.0
        %2728 = vmatprep.subr.mxu0 0.0
        %2729 = vmatpush1.msra.mxu0 0.0
        %2730 = vmatprep.subr.mxu0 0.0
        %2731 = vmatpush1.msra.mxu0 0.0
        %2732 = vmatprep.subr.mxu0 0.0
        %2733 = vmatpush1.msra.mxu0 0.0
        %2734 = vmatprep.subr.mxu0 0.0
        %2735 = vmatpush1.msra.mxu0 0.0
        %2736 = vmatprep.subr.mxu0 0.0
        %2737 = vmatpush1.msra.mxu0 0.0
        %2738 = vmatprep.mubr.f32.mxu0 0.0
        %2739 = vmatmul.mubr.f32.gmra.mrb[0].mxu0 %v2593
        %v2740 = vpop.f32.mrb[0].mxu0
        %v2741 = vadd.f32 0.0, %v2740
        %v2742 = vpop.f32.mrb[0].mxu0
        %v2743 = vadd.f32 0.0, %v2742
        %2744 = vmatprep.mubr.f32.mxu0 0.0
        %2745 = vmatmul.mubr.f32.gmra.mrb[0].mxu0 %v2595
        %v2746 = vpop.f32.mrb[0].mxu0
        %v2747 = vadd.f32 0.0, %v2746
        %v2748 = vpop.f32.mrb[0].mxu0
        %v2749 = vadd.f32 0.0, %v2748
        %2750 = vdwg.mxu0
        %v2751 = vsel %vm270, %v2582, 0
        %v2753 = vsel %vm270, %v2583, 0
        %2755 = vmatprep.subr.mxu0 %v189
        %2756 = vmatpush1.msra.mxu0 %v188
        %2757 = vmatprep.subr.mxu0 %v193
        %2758 = vmatpush1.msra.mxu0 %v192
        %2759 = vmatprep.subr.mxu0 %v197
        %2760 = vmatpush1.msra.mxu0 %v196
        %2761 = vmatprep.subr.mxu0 %v201
        %2762 = vmatpush1.msra.mxu0 %v200
        %2763 = vmatprep.subr.mxu0 %v205
        %2764 = vmatpush1.msra.mxu0 %v204
        %2765 = vmatprep.subr.mxu0 %v209
        %2766 = vmatpush1.msra.mxu0 %v208
        %2767 = vmatprep.subr.mxu0 %v213
        %2768 = vmatpush1.msra.mxu0 %v212
        %2769 = vmatprep.subr.mxu0 %v217
        %2770 = vmatpush1.msra.mxu0 %v216
        %2771 = vmatprep.subr.mxu0 %v221
        %2772 = vmatpush1.msra.mxu0 %v220
        %2773 = vmatprep.subr.mxu0 0.0
        %2774 = vmatpush1.msra.mxu0 0.0
        %2775 = vmatprep.subr.mxu0 0.0
        %2776 = vmatpush1.msra.mxu0 0.0
        %2777 = vmatprep.subr.mxu0 0.0
        %2778 = vmatpush1.msra.mxu0 0.0
        %2779 = vmatprep.subr.mxu0 0.0
        %2780 = vmatpush1.msra.mxu0 0.0
        %2781 = vmatprep.subr.mxu0 0.0
        %2782 = vmatpush1.msra.mxu0 0.0
        %2783 = vmatprep.subr.mxu0 0.0
        %2784 = vmatpush1.msra.mxu0 0.0
        %2785 = vmatprep.subr.mxu0 0.0
        %2786 = vmatpush1.msra.mxu0 0.0
        %2787 = vmatprep.subr.mxu0 0.0
        %2788 = vmatpush1.msra.mxu0 0.0
        %2789 = vmatprep.subr.mxu0 0.0
        %2790 = vmatpush1.msra.mxu0 0.0
        %2791 = vmatprep.subr.mxu0 0.0
        %2792 = vmatpush1.msra.mxu0 0.0
        %2793 = vmatprep.subr.mxu0 0.0
        %2794 = vmatpush1.msra.mxu0 0.0
        %2795 = vmatprep.subr.mxu0 0.0
        %2796 = vmatpush1.msra.mxu0 0.0
        %2797 = vmatprep.subr.mxu0 0.0
        %2798 = vmatpush1.msra.mxu0 0.0
        %2799 = vmatprep.subr.mxu0 0.0
        %2800 = vmatpush1.msra.mxu0 0.0
        %2801 = vmatprep.subr.mxu0 0.0
        %2802 = vmatpush1.msra.mxu0 0.0
        %2803 = vmatprep.subr.mxu0 0.0
        %2804 = vmatpush1.msra.mxu0 0.0
        %2805 = vmatprep.subr.mxu0 0.0
        %2806 = vmatpush1.msra.mxu0 0.0
        %2807 = vmatprep.subr.mxu0 0.0
        %2808 = vmatpush1.msra.mxu0 0.0
        %2809 = vmatprep.subr.mxu0 0.0
        %2810 = vmatpush1.msra.mxu0 0.0
        %2811 = vmatprep.subr.mxu0 0.0
        %2812 = vmatpush1.msra.mxu0 0.0
        %2813 = vmatprep.subr.mxu0 0.0
        %2814 = vmatpush1.msra.mxu0 0.0
        %2815 = vmatprep.subr.mxu0 0.0
        %2816 = vmatpush1.msra.mxu0 0.0
        %2817 = vmatprep.subr.mxu0 0.0
        %2818 = vmatpush1.msra.mxu0 0.0
        %2819 = vmatprep.mubr.f32.mxu0 0.0
        %2820 = vmatmul.mubr.f32.gmra.mrb[0].mxu0 %v2751
        %v2821 = vpop.f32.mrb[0].mxu0
        %v2822 = vadd.f32 %v2664, %v2821
        %v2823 = vpop.f32.mrb[0].mxu0
        %v2824 = vadd.f32 %v2666, %v2823
        %2825 = vmatprep.mubr.f32.mxu0 0.0
        %2826 = vmatmul.mubr.f32.gmra.mrb[0].mxu0 %v2753
        %v2827 = vpop.f32.mrb[0].mxu0
        %v2828 = vadd.f32 %v2670, %v2827
        %v2829 = vpop.f32.mrb[0].mxu0
        %v2830 = vadd.f32 %v2672, %v2829
        %2831 = vdwg.mxu0
        %2832 = vmatprep.subr.mxu0 %v191
        %2833 = vmatpush1.msra.mxu0 %v190
        %2834 = vmatprep.subr.mxu0 %v195
        %2835 = vmatpush1.msra.mxu0 %v194
        %2836 = vmatprep.subr.mxu0 %v199
        %2837 = vmatpush1.msra.mxu0 %v198
        %2838 = vmatprep.subr.mxu0 %v203
        %2839 = vmatpush1.msra.mxu0 %v202
        %2840 = vmatprep.subr.mxu0 %v207
        %2841 = vmatpush1.msra.mxu0 %v206
        %2842 = vmatprep.subr.mxu0 %v211
        %2843 = vmatpush1.msra.mxu0 %v210
        %2844 = vmatprep.subr.mxu0 %v215
        %2845 = vmatpush1.msra.mxu0 %v214
        %2846 = vmatprep.subr.mxu0 %v219
        %2847 = vmatpush1.msra.mxu0 %v218
        %2848 = vmatprep.subr.mxu0 %v223
        %2849 = vmatpush1.msra.mxu0 %v222
        %2850 = vmatprep.subr.mxu0 0.0
        %2851 = vmatpush1.msra.mxu0 0.0
        %2852 = vmatprep.subr.mxu0 0.0
        %2853 = vmatpush1.msra.mxu0 0.0
        %2854 = vmatprep.subr.mxu0 0.0
        %2855 = vmatpush1.msra.mxu0 0.0
        %2856 = vmatprep.subr.mxu0 0.0
        %2857 = vmatpush1.msra.mxu0 0.0
        %2858 = vmatprep.subr.mxu0 0.0
        %2859 = vmatpush1.msra.mxu0 0.0
        %2860 = vmatprep.subr.mxu0 0.0
        %2861 = vmatpush1.msra.mxu0 0.0
        %2862 = vmatprep.subr.mxu0 0.0
        %2863 = vmatpush1.msra.mxu0 0.0
        %2864 = vmatprep.subr.mxu0 0.0
        %2865 = vmatpush1.msra.mxu0 0.0
        %2866 = vmatprep.subr.mxu0 0.0
        %2867 = vmatpush1.msra.mxu0 0.0
        %2868 = vmatprep.subr.mxu0 0.0
        %2869 = vmatpush1.msra.mxu0 0.0
        %2870 = vmatprep.subr.mxu0 0.0
        %2871 = vmatpush1.msra.mxu0 0.0
        %2872 = vmatprep.subr.mxu0 0.0
        %2873 = vmatpush1.msra.mxu0 0.0
        %2874 = vmatprep.subr.mxu0 0.0
        %2875 = vmatpush1.msra.mxu0 0.0
        %2876 = vmatprep.subr.mxu0 0.0
        %2877 = vmatpush1.msra.mxu0 0.0
        %2878 = vmatprep.subr.mxu0 0.0
        %2879 = vmatpush1.msra.mxu0 0.0
        %2880 = vmatprep.subr.mxu0 0.0
        %2881 = vmatpush1.msra.mxu0 0.0
        %2882 = vmatprep.subr.mxu0 0.0
        %2883 = vmatpush1.msra.mxu0 0.0
        %2884 = vmatprep.subr.mxu0 0.0
        %2885 = vmatpush1.msra.mxu0 0.0
        %2886 = vmatprep.subr.mxu0 0.0
        %2887 = vmatpush1.msra.mxu0 0.0
        %2888 = vmatprep.subr.mxu0 0.0
        %2889 = vmatpush1.msra.mxu0 0.0
        %2890 = vmatprep.subr.mxu0 0.0
        %2891 = vmatpush1.msra.mxu0 0.0
        %2892 = vmatprep.subr.mxu0 0.0
        %2893 = vmatpush1.msra.mxu0 0.0
        %2894 = vmatprep.subr.mxu0 0.0
        %2895 = vmatpush1.msra.mxu0 0.0
        %2896 = vmatprep.mubr.f32.mxu0 0.0
        %2897 = vmatmul.mubr.f32.gmra.mrb[0].mxu0 %v2751
        %v2898 = vpop.f32.mrb[0].mxu0
        %v2899 = vadd.f32 %v2741, %v2898
        %v2900 = vpop.f32.mrb[0].mxu0
        %v2901 = vadd.f32 %v2743, %v2900
        %2902 = vmatprep.mubr.f32.mxu0 0.0
        %2903 = vmatmul.mubr.f32.gmra.mrb[0].mxu0 %v2753
        %v2904 = vpop.f32.mrb[0].mxu0
        %v2905 = vadd.f32 %v2747, %v2904
        %v2906 = vpop.f32.mrb[0].mxu0
        %v2907 = vadd.f32 %v2749, %v2906
        %2908 = vdwg.mxu0
        %v2909 = vrot.slane %v2582, 2
        %v2910 = vrot.slane %v2583, 2
        %v2911 = vsel %vm624, %v2909, %v2910
        %v2912 = vrot.slane %v2584, 2
        %v2913 = vsel %vm624, %v2910, %v2912
        %v2914 = vsel %vm270, %v2911, 0
        %v2916 = vsel %vm270, %v2913, 0
        %2918 = vmatprep.subr.mxu0 %v589
        %2919 = vmatpush1.msra.mxu0 %v588
        %2920 = vmatprep.subr.mxu0 %v593
        %2921 = vmatpush1.msra.mxu0 %v592
        %2922 = vmatprep.subr.mxu0 %v597
        %2923 = vmatpush1.msra.mxu0 %v596
        %2924 = vmatprep.subr.mxu0 %v601
        %2925 = vmatpush1.msra.mxu0 %v600
        %2926 = vmatprep.subr.mxu0 %v605
        %2927 = vmatpush1.msra.mxu0 %v604
        %2928 = vmatprep.subr.mxu0 %v609
        %2929 = vmatpush1.msra.mxu0 %v608
        %2930 = vmatprep.subr.mxu0 %v613
        %2931 = vmatpush1.msra.mxu0 %v612
        %2932 = vmatprep.subr.mxu0 %v617
        %2933 = vmatpush1.msra.mxu0 %v616
        %2934 = vmatprep.subr.mxu0 %v621
        %2935 = vmatpush1.msra.mxu0 %v620
        %2936 = vmatprep.subr.mxu0 0.0
        %2937 = vmatpush1.msra.mxu0 0.0
        %2938 = vmatprep.subr.mxu0 0.0
        %2939 = vmatpush1.msra.mxu0 0.0
        %2940 = vmatprep.subr.mxu0 0.0
        %2941 = vmatpush1.msra.mxu0 0.0
        %2942 = vmatprep.subr.mxu0 0.0
        %2943 = vmatpush1.msra.mxu0 0.0
        %2944 = vmatprep.subr.mxu0 0.0
        %2945 = vmatpush1.msra.mxu0 0.0
        %2946 = vmatprep.subr.mxu0 0.0
        %2947 = vmatpush1.msra.mxu0 0.0
        %2948 = vmatprep.subr.mxu0 0.0
        %2949 = vmatpush1.msra.mxu0 0.0
        %2950 = vmatprep.subr.mxu0 0.0
        %2951 = vmatpush1.msra.mxu0 0.0
        %2952 = vmatprep.subr.mxu0 0.0
        %2953 = vmatpush1.msra.mxu0 0.0
        %2954 = vmatprep.subr.mxu0 0.0
        %2955 = vmatpush1.msra.mxu0 0.0
        %2956 = vmatprep.subr.mxu0 0.0
        %2957 = vmatpush1.msra.mxu0 0.0
        %2958 = vmatprep.subr.mxu0 0.0
        %2959 = vmatpush1.msra.mxu0 0.0
        %2960 = vmatprep.subr.mxu0 0.0
        %2961 = vmatpush1.msra.mxu0 0.0
        %2962 = vmatprep.subr.mxu0 0.0
        %2963 = vmatpush1.msra.mxu0 0.0
        %2964 = vmatprep.subr.mxu0 0.0
        %2965 = vmatpush1.msra.mxu0 0.0
        %2966 = vmatprep.subr.mxu0 0.0
        %2967 = vmatpush1.msra.mxu0 0.0
        %2968 = vmatprep.subr.mxu0 0.0
        %2969 = vmatpush1.msra.mxu0 0.0
        %2970 = vmatprep.subr.mxu0 0.0
        %2971 = vmatpush1.msra.mxu0 0.0
        %2972 = vmatprep.subr.mxu0 0.0
        %2973 = vmatpush1.msra.mxu0 0.0
        %2974 = vmatprep.subr.mxu0 0.0
        %2975 = vmatpush1.msra.mxu0 0.0
        %2976 = vmatprep.subr.mxu0 0.0
        %2977 = vmatpush1.msra.mxu0 0.0
        %2978 = vmatprep.subr.mxu0 0.0
        %2979 = vmatpush1.msra.mxu0 0.0
        %2980 = vmatprep.subr.mxu0 0.0
        %2981 = vmatpush1.msra.mxu0 0.0
        %2982 = vmatprep.mubr.f32.mxu0 0.0
        %2983 = vmatmul.mubr.f32.gmra.mrb[0].mxu0 %v2914
        %v2984 = vpop.f32.mrb[0].mxu0
        %v2985 = vadd.f32 0.0, %v2984
        %v2986 = vpop.f32.mrb[0].mxu0
        %v2987 = vadd.f32 0.0, %v2986
        %2988 = vmatprep.mubr.f32.mxu0 0.0
        %2989 = vmatmul.mubr.f32.gmra.mrb[0].mxu0 %v2916
        %v2990 = vpop.f32.mrb[0].mxu0
        %v2991 = vadd.f32 0.0, %v2990
        %v2992 = vpop.f32.mrb[0].mxu0
        %v2993 = vadd.f32 0.0, %v2992
        %2994 = vdwg.mxu0
        %2995 = vmatprep.subr.mxu0 %v591
        %2996 = vmatpush1.msra.mxu0 %v590
        %2997 = vmatprep.subr.mxu0 %v595
        %2998 = vmatpush1.msra.mxu0 %v594
        %2999 = vmatprep.subr.mxu0 %v599
        %3000 = vmatpush1.msra.mxu0 %v598
        %3001 = vmatprep.subr.mxu0 %v603
        %3002 = vmatpush1.msra.mxu0 %v602
        %3003 = vmatprep.subr.mxu0 %v607
        %3004 = vmatpush1.msra.mxu0 %v606
        %3005 = vmatprep.subr.mxu0 %v611
        %3006 = vmatpush1.msra.mxu0 %v610
        %3007 = vmatprep.subr.mxu0 %v615
        %3008 = vmatpush1.msra.mxu0 %v614
        %3009 = vmatprep.subr.mxu0 %v619
        %3010 = vmatpush1.msra.mxu0 %v618
        %3011 = vmatprep.subr.mxu0 %v623
        %3012 = vmatpush1.msra.mxu0 %v622
        %3013 = vmatprep.subr.mxu0 0.0
        %3014 = vmatpush1.msra.mxu0 0.0
        %3015 = vmatprep.subr.mxu0 0.0
        %3016 = vmatpush1.msra.mxu0 0.0
        %3017 = vmatprep.subr.mxu0 0.0
        %3018 = vmatpush1.msra.mxu0 0.0
        %3019 = vmatprep.subr.mxu0 0.0
        %3020 = vmatpush1.msra.mxu0 0.0
        %3021 = vmatprep.subr.mxu0 0.0
        %3022 = vmatpush1.msra.mxu0 0.0
        %3023 = vmatprep.subr.mxu0 0.0
        %3024 = vmatpush1.msra.mxu0 0.0
        %3025 = vmatprep.subr.mxu0 0.0
        %3026 = vmatpush1.msra.mxu0 0.0
        %3027 = vmatprep.subr.mxu0 0.0
        %3028 = vmatpush1.msra.mxu0 0.0
        %3029 = vmatprep.subr.mxu0 0.0
        %3030 = vmatpush1.msra.mxu0 0.0
        %3031 = vmatprep.subr.mxu0 0.0
        %3032 = vmatpush1.msra.mxu0 0.0
        %3033 = vmatprep.subr.mxu0 0.0
        %3034 = vmatpush1.msra.mxu0 0.0
        %3035 = vmatprep.subr.mxu0 0.0
        %3036 = vmatpush1.msra.mxu0 0.0
        %3037 = vmatprep.subr.mxu0 0.0
        %3038 = vmatpush1.msra.mxu0 0.0
        %3039 = vmatprep.subr.mxu0 0.0
        %3040 = vmatpush1.msra.mxu0 0.0
        %3041 = vmatprep.subr.mxu0 0.0
        %3042 = vmatpush1.msra.mxu0 0.0
        %3043 = vmatprep.subr.mxu0 0.0
        %3044 = vmatpush1.msra.mxu0 0.0
        %3045 = vmatprep.subr.mxu0 0.0
        %3046 = vmatpush1.msra.mxu0 0.0
        %3047 = vmatprep.subr.mxu0 0.0
        %3048 = vmatpush1.msra.mxu0 0.0
        %3049 = vmatprep.subr.mxu0 0.0
        %3050 = vmatpush1.msra.mxu0 0.0
        %3051 = vmatprep.subr.mxu0 0.0
        %3052 = vmatpush1.msra.mxu0 0.0
        %3053 = vmatprep.subr.mxu0 0.0
        %3054 = vmatpush1.msra.mxu0 0.0
        %3055 = vmatprep.subr.mxu0 0.0
        %3056 = vmatpush1.msra.mxu0 0.0
        %3057 = vmatprep.subr.mxu0 0.0
        %3058 = vmatpush1.msra.mxu0 0.0
        %3059 = vmatprep.mubr.f32.mxu0 0.0
        %3060 = vmatmul.mubr.f32.gmra.mrb[0].mxu0 %v2914
        %v3061 = vpop.f32.mrb[0].mxu0
        %v3062 = vadd.f32 0.0, %v3061
        %v3063 = vpop.f32.mrb[0].mxu0
        %v3064 = vadd.f32 0.0, %v3063
        %3065 = vmatprep.mubr.f32.mxu0 0.0
        %3066 = vmatmul.mubr.f32.gmra.mrb[0].mxu0 %v2916
        %v3067 = vpop.f32.mrb[0].mxu0
        %v3068 = vadd.f32 0.0, %v3067
        %v3069 = vpop.f32.mrb[0].mxu0
        %v3070 = vadd.f32 0.0, %v3069
        %3071 = vdwg.mxu0
        %v3072 = vadd.f32 %v2822, %v2985
        %v3073 = vadd.f32 %v2824, %v2987
        %v3074 = vadd.f32 %v2899, %v3062
        %v3075 = vadd.f32 %v2901, %v3064
        %v3076 = vadd.f32 %v2828, %v2991
        %v3077 = vadd.f32 %v2830, %v2993
        %v3078 = vadd.f32 %v2905, %v3068
        %v3079 = vadd.f32 %v2907, %v3070
        %v3080 = vadd.f32 %v3072, %v3076
        %v3081 = vrot.slane %v3080, 4
        %v3082 = vadd.f32 %v3080, %v3081
        %v3083 = vrot.slane %v3082, 2
        %v3084 = vadd.f32 %v3082, %v3083
        %v3085 = vrot.slane %v3084, 1
        %v3086 = vadd.f32 %v3084, %v3085
        %v3087 = vadd.f32 %v3073, %v3077
        %v3088 = vrot.slane %v3087, 4
        %v3089 = vadd.f32 %v3087, %v3088
        %v3090 = vrot.slane %v3089, 2
        %v3091 = vadd.f32 %v3089, %v3090
        %v3092 = vrot.slane %v3091, 1
        %v3093 = vadd.f32 %v3091, %v3092
        %v3094 = vadd.f32 %v3074, %v3078
        %v3095 = vrot.slane %v3094, 4
        %v3096 = vadd.f32 %v3094, %v3095
        %v3097 = vrot.slane %v3096, 2
        %v3098 = vadd.f32 %v3096, %v3097
        %v3099 = vrot.slane %v3098, 1
        %v3100 = vadd.f32 %v3098, %v3099
        %v3101 = vadd.f32 %v3075, %v3079
        %v3102 = vrot.slane %v3101, 4
        %v3103 = vadd.f32 %v3101, %v3102
        %v3104 = vrot.slane %v3103, 2
        %v3105 = vadd.f32 %v3103, %v3104
        %v3106 = vrot.slane %v3105, 1
        %v3107 = vadd.f32 %v3105, %v3106
        %v3108 = vadd.f32 %v2537, %v3086
        %v3109 = vadd.f32 %v2538, %v3093
        %v3110 = vadd.f32 %v2539, %v3100
        %v3111 = vadd.f32 %v2540, %v3107
        %v3112 = vmul.f32 %v3072, %v3072
        %v3113 = vmul.f32 %v3073, %v3073
        %v3114 = vmul.f32 %v3074, %v3074
        %v3115 = vmul.f32 %v3075, %v3075
        %v3116 = vmul.f32 %v3076, %v3076
        %v3117 = vmul.f32 %v3077, %v3077
        %v3118 = vmul.f32 %v3078, %v3078
        %v3119 = vmul.f32 %v3079, %v3079
        %v3120 = vadd.f32 %v3112, %v3116
        %v3121 = vrot.slane %v3120, 4
        %v3122 = vadd.f32 %v3120, %v3121
        %v3123 = vrot.slane %v3122, 2
        %v3124 = vadd.f32 %v3122, %v3123
        %v3125 = vrot.slane %v3124, 1
        %v3126 = vadd.f32 %v3124, %v3125
        %v3127 = vadd.f32 %v3113, %v3117
        %v3128 = vrot.slane %v3127, 4
        %v3129 = vadd.f32 %v3127, %v3128
        %v3130 = vrot.slane %v3129, 2
        %v3131 = vadd.f32 %v3129, %v3130
        %v3132 = vrot.slane %v3131, 1
        %v3133 = vadd.f32 %v3131, %v3132
        %v3134 = vadd.f32 %v3114, %v3118
        %v3135 = vrot.slane %v3134, 4
        %v3136 = vadd.f32 %v3134, %v3135
        %v3137 = vrot.slane %v3136, 2
        %v3138 = vadd.f32 %v3136, %v3137
        %v3139 = vrot.slane %v3138, 1
        %v3140 = vadd.f32 %v3138, %v3139
        %v3141 = vadd.f32 %v3115, %v3119
        %v3142 = vrot.slane %v3141, 4
        %v3143 = vadd.f32 %v3141, %v3142
        %v3144 = vrot.slane %v3143, 2
        %v3145 = vadd.f32 %v3143, %v3144
        %v3146 = vrot.slane %v3145, 1
        %v3147 = vadd.f32 %v3145, %v3146
        %v3148 = vadd.f32 %v2577, %v3126
        %v3149 = vadd.f32 %v2578, %v3133
        %v3150 = vadd.f32 %v2579, %v3140
        %v3151 = vadd.f32 %v2580, %v3147
        %v3156 = vcombine.low %v3108, %v3109
        %v3157 = vcombine.low %v3110, %v3111
        %v3159 = vunpack.c.l.s4 1966171168
        %v3160 = vunpack.c.0.s8 %v3159
        %v3161 = vlaneseq
        %v3162 = vshrl.u32 %v3161, 7
        %v3163 = vsub.s32 %v3160, %v3162
        %v3164 = vrot.slane %v3156, %v3163
        %v3166 = vunpack.c.l.s4 1966171168
        %v3167 = vunpack.c.0.s8 %v3166
        %v3168 = vlaneseq
        %v3169 = vshrl.u32 %v3168, 7
        %v3170 = vsub.s32 %v3167, %v3169
        %v3171 = vrot.slane %v3157, %v3170
        %v3172 = vcombine.low %v3164, %v3171
        %v3174 = vunpack.c.l.s4 1966171168
        %v3175 = vunpack.c.0.s8 %v3174
        %v3176 = vlaneseq
        %v3177 = vshrl.u32 %v3176, 7
        %v3178 = vsub.s32 %v3175, %v3177
        %v3179 = vrot.slane %v3172, %v3178
        %v3181 = vlaneseq
        %vm3182 = vcmp.ge.s32.totalorder %v3181, 0
        %vm3183 = vcmp.lt.s32.totalorder %v3181, 512
        %vm3184 = vmand %vm3182, %vm3183
        %3185 = vst.msk [vmem:[%s170] sm:$0xf] %vm3184, %v3179
        %v3190 = vcombine.low %v3148, %v3149
        %v3191 = vcombine.low %v3150, %v3151
        %v3193 = vunpack.c.l.s4 1966171168
        %v3194 = vunpack.c.0.s8 %v3193
        %v3195 = vlaneseq
        %v3196 = vshrl.u32 %v3195, 7
        %v3197 = vsub.s32 %v3194, %v3196
        %v3198 = vrot.slane %v3190, %v3197
        %v3200 = vunpack.c.l.s4 1966171168
        %v3201 = vunpack.c.0.s8 %v3200
        %v3202 = vlaneseq
        %v3203 = vshrl.u32 %v3202, 7
        %v3204 = vsub.s32 %v3201, %v3203
        %v3205 = vrot.slane %v3191, %v3204
        %v3206 = vcombine.low %v3198, %v3205
        %v3208 = vunpack.c.l.s4 1966171168
        %v3209 = vunpack.c.0.s8 %v3208
        %v3210 = vlaneseq
        %v3211 = vshrl.u32 %v3210, 7
        %v3212 = vsub.s32 %v3209, %v3211
        %v3213 = vrot.slane %v3206, %v3212
        %3215 = vst.msk [vmem:[%s177] sm:$0xf] %vm3184, %v3213
        %s3216 = sand.u32 %s76, 1
        %s3217 = scalar_lea.sflag [#allocation3], %s3216
        %s3218 = sand.u32 %s76, 1
        %s3219 = smul.addr %s3218, 4
        %s3220 = scalar_lea.vmem [#allocation2], %s3219
        %s3221 = sand.u32 %s102, 1
        %s3222 = scalar_lea.sflag [#allocation5], %s3221
        %s3223 = sand.u32 %s102, 1
        %s3224 = smul.addr %s3223, 4
        %s3225 = scalar_lea.vmem [#allocation4], %s3224
        // Predicated region
        $region29: #{tpu_custom_call.1} parent=27 // pred_check
          %p3226 = pneg %p86
        $region30: #{tpu_custom_call.1} parent=27 // pred_check_branch
          %3228 = sbr.rel (%p3226) target = $region32
        $region31: #{tpu_custom_call.1} parent=27 // pred_region
          %s3230 = ssub.s32 64, 64
          %3231 = vsyncadd %s3217, %s3230
          %s3232 = smul.addr %s21, 4
          %s3233 = smul.addr %s3232, 16
          %s3234 = scalar_lea.hbm %s2, %s3233
          %s3236 = sshll.u32 %s3220, 4
          %s3237 = int_to_ptr.vmem [resolvable:$true] %s3236
          %3239 = dma.vmem_to_hbm [thread:$0]  %s3237, 64, %s3234, %s3217
        $region32: #{tpu_custom_call.1} parent=27 // pred_fallthru
          _
        // Predicated region
        $region33: #{tpu_custom_call.1} parent=27 // pred_check
          %p3240 = pneg %p112
        $region34: #{tpu_custom_call.1} parent=27 // pred_check_branch
          %3242 = sbr.rel (%p3240) target = $region36
        $region35: #{tpu_custom_call.1} parent=27 // pred_region
          %s3244 = ssub.s32 64, 64
          %3245 = vsyncadd %s3222, %s3244
          %s3246 = smul.addr %s21, 4
          %s3247 = smul.addr %s3246, 16
          %s3248 = scalar_lea.hbm %s3, %s3247
          %s3250 = sshll.u32 %s3225, 4
          %s3251 = int_to_ptr.vmem [resolvable:$true] %s3250
          %3253 = dma.vmem_to_hbm [thread:$0]  %s3251, 64, %s3248, %s3222
        $region36: #{tpu_custom_call.1} parent=27 // pred_fallthru
          _
      $region28: #{tpu_custom_call.1} parent=5 // pred_fallthru
        _
      %p3254 = scmp.le.s32.totalorder 2, %s16
      // Predicated region
      $region37: #{tpu_custom_call.1} parent=5 // pred_check
        %p3255 = pneg %p3254
      $region38: #{tpu_custom_call.1} parent=5 // pred_check_branch
        %3257 = sbr.rel (%p3255) target = $region40
      $region39: #{tpu_custom_call.1} parent=5 // pred_region
        %s3258 = ssub.s32 %s16, 2
        // Predicated region
        $region41: #{tpu_custom_call.1} parent=39 // pred_check
          %p3259 = pneg %p92
        $region42: #{tpu_custom_call.1} parent=39 // pred_check_branch
          %3261 = sbr.rel (%p3259) target = $region44
        $region43: #{tpu_custom_call.1} parent=39 // pred_region
          %s3262 = sand.u32 %s77, 1
          %s3263 = scalar_lea.sflag [#allocation3], %s3262
          %s3264 = sand.u32 %s77, 1
          %s3265 = smul.addr %s3264, 4
          %s3266 = scalar_lea.vmem [#allocation2], %s3265
          %3267 = dma.done %s3263, 64
        $region44: #{tpu_custom_call.1} parent=39 // pred_fallthru
          _
        // Predicated region
        $region45: #{tpu_custom_call.1} parent=39 // pred_check
          %p3268 = pneg %p118
        $region46: #{tpu_custom_call.1} parent=39 // pred_check_branch
          %3270 = sbr.rel (%p3268) target = $region48
        $region47: #{tpu_custom_call.1} parent=39 // pred_region
          %s3271 = sand.u32 %s103, 1
          %s3272 = scalar_lea.sflag [#allocation5], %s3271
          %s3273 = sand.u32 %s103, 1
          %s3274 = smul.addr %s3273, 4
          %s3275 = scalar_lea.vmem [#allocation4], %s3274
          %3276 = dma.done %s3272, 64
        $region48: #{tpu_custom_call.1} parent=39 // pred_fallthru
          _
      $region40: #{tpu_custom_call.1} parent=5 // pred_fallthru
        _
    $region6: #{tpu_custom_call.1} parent=1 // loop_footer
      %s20 = sadd.s32 1, %s16
    $region7: #{tpu_custom_call.1} parent=1 // loop_footer_branch
      %15 = sbr.rel target = $region3
    $region8: #{tpu_custom_call.1} parent=1 // loop_exit
      _
    %3277 = vsyncpa [#allocation3], 1
    %s3278 = scalar_lea.sflag [#allocation3], 1
    %3279 = vsyncpa %s3278, 1
    %3280 = vsyncpa [#allocation5], 1
    %s3281 = scalar_lea.sflag [#allocation5], 1
    %3282 = vsyncpa %s3281, 1

</llo_original>
